<compile_context>
chip_gen: v7x
topology: tpu7x:2x2x1
jax: 0.10.0
libtpu: 0.0.40
codegen_flags: <defaults>
</compile_context>

<pallas_src>
import functools
import math

import jax
import jax.numpy as jnp
from jax.experimental import pallas as pl
from jax.experimental.pallas import tpu as pltpu


def _aspp_kernel_folded(x_ref, w_ref, scale_ref, shift_ref, o_ref, slab_ref,
                        *, kh_kw, dilation):
    """Small-Cin path: im2col fold into a single MXU dot.

    x_ref:     (1, Hp_pad, Wp, Cin)  bf16 padded input image (batch n)
    w_ref:     (KH*KW*Cin, Cpad)     bf16 im2col-flattened weights
    scale_ref: (1, Cpad)             f32 fused BN scale
    shift_ref: (1, Cpad)             f32 fused BN shift
    o_ref:     (1, TH*Wo, Cpad)      output row tile (flattened over H, W)
    slab_ref:  (TH*Wo, KH*KW*Cin)    bf16 VMEM scratch im2col slab
    """
    KH, KW = kh_kw
    _, _, Wp, Cin = x_ref.shape
    _, M, _ = o_ref.shape
    Wo = Wp - (KW - 1) * dilation
    TH = M // Wo

    row0 = pl.program_id(1) * TH

    # Gather the KH*KW shifted windows straight into the bf16 scratch slab
    # (no f32 round trip, no concatenate relayout).
    for kh in range(KH):
        rows = x_ref[0, pl.ds(row0 + kh * dilation, TH), :, :]   # (TH, Wp, Cin)
        for kw in range(KW):
            t = kh * KW + kw
            ow = kw * dilation
            tap = rows[:, ow:ow + Wo, :].reshape(M, Cin)
            slab_ref[:, t * Cin:(t + 1) * Cin] = tap

    acc = jnp.dot(slab_ref[...], w_ref[...], preferred_element_type=jnp.float32)
    y = jnp.maximum(acc * scale_ref[0] + shift_ref[0], 0.0)      # fused BN+ReLU
    o_ref[0] = y.astype(o_ref.dtype)


def _aspp_kernel_pertap(x_ref, w_ref, scale_ref, shift_ref, o_ref, acc_ref,
                        *, kh_kw, dilation):
    """Large-Cin path (Cin >= 128): one MXU dot per tap with contraction depth
    Cin, accumulated into an f32 VMEM scratch (no im2col slab, no loop-carried
    vreg accumulator)."""
    KH, KW = kh_kw
    _, _, Wp, Cin = x_ref.shape
    _, M, _ = o_ref.shape
    Wo = Wp - (KW - 1) * dilation
    TH = M // Wo

    row0 = pl.program_id(1) * TH

    acc_ref[...] = jnp.zeros_like(acc_ref)
    for kh in range(KH):
        rows = x_ref[0, pl.ds(row0 + kh * dilation, TH), :, :]   # (TH, Wp, Cin)
        for kw in range(KW):
            t = kh * KW + kw
            ow = kw * dilation
            win = rows[:, ow:ow + Wo, :].reshape(M, Cin)
            acc_ref[...] += jnp.dot(win, w_ref[t * Cin:(t + 1) * Cin, :],
                                    preferred_element_type=jnp.float32)

    y = jnp.maximum(acc_ref[...] * scale_ref[0] + shift_ref[0], 0.0)
    o_ref[0] = y.astype(o_ref.dtype)


def _pick_row_tile(Ho, Wo):
    """Rows per output tile.  TH is a multiple of 8 (keeps TH*Wo sublane
    aligned for any Wo), targets TH*Wo ~ 512 MXU rows, and uses >= 2 tiles
    whenever Ho allows so the row axis can shard across TensorCores.  Ho is
    padded up to n_rt*TH; the surplus rows are sliced off in the wrapper."""
    th = -(-512 // max(Wo, 1))                       # ceil(512 / Wo)
    th = max(8, ((th + 7) // 8) * 8)                 # multiple of 8
    if Ho <= th:
        th = ((-(-Ho // 2) + 7) // 8) * 8 if Ho > 8 else Ho
    n_rt = -(-Ho // th)
    return th, n_rt, n_rt * th


def _build_call(*, N, Hp_pad, Wp, Cin, K, Cpad, Wo, TH, n_rt, kh_kw, dilation,
                out_dtype):
    fold = Cin < 128
    kernel = _aspp_kernel_folded if fold else _aspp_kernel_pertap
    kern = functools.partial(kernel, kh_kw=kh_kw, dilation=dilation)
    M = TH * Wo

    if fold:
        scratch = [pltpu.VMEM((M, K), jnp.bfloat16)]
        scratch_bytes = M * K * 2
    else:
        scratch = [pltpu.VMEM((M, Cpad), jnp.float32)]
        scratch_bytes = M * Cpad * 4

    # Scoped-VMEM budget from the actual block sizes (double buffering on the
    # pipelined blocks), clamped to a cross-generation-safe ceiling.
    # TODO(synk): pipeline_mode=pl.Buffered(1) on the constant-index weight /
    # scale / shift blocks would halve their resident footprint at production
    # K*Cpad sizes.
    out_itemsize = jnp.dtype(out_dtype).itemsize
    est = (2 * (Hp_pad * Wp * Cin * 2 + K * Cpad * 2 + 2 * Cpad * 4
                + M * Cpad * out_itemsize) + scratch_bytes)
    vmem_limit = int(min(max(int(est * 1.5) + (2 << 20), 32 << 20), 64 << 20))

    # N >= 2: let megacore shard on the batch axis (disjoint HBM reads);
    # N == 1: allow the row-tile axis to shard instead.
    dims = ("parallel", "parallel") if N == 1 else ("parallel", "arbitrary")

    return pl.pallas_call(
        kern,
        out_shape=jax.ShapeDtypeStruct((N, n_rt * M, Cpad), out_dtype),
        grid_spec=pltpu.PrefetchScalarGridSpec(
            num_scalar_prefetch=0,
            grid=(N, n_rt),
            in_specs=[
                # Whole padded image of batch n, resident across row tiles.
                # TODO(synk): for large feature maps switch to row strips with
                # an explicit halo (pl.ANY + pltpu.make_async_copy) to respect
                # v7x's 64 MiB VMEM and avoid duplicate HBM reads when r is
                # sharded across cores.
                pl.BlockSpec((1, Hp_pad, Wp, Cin), lambda n, r: (n, 0, 0, 0)),
                # Weights / BN scale / shift: constant index maps -> fetched
                # once and kept resident in VMEM.
                pl.BlockSpec((K, Cpad), lambda n, r: (0, 0)),
                pl.BlockSpec((1, Cpad), lambda n, r: (0, 0)),
                pl.BlockSpec((1, Cpad), lambda n, r: (0, 0)),
            ],
            out_specs=pl.BlockSpec((1, M, Cpad), lambda n, r: (n, r, 0)),
            scratch_shapes=scratch,
        ),
        compiler_params=pltpu.CompilerParams(
            dimension_semantics=dims, vmem_limit_bytes=vmem_limit),
    )


def aspp_forward(x_nchw, weight_oihw, bn_gamma, bn_beta, bn_mean, bn_var,
                 *, padding=0, dilation=1, eps=1e-5, out_dtype=jnp.float32):
    """Forward pass of _ASPPModule (stride=1, bias=False):
       relu(bn(conv2d(x, W, padding=padding, dilation=dilation)))."""
    N, Cin, H, W = x_nchw.shape
    Cout, _, KH, KW = weight_oihw.shape

    Hp, Wp = H + 2 * padding, W + 2 * padding
    Ho = Hp - (KH - 1) * dilation
    Wo = Wp - (KW - 1) * dilation
    TH, n_rt, Ho_pad = _pick_row_tile(Ho, Wo)
    extra_h = Ho_pad - Ho
    Hp_pad = Hp + extra_h

    # NCHW -> NHWC (channels on lanes), zero-pad (conv padding + row-tile
    # padding), bf16 on the DMA path (f32 accumulation in-kernel).
    # TODO(synk): keep activations NHWC/bf16 end-to-end in the surrounding
    # model (or use allow_input_fusion) so these extra HBM passes drop out.
    # TODO(synk): for Cin << 128, lane-pack Cin into the W axis to avoid
    # ~128/Cin VMEM / DMA inflation of the activation tiles.
    x = jnp.transpose(x_nchw, (0, 2, 3, 1))
    x = jnp.pad(x, ((0, 0), (padding, padding + extra_h),
                    (padding, padding), (0, 0)))
    x = x.astype(jnp.bfloat16)

    # OIHW -> (KH*KW*Cin, Cout) im2col weight layout.  Lane-pad Cout only when
    # it is already >= 128 (for tiny Cout masked stores beat 16-32x output
    # write amplification on this memory-bound op).
    K = KH * KW * Cin
    Cpad = ((Cout + 127) // 128) * 128 if Cout >= 128 else Cout
    w = jnp.transpose(weight_oihw, (2, 3, 1, 0)).reshape(K, Cout)
    w = jnp.pad(w, ((0, 0), (0, Cpad - Cout))).astype(jnp.bfloat16)

    # Fold eval-mode BatchNorm into per-channel scale/shift (conv bias=False).
    gamma = bn_gamma.astype(jnp.float32)
    inv_std = 1.0 / jnp.sqrt(bn_var.astype(jnp.float32) + eps)
    scale = gamma * inv_std
    shift = bn_beta.astype(jnp.float32) - bn_mean.astype(jnp.float32) * scale
    scale = jnp.pad(scale, (0, Cpad - Cout)).reshape(1, Cpad)
    shift = jnp.pad(shift, (0, Cpad - Cout)).reshape(1, Cpad)

    call = _build_call(N=N, Hp_pad=Hp_pad, Wp=Wp, Cin=Cin, K=K, Cpad=Cpad,
                       Wo=Wo, TH=TH, n_rt=n_rt, kh_kw=(KH, KW),
                       dilation=dilation, out_dtype=out_dtype)
    out = call(x, w, scale, shift)                       # (N, Ho_pad*Wo, Cpad)

    # Un-flatten (free, contiguous), drop row/channel padding, back to NCHW.
    out = out.reshape(N, Ho_pad, Wo, Cpad)[:, :Ho, :, :Cout]
    return jnp.transpose(out, (0, 3, 1, 2))


def _reference(x_nchw, weight_oihw, bn_gamma, bn_beta, bn_mean, bn_var,
               *, padding=0, dilation=1, eps=1e-5):
    y = jax.lax.conv_general_dilated(
        x_nchw, weight_oihw,
        window_strides=(1, 1),
        padding=((padding, padding), (padding, padding)),
        rhs_dilation=(dilation, dilation),
        dimension_numbers=("NCHW", "OIHW", "NCHW"),
        precision=jax.lax.Precision.HIGHEST)
    inv_std = 1.0 / jnp.sqrt(bn_var + eps)
    scale = (bn_gamma * inv_std).reshape(1, -1, 1, 1)
    shift = (bn_beta - bn_mean * bn_gamma * inv_std).reshape(1, -1, 1, 1)
    return jnp.maximum(y * scale + shift, 0.0)


def _run_case(key, *, N, Cin, Cout, H, W, ksize, padding, dilation,
              nontrivial_bn):
    kx, kw, kb = jax.random.split(key, 3)
    x = jax.random.normal(kx, (N, Cin, H, W), dtype=jnp.float32)

    # kaiming_normal_ on the conv weight (fan_in = Cin*KH*KW), bias=False.
    fan_in = Cin * ksize * ksize
    weight = math.sqrt(2.0 / fan_in) * jax.random.normal(
        kw, (Cout, Cin, ksize, ksize), dtype=jnp.float32)

    if nontrivial_bn:
        g = jax.random.normal(kb, (4, Cout), dtype=jnp.float32)
        gamma = 1.0 + 0.1 * g[0]
        beta = 0.1 * g[1]
        mean = 0.2 * g[2]
        var = 1.0 + 0.5 * jnp.abs(g[3])
    else:
        # BatchNorm2d state per _init_weight: weight=1, bias=0, stats 0/1.
        gamma = jnp.ones((Cout,), jnp.float32)
        beta = jnp.zeros((Cout,), jnp.float32)
        mean = jnp.zeros((Cout,), jnp.float32)
        var = jnp.ones((Cout,), jnp.float32)

    out = aspp_forward(x, weight, gamma, beta, mean, var,
                       padding=padding, dilation=dilation)
    out = jax.block_until_ready(out)

    Ho = H + 2 * padding - (ksize - 1) * dilation
    Wo = W + 2 * padding - (ksize - 1) * dilation
    assert out.shape == (N, Cout, Ho, Wo), out.shape

    # Tight check vs. a reference on the same bf16-rounded inputs (the kernel
    # is bf16 x bf16 with f32 accumulation -> only summation-order deltas).
    x_bf = x.astype(jnp.bfloat16).astype(jnp.float32)
    w_bf = weight.astype(jnp.bfloat16).astype(jnp.float32)
    ref_bf = _reference(x_bf, w_bf, gamma, beta, mean, var,
                        padding=padding, dilation=dilation)
    assert jnp.allclose(out, ref_bf, rtol=1e-3, atol=1e-3), \
        "mismatch vs bf16-input reference"

    # Loose check vs. full-f32 module semantics (bounds bf16 input rounding).
    ref = _reference(x, weight, gamma, beta, mean, var,
                     padding=padding, dilation=dilation)
    assert jnp.allclose(out, ref, rtol=5e-2, atol=5e-2), \
        "mismatch vs f32 reference"


if __name__ == "__main__":
    key = jax.random.PRNGKey(0)
    cases = [
        # Module toy config (_ASPPModule(4, 8, 3, padding=1, dilation=1)),
        # called with the torch forward defaults padding=0, dilation=1.
        dict(N=2, Cin=4, Cout=8, H=16, W=16, ksize=3, padding=0, dilation=1,
             nontrivial_bn=False),
        # Atrous path: dilation=2, padding=2, non-trivial BN running stats.
        dict(N=1, Cin=4, Cout=8, H=16, W=16, ksize=3, padding=2, dilation=2,
             nontrivial_bn=True),
        # Cin >= 128 exercises the per-tap kernel variant (VMEM accumulator).
        dict(N=1, Cin=128, Cout=16, H=8, W=8, ksize=3, padding=1, dilation=1,
             nontrivial_bn=True),
    ]
    for i, cfg in enumerate(cases):
        _run_case(jax.random.fold_in(key, i), **cfg)
    print("KERNEL_OK")
</pallas_src>

<mosaic_0001>
module attributes {stable_mosaic.version = 11 : i64} {
  func.func @_aspp_kernel_folded(%arg0: i32, %arg1: i32, %arg2: memref<1x18x16x4xbf16, #tpu.memory_space<vmem>>, %arg3: memref<36x8xbf16, #tpu.memory_space<vmem>>, %arg4: memref<1x8xf32, #tpu.memory_space<vmem>>, %arg5: memref<1x8xf32, #tpu.memory_space<vmem>>, %arg6: memref<1x112x8xf32, #tpu.memory_space<vmem>>, %arg7: memref<112x36xbf16, #tpu.memory_space<vmem>>) attributes {dimension_semantics = [#tpu.dimension_semantics<parallel>, #tpu.dimension_semantics<arbitrary>], iteration_bounds = array<i64: 2, 2>, scalar_prefetch = 0 : i64, scratch_operands = 1 : i64, tpu.core_type = #tpu.core_type<tc>, window_params = [{transform_indices = @transform_0, window_bounds = array<i64: 1, 18, 16, 4>}, {pipeline_mode = #tpu.pipeline_mode<synchronous>, transform_indices = @transform_1, window_bounds = array<i64: 36, 8>}, {pipeline_mode = #tpu.pipeline_mode<synchronous>, transform_indices = @transform_2, window_bounds = array<i64: 1, 8>}, {pipeline_mode = #tpu.pipeline_mode<synchronous>, transform_indices = @transform_3, window_bounds = array<i64: 1, 8>}, {transform_indices = @transform_4, window_bounds = array<i64: 1, 112, 8>}]} {
    %c8_i32 = arith.constant 8 : i32
    %0 = arith.muli %arg1, %c8_i32 : i32
    %c0_i32 = arith.constant 0 : i32
    %1 = arith.addi %0, %c0_i32 : i32
    %c0 = arith.constant 0 : index
    %2 = arith.index_cast %1 : i32 to index
    %c0_0 = arith.constant 0 : index
    %c0_1 = arith.constant 0 : index
    %3 = vector.load %arg2[%c0, %2, %c0_0, %c0_1] : memref<1x18x16x4xbf16, #tpu.memory_space<vmem>>, vector<1x8x16x4xbf16>
    %4 = vector.shape_cast %3 : vector<1x8x16x4xbf16> to vector<8x16x4xbf16>
    %5 = vector.extract_strided_slice %4 {offsets = [0, 0, 0], sizes = [8, 14, 4], strides = [1, 1, 1]} : vector<8x16x4xbf16> to vector<8x14x4xbf16>
    %6 = vector.shape_cast %5 : vector<8x14x4xbf16> to vector<112x4xbf16>
    %c0_2 = arith.constant 0 : index
    %c0_3 = arith.constant 0 : index
    %7 = vector.load %arg7[%c0_2, %c0_3] : memref<112x36xbf16, #tpu.memory_space<vmem>>, vector<112x4xbf16>
    tpu.vector_store %arg7[%c0_2, %c0_3], %6 {strides = array<i32>} : memref<112x36xbf16, #tpu.memory_space<vmem>>, vector<112x4xbf16>,
    %8 = vector.extract_strided_slice %4 {offsets = [0, 1, 0], sizes = [8, 14, 4], strides = [1, 1, 1]} : vector<8x16x4xbf16> to vector<8x14x4xbf16>
    %9 = vector.shape_cast %8 : vector<8x14x4xbf16> to vector<112x4xbf16>
    %c0_4 = arith.constant 0 : index
    %c4 = arith.constant 4 : index
    %10 = vector.load %arg7[%c0_4, %c4] : memref<112x36xbf16, #tpu.memory_space<vmem>>, vector<112x4xbf16>
    tpu.vector_store %arg7[%c0_4, %c4], %9 {strides = array<i32>} : memref<112x36xbf16, #tpu.memory_space<vmem>>, vector<112x4xbf16>,
    %11 = vector.extract_strided_slice %4 {offsets = [0, 2, 0], sizes = [8, 14, 4], strides = [1, 1, 1]} : vector<8x16x4xbf16> to vector<8x14x4xbf16>
    %12 = vector.shape_cast %11 : vector<8x14x4xbf16> to vector<112x4xbf16>
    %c0_5 = arith.constant 0 : index
    %c8 = arith.constant 8 : index
    %13 = vector.load %arg7[%c0_5, %c8] : memref<112x36xbf16, #tpu.memory_space<vmem>>, vector<112x4xbf16>
    tpu.vector_store %arg7[%c0_5, %c8], %12 {strides = array<i32>} : memref<112x36xbf16, #tpu.memory_space<vmem>>, vector<112x4xbf16>,
    %c1_i32 = arith.constant 1 : i32
    %14 = arith.addi %0, %c1_i32 : i32
    %c0_6 = arith.constant 0 : index
    %15 = arith.index_cast %14 : i32 to index
    %c0_7 = arith.constant 0 : index
    %c0_8 = arith.constant 0 : index
    %16 = vector.load %arg2[%c0_6, %15, %c0_7, %c0_8] : memref<1x18x16x4xbf16, #tpu.memory_space<vmem>>, vector<1x8x16x4xbf16>
    %17 = vector.shape_cast %16 : vector<1x8x16x4xbf16> to vector<8x16x4xbf16>
    %18 = vector.extract_strided_slice %17 {offsets = [0, 0, 0], sizes = [8, 14, 4], strides = [1, 1, 1]} : vector<8x16x4xbf16> to vector<8x14x4xbf16>
    %19 = vector.shape_cast %18 : vector<8x14x4xbf16> to vector<112x4xbf16>
    %c0_9 = arith.constant 0 : index
    %c12 = arith.constant 12 : index
    %20 = vector.load %arg7[%c0_9, %c12] : memref<112x36xbf16, #tpu.memory_space<vmem>>, vector<112x4xbf16>
    tpu.vector_store %arg7[%c0_9, %c12], %19 {strides = array<i32>} : memref<112x36xbf16, #tpu.memory_space<vmem>>, vector<112x4xbf16>,
    %21 = vector.extract_strided_slice %17 {offsets = [0, 1, 0], sizes = [8, 14, 4], strides = [1, 1, 1]} : vector<8x16x4xbf16> to vector<8x14x4xbf16>
    %22 = vector.shape_cast %21 : vector<8x14x4xbf16> to vector<112x4xbf16>
    %c0_10 = arith.constant 0 : index
    %c16 = arith.constant 16 : index
    %23 = vector.load %arg7[%c0_10, %c16] : memref<112x36xbf16, #tpu.memory_space<vmem>>, vector<112x4xbf16>
    tpu.vector_store %arg7[%c0_10, %c16], %22 {strides = array<i32>} : memref<112x36xbf16, #tpu.memory_space<vmem>>, vector<112x4xbf16>,
    %24 = vector.extract_strided_slice %17 {offsets = [0, 2, 0], sizes = [8, 14, 4], strides = [1, 1, 1]} : vector<8x16x4xbf16> to vector<8x14x4xbf16>
    %25 = vector.shape_cast %24 : vector<8x14x4xbf16> to vector<112x4xbf16>
    %c0_11 = arith.constant 0 : index
    %c20 = arith.constant 20 : index
    %26 = vector.load %arg7[%c0_11, %c20] : memref<112x36xbf16, #tpu.memory_space<vmem>>, vector<112x4xbf16>
    tpu.vector_store %arg7[%c0_11, %c20], %25 {strides = array<i32>} : memref<112x36xbf16, #tpu.memory_space<vmem>>, vector<112x4xbf16>,
    %c2_i32 = arith.constant 2 : i32
    %27 = arith.addi %0, %c2_i32 : i32
    %c0_12 = arith.constant 0 : index
    %28 = arith.index_cast %27 : i32 to index
    %c0_13 = arith.constant 0 : index
    %c0_14 = arith.constant 0 : index
    %29 = vector.load %arg2[%c0_12, %28, %c0_13, %c0_14] : memref<1x18x16x4xbf16, #tpu.memory_space<vmem>>, vector<1x8x16x4xbf16>
    %30 = vector.shape_cast %29 : vector<1x8x16x4xbf16> to vector<8x16x4xbf16>
    %31 = vector.extract_strided_slice %30 {offsets = [0, 0, 0], sizes = [8, 14, 4], strides = [1, 1, 1]} : vector<8x16x4xbf16> to vector<8x14x4xbf16>
    %32 = vector.shape_cast %31 : vector<8x14x4xbf16> to vector<112x4xbf16>
    %c0_15 = arith.constant 0 : index
    %c24 = arith.constant 24 : index
    %33 = vector.load %arg7[%c0_15, %c24] : memref<112x36xbf16, #tpu.memory_space<vmem>>, vector<112x4xbf16>
    tpu.vector_store %arg7[%c0_15, %c24], %32 {strides = array<i32>} : memref<112x36xbf16, #tpu.memory_space<vmem>>, vector<112x4xbf16>,
    %34 = vector.extract_strided_slice %30 {offsets = [0, 1, 0], sizes = [8, 14, 4], strides = [1, 1, 1]} : vector<8x16x4xbf16> to vector<8x14x4xbf16>
    %35 = vector.shape_cast %34 : vector<8x14x4xbf16> to vector<112x4xbf16>
    %c0_16 = arith.constant 0 : index
    %c28 = arith.constant 28 : index
    %36 = vector.load %arg7[%c0_16, %c28] : memref<112x36xbf16, #tpu.memory_space<vmem>>, vector<112x4xbf16>
    tpu.vector_store %arg7[%c0_16, %c28], %35 {strides = array<i32>} : memref<112x36xbf16, #tpu.memory_space<vmem>>, vector<112x4xbf16>,
    %37 = vector.extract_strided_slice %30 {offsets = [0, 2, 0], sizes = [8, 14, 4], strides = [1, 1, 1]} : vector<8x16x4xbf16> to vector<8x14x4xbf16>
    %38 = vector.shape_cast %37 : vector<8x14x4xbf16> to vector<112x4xbf16>
    %c0_17 = arith.constant 0 : index
    %c32 = arith.constant 32 : index
    %39 = vector.load %arg7[%c0_17, %c32] : memref<112x36xbf16, #tpu.memory_space<vmem>>, vector<112x4xbf16>
    tpu.vector_store %arg7[%c0_17, %c32], %38 {strides = array<i32>} : memref<112x36xbf16, #tpu.memory_space<vmem>>, vector<112x4xbf16>,
    %c0_18 = arith.constant 0 : index
    %c0_19 = arith.constant 0 : index
    %40 = vector.load %arg7[%c0_18, %c0_19] : memref<112x36xbf16, #tpu.memory_space<vmem>>, vector<112x36xbf16>
    %c0_20 = arith.constant 0 : index
    %c0_21 = arith.constant 0 : index
    %41 = vector.load %arg3[%c0_20, %c0_21] : memref<36x8xbf16, #tpu.memory_space<vmem>>, vector<36x8xbf16>
    %cst = arith.constant dense<0.000000e+00> : vector<112x8xf32>
    %42 = tpu.matmul %40, %41, %cst {dimension_numbers = #tpu.dot_dimension_numbers<[1], [0], [0], [1], [0, 0, 1, 1], [], []>} : vector<112x36xbf16>, vector<36x8xbf16>, vector<112x8xf32> -> vector<112x8xf32>
    %c0_22 = arith.constant 0 : index
    %c0_23 = arith.constant 0 : index
    %43 = vector.load %arg4[%c0_22, %c0_23] : memref<1x8xf32, #tpu.memory_space<vmem>>, vector<1x8xf32>
    %44 = vector.shape_cast %43 : vector<1x8xf32> to vector<8xf32>
    %45 = vector.shape_cast %44 : vector<8xf32> to vector<1x8xf32>
    %46 = vector.broadcast %45 : vector<1x8xf32> to vector<112x8xf32>
    %47 = arith.mulf %42, %46 : vector<112x8xf32>
    %c0_24 = arith.constant 0 : index
    %c0_25 = arith.constant 0 : index
    %48 = vector.load %arg5[%c0_24, %c0_25] : memref<1x8xf32, #tpu.memory_space<vmem>>, vector<1x8xf32>
    %49 = vector.shape_cast %48 : vector<1x8xf32> to vector<8xf32>
    %50 = vector.shape_cast %49 : vector<8xf32> to vector<1x8xf32>
    %51 = vector.broadcast %50 : vector<1x8xf32> to vector<112x8xf32>
    %52 = arith.addf %47, %51 : vector<112x8xf32>
    %cst_26 = arith.constant 0.000000e+00 : f32
    %53 = vector.broadcast %cst_26 : f32 to vector<112x8xf32>
    %54 = arith.maximumf %52, %53 : vector<112x8xf32>
    %c0_27 = arith.constant 0 : index
    %c0_28 = arith.constant 0 : index
    %c0_29 = arith.constant 0 : index
    %55 = vector.load %arg6[%c0_27, %c0_28, %c0_29] : memref<1x112x8xf32, #tpu.memory_space<vmem>>, vector<1x112x8xf32>
    %56 = vector.shape_cast %55 : vector<1x112x8xf32> to vector<112x8xf32>
    %57 = vector.shape_cast %54 : vector<112x8xf32> to vector<1x112x8xf32>
    tpu.vector_store %arg6[%c0_27, %c0_28, %c0_29], %57 {strides = array<i32>} : memref<1x112x8xf32, #tpu.memory_space<vmem>>, vector<1x112x8xf32>,
    return
  }
  func.func @transform_0(%arg0: i32, %arg1: i32) -> (i32, i32, i32, i32) {
    %c0_i32 = arith.constant 0 : i32
    %c0_i32_0 = arith.constant 0 : i32
    %c0_i32_1 = arith.constant 0 : i32
    %c0_i32_2 = arith.constant 0 : i32
    return %arg0, %c0_i32, %c0_i32_0, %c0_i32_1 : i32, i32, i32, i32
  }
  func.func @transform_1(%arg0: i32, %arg1: i32) -> (i32, i32) {
    %c0_i32 = arith.constant 0 : i32
    %c0_i32_0 = arith.constant 0 : i32
    %c0_i32_1 = arith.constant 0 : i32
    return %c0_i32, %c0_i32_0 : i32, i32
  }
  func.func @transform_2(%arg0: i32, %arg1: i32) -> (i32, i32) {
    %c0_i32 = arith.constant 0 : i32
    %c0_i32_0 = arith.constant 0 : i32
    %c0_i32_1 = arith.constant 0 : i32
    return %c0_i32, %c0_i32_0 : i32, i32
  }
  func.func @transform_3(%arg0: i32, %arg1: i32) -> (i32, i32) {
    %c0_i32 = arith.constant 0 : i32
    %c0_i32_0 = arith.constant 0 : i32
    %c0_i32_1 = arith.constant 0 : i32
    return %c0_i32, %c0_i32_0 : i32, i32
  }
  func.func @transform_4(%arg0: i32, %arg1: i32) -> (i32, i32, i32) {
    %c0_i32 = arith.constant 0 : i32
    %c0_i32_0 = arith.constant 0 : i32
    return %arg0, %arg1, %c0_i32 : i32, i32, i32
  }
}

</mosaic_0001>

<llo_original>
// kernel: tpu_custom_call.1
$region0: #{tpu_custom_call.1}
  #allocation0 [shape = 'u32[]', space=smem, size = 0x4, offset = 0x4, fixed_abs, tag = 'smem constant byte address 0x4 - core index']
  #allocation1 [shape = 'u32[144,128]{1,0:T(1,128)}', space=vmem, size = 0x12000, scoped, tag = 'internal scratch']
  #allocation2 [shape = 'bf16[112,36]{1,0:T(16,128)(2,1)}', space=vmem, size = 0x7000, scoped, tag = 'scratch operand']
  %s0 = inlined_call_operand.vmem [shape: bf16[2,18,16,4], index: 0, kind: input, shape index: {}]
  %s1 = inlined_call_operand.vmem [shape: bf16[36,8], index: 1, kind: input, shape index: {}]
  %s2 = inlined_call_operand.vmem [shape: f32[1,8], index: 2, kind: input, shape index: {}]
  %s3 = inlined_call_operand.vmem [shape: f32[1,8], index: 3, kind: input, shape index: {}]
  %s4 = inlined_call_operand.vmem [shape: f32[2,224,8], index: 4, kind: output, shape index: {}]
  %s5 = sld [smem:[#allocation0]]
  $region49: #{tpu_custom_call.1} parent=0
    _
  %s7 = ssub.s32 1, %s5
  %s8 = scalar_select 0, %s7, %s5
  loop: start=0, step=1, limit=6
  $region2: #{tpu_custom_call.1} parent=0 // loop_pre_header
    _
  $region3: #{tpu_custom_call.1} parent=0 // loop_header
    %s10 = sphi 0, %s14
    %p11 = scmp.ge.s32.totalorder %s10, 6
    %s17 = sphi 0, %s29
    %s18 = sphi 0, %s25
    %s19 = sphi 0, %s17
    %s20 = sphi 0, %s18
    %s21 = sphi 0, %s19
    %s22 = sphi 0, %s20
    %s32 = sphi 0, %s34
    %s35 = sphi 0, %s32
    %s36 = sphi 0, %s35
    %s52 = sphi 0, %s36
    %s56 = sphi 0, %s56
    %s58 = sphi 0, %s56
    %s59 = sphi 0, %s58
    %s73 = sphi 0, %s59
    %s77 = sphi 0, %s77
    %s79 = sphi 0, %s77
    %s80 = sphi 0, %s79
    %s94 = sphi 0, %s80
    %s98 = sphi 0, %s98
    %s100 = sphi 0, %s98
    %s101 = sphi 0, %s100
    %s115 = sphi 0, %s101
    %s123 = sphi 0, %s125
    %s126 = sphi 0, %s123
    %s127 = sphi 0, %s126
    %s143 = sphi 0, %s127
  $region4: #{tpu_custom_call.1} parent=0 // loop_header_branch
    %13 = sbr.rel (%p11) target = $region8
  $region5: #{tpu_custom_call.1} parent=0 // loop_body
    %s15 = ssub.s32 %s10, 1
    %s16 = ssub.s32 %s10, 2
    %s23 = sadd.s32 1, %s18
    %p24 = scmp.ge.s32.totalorder %s23, 2
    %s25 = scalar_select %p24, 0, %s23
    %s26 = sadd.s32 1, %s17
    %s27 = scalar_select %p24, %s26, %s17
    %p28 = scmp.ge.s32.totalorder %s27, 2
    %s29 = scalar_select %p28, 0, %s27
    %s30 = ssub.s32 %s17, %s29
    %p31 = scmp.eq.s32.totalorder %s30, 0
    %s33 = sadd.s32 %s32, 1
    %s34 = scalar_select %p31, %s32, %s33
    %p37 = pneg %p31
    %p38 = scmp.eq.s32.totalorder %s10, 3
    %p39 = por %p37, %p38
    %p40 = scmp.ne.s32.totalorder %s32, %s35
    %p41 = scmp.eq.s32.totalorder %s10, 0
    %p42 = por %p40, %p41
    %p43 = scmp.ne.s32.totalorder %s32, %s35
    %p44 = scmp.eq.s32.totalorder %s15, 3
    %p45 = por %p43, %p44
    %p46 = scmp.ne.s32.totalorder %s35, %s36
    %p47 = scmp.eq.s32.totalorder %s15, 0
    %p48 = por %p46, %p47
    %p49 = scmp.ne.s32.totalorder %s35, %s36
    %p50 = scmp.eq.s32.totalorder %s16, 3
    %p51 = por %p49, %p50
    %p53 = scmp.ne.s32.totalorder %s36, %s52
    %p54 = scmp.eq.s32.totalorder %s16, 0
    %p55 = por %p53, %p54
    %s57 = sadd.s32 %s56, 1
    %p60 = scmp.eq.s32.totalorder %s10, 3
    %p61 = scmp.ne.s32.totalorder %s56, %s58
    %p62 = scmp.eq.s32.totalorder %s10, 0
    %p63 = por %p61, %p62
    %p64 = scmp.ne.s32.totalorder %s56, %s58
    %p65 = scmp.eq.s32.totalorder %s15, 3
    %p66 = por %p64, %p65
    %p67 = scmp.ne.s32.totalorder %s58, %s59
    %p68 = scmp.eq.s32.totalorder %s15, 0
    %p69 = por %p67, %p68
    %p70 = scmp.ne.s32.totalorder %s58, %s59
    %p71 = scmp.eq.s32.totalorder %s16, 3
    %p72 = por %p70, %p71
    %p74 = scmp.ne.s32.totalorder %s59, %s73
    %p75 = scmp.eq.s32.totalorder %s16, 0
    %p76 = por %p74, %p75
    %s78 = sadd.s32 %s77, 1
    %p81 = scmp.eq.s32.totalorder %s10, 3
    %p82 = scmp.ne.s32.totalorder %s77, %s79
    %p83 = scmp.eq.s32.totalorder %s10, 0
    %p84 = por %p82, %p83
    %p85 = scmp.ne.s32.totalorder %s77, %s79
    %p86 = scmp.eq.s32.totalorder %s15, 3
    %p87 = por %p85, %p86
    %p88 = scmp.ne.s32.totalorder %s79, %s80
    %p89 = scmp.eq.s32.totalorder %s15, 0
    %p90 = por %p88, %p89
    %p91 = scmp.ne.s32.totalorder %s79, %s80
    %p92 = scmp.eq.s32.totalorder %s16, 3
    %p93 = por %p91, %p92
    %p95 = scmp.ne.s32.totalorder %s80, %s94
    %p96 = scmp.eq.s32.totalorder %s16, 0
    %p97 = por %p95, %p96
    %s99 = sadd.s32 %s98, 1
    %p102 = scmp.eq.s32.totalorder %s10, 3
    %p103 = scmp.ne.s32.totalorder %s98, %s100
    %p104 = scmp.eq.s32.totalorder %s10, 0
    %p105 = por %p103, %p104
    %p106 = scmp.ne.s32.totalorder %s98, %s100
    %p107 = scmp.eq.s32.totalorder %s15, 3
    %p108 = por %p106, %p107
    %p109 = scmp.ne.s32.totalorder %s100, %s101
    %p110 = scmp.eq.s32.totalorder %s15, 0
    %p111 = por %p109, %p110
    %p112 = scmp.ne.s32.totalorder %s100, %s101
    %p113 = scmp.eq.s32.totalorder %s16, 3
    %p114 = por %p112, %p113
    %p116 = scmp.ne.s32.totalorder %s101, %s115
    %p117 = scmp.eq.s32.totalorder %s16, 0
    %p118 = por %p116, %p117
    %s119 = ssub.s32 %s17, %s29
    %s120 = ssub.s32 %s18, %s25
    %s121 = sor.u32 %s119, %s120
    %p122 = scmp.eq.s32.totalorder %s121, 0
    %s124 = sadd.s32 %s123, 1
    %s125 = scalar_select %p122, %s123, %s124
    %p128 = pneg %p122
    %p129 = scmp.eq.s32.totalorder %s10, 3
    %p130 = por %p128, %p129
    %p131 = scmp.ne.s32.totalorder %s123, %s126
    %p132 = scmp.eq.s32.totalorder %s10, 0
    %p133 = por %p131, %p132
    %p134 = scmp.ne.s32.totalorder %s123, %s126
    %p135 = scmp.eq.s32.totalorder %s15, 3
    %p136 = por %p134, %p135
    %p137 = scmp.ne.s32.totalorder %s126, %s127
    %p138 = scmp.eq.s32.totalorder %s15, 0
    %p139 = por %p137, %p138
    %p140 = scmp.ne.s32.totalorder %s126, %s127
    %p141 = scmp.eq.s32.totalorder %s16, 3
    %p142 = por %p140, %p141
    %p144 = scmp.ne.s32.totalorder %s127, %s143
    %p145 = scmp.eq.s32.totalorder %s16, 0
    %p146 = por %p144, %p145
    %p147 = scmp.le.s32.totalorder 1, %s10
    %p148 = scmp.lt.s32.totalorder %s10, 5
    %p149 = pnand %p147, %p148
    %p150 = pneg %p149
    // Predicated region
    $region9: #{tpu_custom_call.1} parent=5 // pred_check
      _
    $region10: #{tpu_custom_call.1} parent=5 // pred_check_branch
      %152 = sbr.rel (%p149) target = $region12
    $region11: #{tpu_custom_call.1} parent=5 // pred_region
      %s153 = ssub.s32 %s10, 1
      // Predicated region
      $region13: #{tpu_custom_call.1} parent=11 // pred_check
        %p154 = pneg %p69
      $region14: #{tpu_custom_call.1} parent=11 // pred_check_branch
        %156 = sbr.rel (%p154) target = $region16
      $region15: #{tpu_custom_call.1} parent=11 // pred_region
        _
      $region16: #{tpu_custom_call.1} parent=11 // pred_fallthru
        _
      // Predicated region
      $region17: #{tpu_custom_call.1} parent=11 // pred_check
        %p157 = pneg %p90
      $region18: #{tpu_custom_call.1} parent=11 // pred_check_branch
        %159 = sbr.rel (%p157) target = $region20
      $region19: #{tpu_custom_call.1} parent=11 // pred_region
        _
      $region20: #{tpu_custom_call.1} parent=11 // pred_fallthru
        _
      // Predicated region
      $region21: #{tpu_custom_call.1} parent=11 // pred_check
        %p160 = pneg %p111
      $region22: #{tpu_custom_call.1} parent=11 // pred_check_branch
        %162 = sbr.rel (%p160) target = $region24
      $region23: #{tpu_custom_call.1} parent=11 // pred_region
        _
      $region24: #{tpu_custom_call.1} parent=11 // pred_fallthru
        _
    $region12: #{tpu_custom_call.1} parent=5 // pred_fallthru
      _
    %p163 = scmp.lt.s32.totalorder %s10, 4
    // Predicated region
    $region25: #{tpu_custom_call.1} parent=5 // pred_check
      %p164 = pneg %p163
    $region26: #{tpu_custom_call.1} parent=5 // pred_check_branch
      %166 = sbr.rel (%p164) target = $region28
    $region27: #{tpu_custom_call.1} parent=5 // pred_region
      // Predicated region
      $region29: #{tpu_custom_call.1} parent=27 // pred_check
        %p167 = pneg %p42
      $region30: #{tpu_custom_call.1} parent=27 // pred_check_branch
        %169 = sbr.rel (%p167) target = $region32
      $region31: #{tpu_custom_call.1} parent=27 // pred_region
        %p170 = scmp.lt.s32.totalorder %s17, 1
        %s171 = scalar_select %p170, %s17, 1
        %s172 = smul.addr %s171, 36
        %s173 = smul.addr %s172, 4
        %s174 = scalar_lea.vmem %s0, %s173
      $region32: #{tpu_custom_call.1} parent=27 // pred_fallthru
        _
    $region28: #{tpu_custom_call.1} parent=5 // pred_fallthru
      _
    %p175 = scmp.le.s32.totalorder 1, %s10
    %p176 = scmp.lt.s32.totalorder %s10, 5
    %p177 = pnand %p175, %p176
    %p178 = pneg %p177
    // Predicated region
    $region33: #{tpu_custom_call.1} parent=5 // pred_check
      _
    $region34: #{tpu_custom_call.1} parent=5 // pred_check_branch
      %180 = sbr.rel (%p177) target = $region36
    $region35: #{tpu_custom_call.1} parent=5 // pred_region
      %s181 = ssub.s32 %s10, 1
      %p182 = scmp.lt.s32.totalorder %s19, 1
      %s183 = scalar_select %p182, %s19, 1
      %s184 = smul.addr %s183, 36
      %s185 = smul.addr %s184, 4
      %s186 = scalar_lea.vmem %s0, %s185
      %p187 = pneg %p48
      %p188 = pneg %p45
      %p189 = pneg %p69
      %p190 = pneg %p66
      %p191 = pneg %p90
      %p192 = pneg %p87
      %p193 = pneg %p111
      %p194 = pneg %p108
      %p195 = pneg %p139
      %p196 = pneg %p136
      %s197 = smul.u32 14, %s20
      %p198 = scmp.lt.s32.totalorder %s19, 1
      %s199 = scalar_select %p198, %s19, 1
      %p200 = scmp.lt.s32.totalorder %s197, 27
      %s201 = scalar_select %p200, %s197, 27
      %s202 = smul.addr %s199, 28
      %s203 = sadd.s32 %s201, %s202
      %s204 = smul.addr %s203, 8
      %s205 = scalar_lea.vmem %s4, %s204
      %p206 = scmp.lt.s32.totalorder %s19, 1
      %s207 = scalar_select %p206, %s19, 1
      %s208 = smul.addr %s207, 36
      %s209 = smul.addr %s208, 4
      %s210 = scalar_lea.vmem %s0, %s209
      %s211 = smul.u32 14, %s20
      %p212 = scmp.lt.s32.totalorder %s19, 1
      %s213 = scalar_select %p212, %s19, 1
      %p214 = scmp.lt.s32.totalorder %s211, 27
      %s215 = scalar_select %p214, %s211, 27
      %s216 = smul.addr %s213, 28
      %s217 = sadd.s32 %s215, %s216
      %s218 = smul.addr %s217, 8
      %s219 = scalar_lea.vmem %s4, %s218
      %s220 = smul.u32 14, %s20
      %s222 = smul.u32 %s20, 8
      %s223 = smul.u32 %s222, 2
      %s224 = smul.addr %s223, 4
      %s225 = scalar_lea.vmem %s210, %s224
      %v226 = vld [vmem:[%s225] sm:$0xf]
      %v227 = vld [vmem:[%s225 + $0x4] sm:$0xf]
      %v228 = vld [vmem:[%s225 + $0x8] sm:$0xf]
      %v229 = vld [vmem:[%s225 + $0xc] sm:$0xf]
      %v230 = vld [vmem:[%s225 + $0x10] sm:$0xf]
      %v231 = vld [vmem:[%s225 + $0x14] sm:$0xf]
      %v232 = vld [vmem:[%s225 + $0x18] sm:$0xf]
      %v233 = vld [vmem:[%s225 + $0x1c] sm:$0xf]
      %v234 = vld [vmem:[%s225 + $0x20] sm:$0xf]
      %v235 = vld [vmem:[%s225 + $0x24] sm:$0xf]
      %v236 = vld [vmem:[%s225 + $0x28] sm:$0xf]
      %v237 = vld [vmem:[%s225 + $0x2c] sm:$0xf]
      %v238 = vld [vmem:[%s225 + $0x30] sm:$0xf]
      %v239 = vld [vmem:[%s225 + $0x34] sm:$0xf]
      %v240 = vld [vmem:[%s225 + $0x38] sm:$0xf]
      %v241 = vld [vmem:[%s225 + $0x3c] sm:$0xf]
      %v259 = vunpack.c.l.s4 1966171168
      %v260 = vunpack.c.0.s8 %v259
      %v261 = vlaneseq
      %v262 = vshrl.u32 %v261, 7
      %v263 = vsub.s32 %v260, %v262
      %v264 = vrot.slane %v226, %v263
      %v265 = vcombine.high %v264, %v264
      %v267 = vunpack.c.l.s4 1966171168
      %v268 = vunpack.c.0.s8 %v267
      %v269 = vlaneseq
      %v270 = vshrl.u32 %v269, 7
      %v271 = vsub.s32 %v268, %v270
      %v272 = vrot.slane %v264, %v271
      %v274 = vunpack.c.l.s4 1966171168
      %v275 = vunpack.c.0.s8 %v274
      %v276 = vlaneseq
      %v277 = vshrl.u32 %v276, 7
      %v278 = vsub.s32 %v275, %v277
      %v279 = vrot.slane %v265, %v278
      %v280 = vcombine.high %v272, %v272
      %v281 = vcombine.high %v279, %v279
      %v283 = vunpack.c.l.s4 1966171168
      %v284 = vunpack.c.0.s8 %v283
      %v285 = vlaneseq
      %v286 = vshrl.u32 %v285, 7
      %v287 = vsub.s32 %v284, %v286
      %v288 = vrot.slane %v227, %v287
      %v289 = vcombine.high %v288, %v288
      %v291 = vunpack.c.l.s4 1966171168
      %v292 = vunpack.c.0.s8 %v291
      %v293 = vlaneseq
      %v294 = vshrl.u32 %v293, 7
      %v295 = vsub.s32 %v292, %v294
      %v296 = vrot.slane %v288, %v295
      %v298 = vunpack.c.l.s4 1966171168
      %v299 = vunpack.c.0.s8 %v298
      %v300 = vlaneseq
      %v301 = vshrl.u32 %v300, 7
      %v302 = vsub.s32 %v299, %v301
      %v303 = vrot.slane %v289, %v302
      %v304 = vcombine.high %v296, %v296
      %v306 = vunpack.c.l.s4 1966171168
      %v307 = vunpack.c.0.s8 %v306
      %v308 = vlaneseq
      %v309 = vshrl.u32 %v308, 7
      %v310 = vsub.s32 %v307, %v309
      %v311 = vrot.slane %v228, %v310
      %v312 = vcombine.high %v311, %v311
      %v314 = vunpack.c.l.s4 1966171168
      %v315 = vunpack.c.0.s8 %v314
      %v316 = vlaneseq
      %v317 = vshrl.u32 %v316, 7
      %v318 = vsub.s32 %v315, %v317
      %v319 = vrot.slane %v311, %v318
      %v321 = vunpack.c.l.s4 1966171168
      %v322 = vunpack.c.0.s8 %v321
      %v323 = vlaneseq
      %v324 = vshrl.u32 %v323, 7
      %v325 = vsub.s32 %v322, %v324
      %v326 = vrot.slane %v312, %v325
      %v327 = vcombine.high %v319, %v319
      %v328 = vcombine.high %v326, %v326
      %v330 = vunpack.c.l.s4 1966171168
      %v331 = vunpack.c.0.s8 %v330
      %v332 = vlaneseq
      %v333 = vshrl.u32 %v332, 7
      %v334 = vsub.s32 %v331, %v333
      %v335 = vrot.slane %v229, %v334
      %v336 = vcombine.high %v335, %v335
      %v338 = vunpack.c.l.s4 1966171168
      %v339 = vunpack.c.0.s8 %v338
      %v340 = vlaneseq
      %v341 = vshrl.u32 %v340, 7
      %v342 = vsub.s32 %v339, %v341
      %v343 = vrot.slane %v335, %v342
      %v345 = vunpack.c.l.s4 1966171168
      %v346 = vunpack.c.0.s8 %v345
      %v347 = vlaneseq
      %v348 = vshrl.u32 %v347, 7
      %v349 = vsub.s32 %v346, %v348
      %v350 = vrot.slane %v336, %v349
      %v351 = vcombine.high %v343, %v343
      %v353 = vunpack.c.l.s4 1966171168
      %v354 = vunpack.c.0.s8 %v353
      %v355 = vlaneseq
      %v356 = vshrl.u32 %v355, 7
      %v357 = vsub.s32 %v354, %v356
      %v358 = vrot.slane %v230, %v357
      %v359 = vcombine.high %v358, %v358
      %v361 = vunpack.c.l.s4 1966171168
      %v362 = vunpack.c.0.s8 %v361
      %v363 = vlaneseq
      %v364 = vshrl.u32 %v363, 7
      %v365 = vsub.s32 %v362, %v364
      %v366 = vrot.slane %v358, %v365
      %v368 = vunpack.c.l.s4 1966171168
      %v369 = vunpack.c.0.s8 %v368
      %v370 = vlaneseq
      %v371 = vshrl.u32 %v370, 7
      %v372 = vsub.s32 %v369, %v371
      %v373 = vrot.slane %v359, %v372
      %v374 = vcombine.high %v366, %v366
      %v375 = vcombine.high %v373, %v373
      %v377 = vunpack.c.l.s4 1966171168
      %v378 = vunpack.c.0.s8 %v377
      %v379 = vlaneseq
      %v380 = vshrl.u32 %v379, 7
      %v381 = vsub.s32 %v378, %v380
      %v382 = vrot.slane %v231, %v381
      %v383 = vcombine.high %v382, %v382
      %v385 = vunpack.c.l.s4 1966171168
      %v386 = vunpack.c.0.s8 %v385
      %v387 = vlaneseq
      %v388 = vshrl.u32 %v387, 7
      %v389 = vsub.s32 %v386, %v388
      %v390 = vrot.slane %v382, %v389
      %v392 = vunpack.c.l.s4 1966171168
      %v393 = vunpack.c.0.s8 %v392
      %v394 = vlaneseq
      %v395 = vshrl.u32 %v394, 7
      %v396 = vsub.s32 %v393, %v395
      %v397 = vrot.slane %v383, %v396
      %v398 = vcombine.high %v390, %v390
      %v400 = vunpack.c.l.s4 1966171168
      %v401 = vunpack.c.0.s8 %v400
      %v402 = vlaneseq
      %v403 = vshrl.u32 %v402, 7
      %v404 = vsub.s32 %v401, %v403
      %v405 = vrot.slane %v232, %v404
      %v406 = vcombine.high %v405, %v405
      %v408 = vunpack.c.l.s4 1966171168
      %v409 = vunpack.c.0.s8 %v408
      %v410 = vlaneseq
      %v411 = vshrl.u32 %v410, 7
      %v412 = vsub.s32 %v409, %v411
      %v413 = vrot.slane %v405, %v412
      %v415 = vunpack.c.l.s4 1966171168
      %v416 = vunpack.c.0.s8 %v415
      %v417 = vlaneseq
      %v418 = vshrl.u32 %v417, 7
      %v419 = vsub.s32 %v416, %v418
      %v420 = vrot.slane %v406, %v419
      %v421 = vcombine.high %v413, %v413
      %v422 = vcombine.high %v420, %v420
      %v424 = vunpack.c.l.s4 1966171168
      %v425 = vunpack.c.0.s8 %v424
      %v426 = vlaneseq
      %v427 = vshrl.u32 %v426, 7
      %v428 = vsub.s32 %v425, %v427
      %v429 = vrot.slane %v233, %v428
      %v430 = vcombine.high %v429, %v429
      %v432 = vunpack.c.l.s4 1966171168
      %v433 = vunpack.c.0.s8 %v432
      %v434 = vlaneseq
      %v435 = vshrl.u32 %v434, 7
      %v436 = vsub.s32 %v433, %v435
      %v437 = vrot.slane %v429, %v436
      %v439 = vunpack.c.l.s4 1966171168
      %v440 = vunpack.c.0.s8 %v439
      %v441 = vlaneseq
      %v442 = vshrl.u32 %v441, 7
      %v443 = vsub.s32 %v440, %v442
      %v444 = vrot.slane %v430, %v443
      %v445 = vcombine.high %v437, %v437
      %v447 = vunpack.c.l.s4 1966171168
      %v448 = vunpack.c.0.s8 %v447
      %v449 = vlaneseq
      %v450 = vshrl.u32 %v449, 7
      %v451 = vsub.s32 %v448, %v450
      %v452 = vrot.slane %v234, %v451
      %v453 = vcombine.high %v452, %v452
      %v455 = vunpack.c.l.s4 1966171168
      %v456 = vunpack.c.0.s8 %v455
      %v457 = vlaneseq
      %v458 = vshrl.u32 %v457, 7
      %v459 = vsub.s32 %v456, %v458
      %v460 = vrot.slane %v452, %v459
      %v462 = vunpack.c.l.s4 1966171168
      %v463 = vunpack.c.0.s8 %v462
      %v464 = vlaneseq
      %v465 = vshrl.u32 %v464, 7
      %v466 = vsub.s32 %v463, %v465
      %v467 = vrot.slane %v453, %v466
      %v468 = vcombine.high %v460, %v460
      %v469 = vcombine.high %v467, %v467
      %v471 = vunpack.c.l.s4 1966171168
      %v472 = vunpack.c.0.s8 %v471
      %v473 = vlaneseq
      %v474 = vshrl.u32 %v473, 7
      %v475 = vsub.s32 %v472, %v474
      %v476 = vrot.slane %v235, %v475
      %v477 = vcombine.high %v476, %v476
      %v479 = vunpack.c.l.s4 1966171168
      %v480 = vunpack.c.0.s8 %v479
      %v481 = vlaneseq
      %v482 = vshrl.u32 %v481, 7
      %v483 = vsub.s32 %v480, %v482
      %v484 = vrot.slane %v476, %v483
      %v486 = vunpack.c.l.s4 1966171168
      %v487 = vunpack.c.0.s8 %v486
      %v488 = vlaneseq
      %v489 = vshrl.u32 %v488, 7
      %v490 = vsub.s32 %v487, %v489
      %v491 = vrot.slane %v477, %v490
      %v492 = vcombine.high %v484, %v484
      %v494 = vunpack.c.l.s4 1966171168
      %v495 = vunpack.c.0.s8 %v494
      %v496 = vlaneseq
      %v497 = vshrl.u32 %v496, 7
      %v498 = vsub.s32 %v495, %v497
      %v499 = vrot.slane %v236, %v498
      %v500 = vcombine.high %v499, %v499
      %v502 = vunpack.c.l.s4 1966171168
      %v503 = vunpack.c.0.s8 %v502
      %v504 = vlaneseq
      %v505 = vshrl.u32 %v504, 7
      %v506 = vsub.s32 %v503, %v505
      %v507 = vrot.slane %v499, %v506
      %v509 = vunpack.c.l.s4 1966171168
      %v510 = vunpack.c.0.s8 %v509
      %v511 = vlaneseq
      %v512 = vshrl.u32 %v511, 7
      %v513 = vsub.s32 %v510, %v512
      %v514 = vrot.slane %v500, %v513
      %v515 = vcombine.high %v507, %v507
      %v516 = vcombine.high %v514, %v514
      %v518 = vunpack.c.l.s4 1966171168
      %v519 = vunpack.c.0.s8 %v518
      %v520 = vlaneseq
      %v521 = vshrl.u32 %v520, 7
      %v522 = vsub.s32 %v519, %v521
      %v523 = vrot.slane %v237, %v522
      %v524 = vcombine.high %v523, %v523
      %v526 = vunpack.c.l.s4 1966171168
      %v527 = vunpack.c.0.s8 %v526
      %v528 = vlaneseq
      %v529 = vshrl.u32 %v528, 7
      %v530 = vsub.s32 %v527, %v529
      %v531 = vrot.slane %v523, %v530
      %v533 = vunpack.c.l.s4 1966171168
      %v534 = vunpack.c.0.s8 %v533
      %v535 = vlaneseq
      %v536 = vshrl.u32 %v535, 7
      %v537 = vsub.s32 %v534, %v536
      %v538 = vrot.slane %v524, %v537
      %v539 = vcombine.high %v531, %v531
      %v541 = vunpack.c.l.s4 1966171168
      %v542 = vunpack.c.0.s8 %v541
      %v543 = vlaneseq
      %v544 = vshrl.u32 %v543, 7
      %v545 = vsub.s32 %v542, %v544
      %v546 = vrot.slane %v238, %v545
      %v547 = vcombine.high %v546, %v546
      %v549 = vunpack.c.l.s4 1966171168
      %v550 = vunpack.c.0.s8 %v549
      %v551 = vlaneseq
      %v552 = vshrl.u32 %v551, 7
      %v553 = vsub.s32 %v550, %v552
      %v554 = vrot.slane %v546, %v553
      %v556 = vunpack.c.l.s4 1966171168
      %v557 = vunpack.c.0.s8 %v556
      %v558 = vlaneseq
      %v559 = vshrl.u32 %v558, 7
      %v560 = vsub.s32 %v557, %v559
      %v561 = vrot.slane %v547, %v560
      %v562 = vcombine.high %v554, %v554
      %v563 = vcombine.high %v561, %v561
      %v565 = vunpack.c.l.s4 1966171168
      %v566 = vunpack.c.0.s8 %v565
      %v567 = vlaneseq
      %v568 = vshrl.u32 %v567, 7
      %v569 = vsub.s32 %v566, %v568
      %v570 = vrot.slane %v239, %v569
      %v571 = vcombine.high %v570, %v570
      %v573 = vunpack.c.l.s4 1966171168
      %v574 = vunpack.c.0.s8 %v573
      %v575 = vlaneseq
      %v576 = vshrl.u32 %v575, 7
      %v577 = vsub.s32 %v574, %v576
      %v578 = vrot.slane %v570, %v577
      %v580 = vunpack.c.l.s4 1966171168
      %v581 = vunpack.c.0.s8 %v580
      %v582 = vlaneseq
      %v583 = vshrl.u32 %v582, 7
      %v584 = vsub.s32 %v581, %v583
      %v585 = vrot.slane %v571, %v584
      %v586 = vcombine.high %v578, %v578
      %v588 = vunpack.c.l.s4 1966171168
      %v589 = vunpack.c.0.s8 %v588
      %v590 = vlaneseq
      %v591 = vshrl.u32 %v590, 7
      %v592 = vsub.s32 %v589, %v591
      %v593 = vrot.slane %v240, %v592
      %v594 = vcombine.high %v593, %v593
      %v596 = vunpack.c.l.s4 1966171168
      %v597 = vunpack.c.0.s8 %v596
      %v598 = vlaneseq
      %v599 = vshrl.u32 %v598, 7
      %v600 = vsub.s32 %v597, %v599
      %v601 = vrot.slane %v593, %v600
      %v603 = vunpack.c.l.s4 1966171168
      %v604 = vunpack.c.0.s8 %v603
      %v605 = vlaneseq
      %v606 = vshrl.u32 %v605, 7
      %v607 = vsub.s32 %v604, %v606
      %v608 = vrot.slane %v594, %v607
      %v609 = vcombine.high %v601, %v601
      %v610 = vcombine.high %v608, %v608
      %v612 = vunpack.c.l.s4 1966171168
      %v613 = vunpack.c.0.s8 %v612
      %v614 = vlaneseq
      %v615 = vshrl.u32 %v614, 7
      %v616 = vsub.s32 %v613, %v615
      %v617 = vrot.slane %v241, %v616
      %v618 = vcombine.high %v617, %v617
      %v620 = vunpack.c.l.s4 1966171168
      %v621 = vunpack.c.0.s8 %v620
      %v622 = vlaneseq
      %v623 = vshrl.u32 %v622, 7
      %v624 = vsub.s32 %v621, %v623
      %v625 = vrot.slane %v617, %v624
      %v627 = vunpack.c.l.s4 1966171168
      %v628 = vunpack.c.0.s8 %v627
      %v629 = vlaneseq
      %v630 = vshrl.u32 %v629, 7
      %v631 = vsub.s32 %v628, %v630
      %v632 = vrot.slane %v618, %v631
      %v633 = vcombine.high %v625, %v625
      %v634 = vcombine.low %v272, %v279
      %v635 = vcombine.low %v280, %v281
      %v636 = vcombine.low %v296, %v303
      %v637 = vcombine.low %v304, %v319
      %v639 = vunpack.c.l.s4 1966171168
      %v640 = vunpack.c.0.s8 %v639
      %v641 = vlaneseq
      %v642 = vshrl.u32 %v641, 7
      %v643 = vsub.s32 %v640, %v642
      %v644 = vrot.slane %v634, %v643
      %v646 = vunpack.c.l.s4 1966171168
      %v647 = vunpack.c.0.s8 %v646
      %v648 = vlaneseq
      %v649 = vshrl.u32 %v648, 7
      %v650 = vsub.s32 %v647, %v649
      %v651 = vrot.slane %v635, %v650
      %v653 = vunpack.c.l.s4 1966171168
      %v654 = vunpack.c.0.s8 %v653
      %v655 = vlaneseq
      %v656 = vshrl.u32 %v655, 7
      %v657 = vsub.s32 %v654, %v656
      %v658 = vrot.slane %v636, %v657
      %v660 = vunpack.c.l.s4 1966171168
      %v661 = vunpack.c.0.s8 %v660
      %v662 = vlaneseq
      %v663 = vshrl.u32 %v662, 7
      %v664 = vsub.s32 %v661, %v663
      %v665 = vrot.slane %v637, %v664
      %v666 = vcombine.low %v644, %v651
      %v667 = vcombine.low %v658, %v665
      %v669 = vunpack.c.l.s4 1966171168
      %v670 = vunpack.c.0.s8 %v669
      %v671 = vlaneseq
      %v672 = vshrl.u32 %v671, 7
      %v673 = vsub.s32 %v670, %v672
      %v674 = vrot.slane %v666, %v673
      %v676 = vunpack.c.l.s4 1966171168
      %v677 = vunpack.c.0.s8 %v676
      %v678 = vlaneseq
      %v679 = vshrl.u32 %v678, 7
      %v680 = vsub.s32 %v677, %v679
      %v681 = vrot.slane %v667, %v680
      %v682 = vcombine.low %v674, %v681
      %v683 = vcombine.low %v326, %v327
      %v684 = vcombine.low %v328, %v343
      %v685 = vcombine.low %v350, %v351
      %v686 = vcombine.low %v366, %v373
      %v688 = vunpack.c.l.s4 1966171168
      %v689 = vunpack.c.0.s8 %v688
      %v690 = vlaneseq
      %v691 = vshrl.u32 %v690, 7
      %v692 = vsub.s32 %v689, %v691
      %v693 = vrot.slane %v683, %v692
      %v695 = vunpack.c.l.s4 1966171168
      %v696 = vunpack.c.0.s8 %v695
      %v697 = vlaneseq
      %v698 = vshrl.u32 %v697, 7
      %v699 = vsub.s32 %v696, %v698
      %v700 = vrot.slane %v684, %v699
      %v702 = vunpack.c.l.s4 1966171168
      %v703 = vunpack.c.0.s8 %v702
      %v704 = vlaneseq
      %v705 = vshrl.u32 %v704, 7
      %v706 = vsub.s32 %v703, %v705
      %v707 = vrot.slane %v685, %v706
      %v709 = vunpack.c.l.s4 1966171168
      %v710 = vunpack.c.0.s8 %v709
      %v711 = vlaneseq
      %v712 = vshrl.u32 %v711, 7
      %v713 = vsub.s32 %v710, %v712
      %v714 = vrot.slane %v686, %v713
      %v715 = vcombine.low %v693, %v700
      %v716 = vcombine.low %v707, %v714
      %v718 = vunpack.c.l.s4 1966171168
      %v719 = vunpack.c.0.s8 %v718
      %v720 = vlaneseq
      %v721 = vshrl.u32 %v720, 7
      %v722 = vsub.s32 %v719, %v721
      %v723 = vrot.slane %v715, %v722
      %v725 = vunpack.c.l.s4 1966171168
      %v726 = vunpack.c.0.s8 %v725
      %v727 = vlaneseq
      %v728 = vshrl.u32 %v727, 7
      %v729 = vsub.s32 %v726, %v728
      %v730 = vrot.slane %v716, %v729
      %v731 = vcombine.low %v723, %v730
      %v732 = vcombine.low %v374, %v375
      %v733 = vcombine.low %v390, %v397
      %v734 = vcombine.low %v398, %v413
      %v735 = vcombine.low %v420, %v421
      %v737 = vunpack.c.l.s4 1966171168
      %v738 = vunpack.c.0.s8 %v737
      %v739 = vlaneseq
      %v740 = vshrl.u32 %v739, 7
      %v741 = vsub.s32 %v738, %v740
      %v742 = vrot.slane %v732, %v741
      %v744 = vunpack.c.l.s4 1966171168
      %v745 = vunpack.c.0.s8 %v744
      %v746 = vlaneseq
      %v747 = vshrl.u32 %v746, 7
      %v748 = vsub.s32 %v745, %v747
      %v749 = vrot.slane %v733, %v748
      %v751 = vunpack.c.l.s4 1966171168
      %v752 = vunpack.c.0.s8 %v751
      %v753 = vlaneseq
      %v754 = vshrl.u32 %v753, 7
      %v755 = vsub.s32 %v752, %v754
      %v756 = vrot.slane %v734, %v755
      %v758 = vunpack.c.l.s4 1966171168
      %v759 = vunpack.c.0.s8 %v758
      %v760 = vlaneseq
      %v761 = vshrl.u32 %v760, 7
      %v762 = vsub.s32 %v759, %v761
      %v763 = vrot.slane %v735, %v762
      %v764 = vcombine.low %v742, %v749
      %v765 = vcombine.low %v756, %v763
      %v767 = vunpack.c.l.s4 1966171168
      %v768 = vunpack.c.0.s8 %v767
      %v769 = vlaneseq
      %v770 = vshrl.u32 %v769, 7
      %v771 = vsub.s32 %v768, %v770
      %v772 = vrot.slane %v764, %v771
      %v774 = vunpack.c.l.s4 1966171168
      %v775 = vunpack.c.0.s8 %v774
      %v776 = vlaneseq
      %v777 = vshrl.u32 %v776, 7
      %v778 = vsub.s32 %v775, %v777
      %v779 = vrot.slane %v765, %v778
      %v780 = vcombine.low %v772, %v779
      %v781 = vcombine.low %v422, %v437
      %v782 = vcombine.low %v444, %v445
      %v783 = vcombine.low %v460, %v467
      %v784 = vcombine.low %v468, %v469
      %v786 = vunpack.c.l.s4 1966171168
      %v787 = vunpack.c.0.s8 %v786
      %v788 = vlaneseq
      %v789 = vshrl.u32 %v788, 7
      %v790 = vsub.s32 %v787, %v789
      %v791 = vrot.slane %v781, %v790
      %v793 = vunpack.c.l.s4 1966171168
      %v794 = vunpack.c.0.s8 %v793
      %v795 = vlaneseq
      %v796 = vshrl.u32 %v795, 7
      %v797 = vsub.s32 %v794, %v796
      %v798 = vrot.slane %v782, %v797
      %v800 = vunpack.c.l.s4 1966171168
      %v801 = vunpack.c.0.s8 %v800
      %v802 = vlaneseq
      %v803 = vshrl.u32 %v802, 7
      %v804 = vsub.s32 %v801, %v803
      %v805 = vrot.slane %v783, %v804
      %v807 = vunpack.c.l.s4 1966171168
      %v808 = vunpack.c.0.s8 %v807
      %v809 = vlaneseq
      %v810 = vshrl.u32 %v809, 7
      %v811 = vsub.s32 %v808, %v810
      %v812 = vrot.slane %v784, %v811
      %v813 = vcombine.low %v791, %v798
      %v814 = vcombine.low %v805, %v812
      %v816 = vunpack.c.l.s4 1966171168
      %v817 = vunpack.c.0.s8 %v816
      %v818 = vlaneseq
      %v819 = vshrl.u32 %v818, 7
      %v820 = vsub.s32 %v817, %v819
      %v821 = vrot.slane %v813, %v820
      %v823 = vunpack.c.l.s4 1966171168
      %v824 = vunpack.c.0.s8 %v823
      %v825 = vlaneseq
      %v826 = vshrl.u32 %v825, 7
      %v827 = vsub.s32 %v824, %v826
      %v828 = vrot.slane %v814, %v827
      %v829 = vcombine.low %v821, %v828
      %v830 = vcombine.low %v484, %v491
      %v831 = vcombine.low %v492, %v507
      %v832 = vcombine.low %v514, %v515
      %v833 = vcombine.low %v516, %v531
      %v835 = vunpack.c.l.s4 1966171168
      %v836 = vunpack.c.0.s8 %v835
      %v837 = vlaneseq
      %v838 = vshrl.u32 %v837, 7
      %v839 = vsub.s32 %v836, %v838
      %v840 = vrot.slane %v830, %v839
      %v842 = vunpack.c.l.s4 1966171168
      %v843 = vunpack.c.0.s8 %v842
      %v844 = vlaneseq
      %v845 = vshrl.u32 %v844, 7
      %v846 = vsub.s32 %v843, %v845
      %v847 = vrot.slane %v831, %v846
      %v849 = vunpack.c.l.s4 1966171168
      %v850 = vunpack.c.0.s8 %v849
      %v851 = vlaneseq
      %v852 = vshrl.u32 %v851, 7
      %v853 = vsub.s32 %v850, %v852
      %v854 = vrot.slane %v832, %v853
      %v856 = vunpack.c.l.s4 1966171168
      %v857 = vunpack.c.0.s8 %v856
      %v858 = vlaneseq
      %v859 = vshrl.u32 %v858, 7
      %v860 = vsub.s32 %v857, %v859
      %v861 = vrot.slane %v833, %v860
      %v862 = vcombine.low %v840, %v847
      %v863 = vcombine.low %v854, %v861
      %v865 = vunpack.c.l.s4 1966171168
      %v866 = vunpack.c.0.s8 %v865
      %v867 = vlaneseq
      %v868 = vshrl.u32 %v867, 7
      %v869 = vsub.s32 %v866, %v868
      %v870 = vrot.slane %v862, %v869
      %v872 = vunpack.c.l.s4 1966171168
      %v873 = vunpack.c.0.s8 %v872
      %v874 = vlaneseq
      %v875 = vshrl.u32 %v874, 7
      %v876 = vsub.s32 %v873, %v875
      %v877 = vrot.slane %v863, %v876
      %v878 = vcombine.low %v870, %v877
      %v879 = vcombine.low %v538, %v539
      %v880 = vcombine.low %v554, %v561
      %v881 = vcombine.low %v562, %v563
      %v882 = vcombine.low %v578, %v585
      %v884 = vunpack.c.l.s4 1966171168
      %v885 = vunpack.c.0.s8 %v884
      %v886 = vlaneseq
      %v887 = vshrl.u32 %v886, 7
      %v888 = vsub.s32 %v885, %v887
      %v889 = vrot.slane %v879, %v888
      %v891 = vunpack.c.l.s4 1966171168
      %v892 = vunpack.c.0.s8 %v891
      %v893 = vlaneseq
      %v894 = vshrl.u32 %v893, 7
      %v895 = vsub.s32 %v892, %v894
      %v896 = vrot.slane %v880, %v895
      %v898 = vunpack.c.l.s4 1966171168
      %v899 = vunpack.c.0.s8 %v898
      %v900 = vlaneseq
      %v901 = vshrl.u32 %v900, 7
      %v902 = vsub.s32 %v899, %v901
      %v903 = vrot.slane %v881, %v902
      %v905 = vunpack.c.l.s4 1966171168
      %v906 = vunpack.c.0.s8 %v905
      %v907 = vlaneseq
      %v908 = vshrl.u32 %v907, 7
      %v909 = vsub.s32 %v906, %v908
      %v910 = vrot.slane %v882, %v909
      %v911 = vcombine.low %v889, %v896
      %v912 = vcombine.low %v903, %v910
      %v914 = vunpack.c.l.s4 1966171168
      %v915 = vunpack.c.0.s8 %v914
      %v916 = vlaneseq
      %v917 = vshrl.u32 %v916, 7
      %v918 = vsub.s32 %v915, %v917
      %v919 = vrot.slane %v911, %v918
      %v921 = vunpack.c.l.s4 1966171168
      %v922 = vunpack.c.0.s8 %v921
      %v923 = vlaneseq
      %v924 = vshrl.u32 %v923, 7
      %v925 = vsub.s32 %v922, %v924
      %v926 = vrot.slane %v912, %v925
      %v927 = vcombine.low %v919, %v926
      %v928 = vcombine.low %v586, %v601
      %v929 = vcombine.low %v608, %v609
      %v930 = vcombine.low %v610, %v625
      %v931 = vcombine.low %v632, %v633
      %v933 = vunpack.c.l.s4 1966171168
      %v934 = vunpack.c.0.s8 %v933
      %v935 = vlaneseq
      %v936 = vshrl.u32 %v935, 7
      %v937 = vsub.s32 %v934, %v936
      %v938 = vrot.slane %v928, %v937
      %v940 = vunpack.c.l.s4 1966171168
      %v941 = vunpack.c.0.s8 %v940
      %v942 = vlaneseq
      %v943 = vshrl.u32 %v942, 7
      %v944 = vsub.s32 %v941, %v943
      %v945 = vrot.slane %v929, %v944
      %v947 = vunpack.c.l.s4 1966171168
      %v948 = vunpack.c.0.s8 %v947
      %v949 = vlaneseq
      %v950 = vshrl.u32 %v949, 7
      %v951 = vsub.s32 %v948, %v950
      %v952 = vrot.slane %v930, %v951
      %v954 = vunpack.c.l.s4 1966171168
      %v955 = vunpack.c.0.s8 %v954
      %v956 = vlaneseq
      %v957 = vshrl.u32 %v956, 7
      %v958 = vsub.s32 %v955, %v957
      %v959 = vrot.slane %v931, %v958
      %v960 = vcombine.low %v938, %v945
      %v961 = vcombine.low %v952, %v959
      %v963 = vunpack.c.l.s4 1966171168
      %v964 = vunpack.c.0.s8 %v963
      %v965 = vlaneseq
      %v966 = vshrl.u32 %v965, 7
      %v967 = vsub.s32 %v964, %v966
      %v968 = vrot.slane %v960, %v967
      %v970 = vunpack.c.l.s4 1966171168
      %v971 = vunpack.c.0.s8 %v970
      %v972 = vlaneseq
      %v973 = vshrl.u32 %v972, 7
      %v974 = vsub.s32 %v971, %v973
      %v975 = vrot.slane %v961, %v974
      %v976 = vcombine.low %v968, %v975
      %vm984 = vcmask 31744
      %985 = vst.msk [vmem:[#allocation2] sm:$0xff] %vm984, %v682
      %986 = vst.msk [vmem:[#allocation2 + $0x8] sm:$0xff] %vm984, %v731
      %987 = vst.msk [vmem:[#allocation2 + $0x10] sm:$0xff] %vm984, %v780
      %988 = vst.msk [vmem:[#allocation2 + $0x18] sm:$0xff] %vm984, %v829
      %989 = vst.msk [vmem:[#allocation2 + $0x20] sm:$0xff] %vm984, %v878
      %990 = vst.msk [vmem:[#allocation2 + $0x28] sm:$0xff] %vm984, %v927
      %991 = vst.msk [vmem:[#allocation2 + $0x30] sm:$0xff] %vm984, %v976
      %v992 = vcombine.high %v303, %v303
      %v993 = vcombine.high %v350, %v350
      %v994 = vcombine.high %v397, %v397
      %v995 = vcombine.high %v444, %v444
      %v996 = vcombine.high %v491, %v491
      %v997 = vcombine.high %v538, %v538
      %v998 = vcombine.high %v585, %v585
      %v999 = vcombine.high %v632, %v632
      %vm1000 = vsmask.f32 256
      %vm1001 = vsmask.f32 1284
      %vm1002 = vmor %vm1000, %vm1001
      %vm1003 = vsmask.f32 2312
      %vm1004 = vmor %vm1002, %vm1003
      %vm1005 = vsmask.f32 3340
      %vm1006 = vmor %vm1004, %vm1005
      %vm1007 = vsmask.f32 4368
      %vm1008 = vmor %vm1006, %vm1007
      %vm1009 = vsmask.f32 5396
      %vm1010 = vmor %vm1008, %vm1009
      %vm1011 = vsmask.f32 6424
      %vm1012 = vmor %vm1010, %vm1011
      %vm1013 = vsmask.f32 7452
      %vm1014 = vmor %vm1012, %vm1013
      %v1016 = vshrl.u32 %v272, 16
      %v1018 = vrot.slane %v1016, 7
      %v1019 = vrot.slane %v1018, 1
      %v1021 = vshll.u32 %v279, 16
      %v1023 = vsel %vm1014, %v1019, %v1021
      %v1024 = vshrl.u32 %v279, 16
      %v1026 = vrot.slane %v1024, 7
      %v1027 = vrot.slane %v1026, 1
      %v1029 = vshll.u32 %v280, 16
      %v1031 = vsel %vm1014, %v1027, %v1029
      %v1032 = vshrl.u32 %v280, 16
      %v1034 = vrot.slane %v1032, 7
      %v1035 = vrot.slane %v1034, 1
      %v1037 = vshll.u32 %v281, 16
      %v1039 = vsel %vm1014, %v1035, %v1037
      %v1040 = vshrl.u32 %v281, 16
      %v1042 = vrot.slane %v1040, 7
      %v1043 = vrot.slane %v1042, 1
      %v1045 = vshll.u32 %v296, 16
      %v1047 = vsel %vm1014, %v1043, %v1045
      %v1048 = vshrl.u32 %v296, 16
      %v1050 = vrot.slane %v1048, 7
      %v1051 = vrot.slane %v1050, 1
      %v1053 = vshll.u32 %v303, 16
      %v1055 = vsel %vm1014, %v1051, %v1053
      %v1056 = vshrl.u32 %v303, 16
      %v1058 = vrot.slane %v1056, 7
      %v1059 = vrot.slane %v1058, 1
      %v1061 = vshll.u32 %v304, 16
      %v1063 = vsel %vm1014, %v1059, %v1061
      %v1064 = vshrl.u32 %v304, 16
      %v1066 = vrot.slane %v1064, 7
      %v1067 = vrot.slane %v1066, 1
      %v1069 = vshll.u32 %v992, 16
      %v1071 = vsel %vm1014, %v1067, %v1069
      %v1073 = vshrl.u32 %v319, 16
      %v1075 = vrot.slane %v1073, 7
      %v1076 = vrot.slane %v1075, 1
      %v1078 = vshll.u32 %v326, 16
      %v1080 = vsel %vm1014, %v1076, %v1078
      %v1081 = vshrl.u32 %v326, 16
      %v1083 = vrot.slane %v1081, 7
      %v1084 = vrot.slane %v1083, 1
      %v1086 = vshll.u32 %v327, 16
      %v1088 = vsel %vm1014, %v1084, %v1086
      %v1089 = vshrl.u32 %v327, 16
      %v1091 = vrot.slane %v1089, 7
      %v1092 = vrot.slane %v1091, 1
      %v1094 = vshll.u32 %v328, 16
      %v1096 = vsel %vm1014, %v1092, %v1094
      %v1097 = vshrl.u32 %v328, 16
      %v1099 = vrot.slane %v1097, 7
      %v1100 = vrot.slane %v1099, 1
      %v1102 = vshll.u32 %v343, 16
      %v1104 = vsel %vm1014, %v1100, %v1102
      %v1105 = vshrl.u32 %v343, 16
      %v1107 = vrot.slane %v1105, 7
      %v1108 = vrot.slane %v1107, 1
      %v1110 = vshll.u32 %v350, 16
      %v1112 = vsel %vm1014, %v1108, %v1110
      %v1113 = vshrl.u32 %v350, 16
      %v1115 = vrot.slane %v1113, 7
      %v1116 = vrot.slane %v1115, 1
      %v1118 = vshll.u32 %v351, 16
      %v1120 = vsel %vm1014, %v1116, %v1118
      %v1121 = vshrl.u32 %v351, 16
      %v1123 = vrot.slane %v1121, 7
      %v1124 = vrot.slane %v1123, 1
      %v1126 = vshll.u32 %v993, 16
      %v1128 = vsel %vm1014, %v1124, %v1126
      %v1130 = vshrl.u32 %v366, 16
      %v1132 = vrot.slane %v1130, 7
      %v1133 = vrot.slane %v1132, 1
      %v1135 = vshll.u32 %v373, 16
      %v1137 = vsel %vm1014, %v1133, %v1135
      %v1138 = vshrl.u32 %v373, 16
      %v1140 = vrot.slane %v1138, 7
      %v1141 = vrot.slane %v1140, 1
      %v1143 = vshll.u32 %v374, 16
      %v1145 = vsel %vm1014, %v1141, %v1143
      %v1146 = vshrl.u32 %v374, 16
      %v1148 = vrot.slane %v1146, 7
      %v1149 = vrot.slane %v1148, 1
      %v1151 = vshll.u32 %v375, 16
      %v1153 = vsel %vm1014, %v1149, %v1151
      %v1154 = vshrl.u32 %v375, 16
      %v1156 = vrot.slane %v1154, 7
      %v1157 = vrot.slane %v1156, 1
      %v1159 = vshll.u32 %v390, 16
      %v1161 = vsel %vm1014, %v1157, %v1159
      %v1162 = vshrl.u32 %v390, 16
      %v1164 = vrot.slane %v1162, 7
      %v1165 = vrot.slane %v1164, 1
      %v1167 = vshll.u32 %v397, 16
      %v1169 = vsel %vm1014, %v1165, %v1167
      %v1170 = vshrl.u32 %v397, 16
      %v1172 = vrot.slane %v1170, 7
      %v1173 = vrot.slane %v1172, 1
      %v1175 = vshll.u32 %v398, 16
      %v1177 = vsel %vm1014, %v1173, %v1175
      %v1178 = vshrl.u32 %v398, 16
      %v1180 = vrot.slane %v1178, 7
      %v1181 = vrot.slane %v1180, 1
      %v1183 = vshll.u32 %v994, 16
      %v1185 = vsel %vm1014, %v1181, %v1183
      %v1187 = vshrl.u32 %v413, 16
      %v1189 = vrot.slane %v1187, 7
      %v1190 = vrot.slane %v1189, 1
      %v1192 = vshll.u32 %v420, 16
      %v1194 = vsel %vm1014, %v1190, %v1192
      %v1195 = vshrl.u32 %v420, 16
      %v1197 = vrot.slane %v1195, 7
      %v1198 = vrot.slane %v1197, 1
      %v1200 = vshll.u32 %v421, 16
      %v1202 = vsel %vm1014, %v1198, %v1200
      %v1203 = vshrl.u32 %v421, 16
      %v1205 = vrot.slane %v1203, 7
      %v1206 = vrot.slane %v1205, 1
      %v1208 = vshll.u32 %v422, 16
      %v1210 = vsel %vm1014, %v1206, %v1208
      %v1211 = vshrl.u32 %v422, 16
      %v1213 = vrot.slane %v1211, 7
      %v1214 = vrot.slane %v1213, 1
      %v1216 = vshll.u32 %v437, 16
      %v1218 = vsel %vm1014, %v1214, %v1216
      %v1219 = vshrl.u32 %v437, 16
      %v1221 = vrot.slane %v1219, 7
      %v1222 = vrot.slane %v1221, 1
      %v1224 = vshll.u32 %v444, 16
      %v1226 = vsel %vm1014, %v1222, %v1224
      %v1227 = vshrl.u32 %v444, 16
      %v1229 = vrot.slane %v1227, 7
      %v1230 = vrot.slane %v1229, 1
      %v1232 = vshll.u32 %v445, 16
      %v1234 = vsel %vm1014, %v1230, %v1232
      %v1235 = vshrl.u32 %v445, 16
      %v1237 = vrot.slane %v1235, 7
      %v1238 = vrot.slane %v1237, 1
      %v1240 = vshll.u32 %v995, 16
      %v1242 = vsel %vm1014, %v1238, %v1240
      %v1244 = vshrl.u32 %v460, 16
      %v1246 = vrot.slane %v1244, 7
      %v1247 = vrot.slane %v1246, 1
      %v1249 = vshll.u32 %v467, 16
      %v1251 = vsel %vm1014, %v1247, %v1249
      %v1252 = vshrl.u32 %v467, 16
      %v1254 = vrot.slane %v1252, 7
      %v1255 = vrot.slane %v1254, 1
      %v1257 = vshll.u32 %v468, 16
      %v1259 = vsel %vm1014, %v1255, %v1257
      %v1260 = vshrl.u32 %v468, 16
      %v1262 = vrot.slane %v1260, 7
      %v1263 = vrot.slane %v1262, 1
      %v1265 = vshll.u32 %v469, 16
      %v1267 = vsel %vm1014, %v1263, %v1265
      %v1268 = vshrl.u32 %v469, 16
      %v1270 = vrot.slane %v1268, 7
      %v1271 = vrot.slane %v1270, 1
      %v1273 = vshll.u32 %v484, 16
      %v1275 = vsel %vm1014, %v1271, %v1273
      %v1276 = vshrl.u32 %v484, 16
      %v1278 = vrot.slane %v1276, 7
      %v1279 = vrot.slane %v1278, 1
      %v1281 = vshll.u32 %v491, 16
      %v1283 = vsel %vm1014, %v1279, %v1281
      %v1284 = vshrl.u32 %v491, 16
      %v1286 = vrot.slane %v1284, 7
      %v1287 = vrot.slane %v1286, 1
      %v1289 = vshll.u32 %v492, 16
      %v1291 = vsel %vm1014, %v1287, %v1289
      %v1292 = vshrl.u32 %v492, 16
      %v1294 = vrot.slane %v1292, 7
      %v1295 = vrot.slane %v1294, 1
      %v1297 = vshll.u32 %v996, 16
      %v1299 = vsel %vm1014, %v1295, %v1297
      %v1301 = vshrl.u32 %v507, 16
      %v1303 = vrot.slane %v1301, 7
      %v1304 = vrot.slane %v1303, 1
      %v1306 = vshll.u32 %v514, 16
      %v1308 = vsel %vm1014, %v1304, %v1306
      %v1309 = vshrl.u32 %v514, 16
      %v1311 = vrot.slane %v1309, 7
      %v1312 = vrot.slane %v1311, 1
      %v1314 = vshll.u32 %v515, 16
      %v1316 = vsel %vm1014, %v1312, %v1314
      %v1317 = vshrl.u32 %v515, 16
      %v1319 = vrot.slane %v1317, 7
      %v1320 = vrot.slane %v1319, 1
      %v1322 = vshll.u32 %v516, 16
      %v1324 = vsel %vm1014, %v1320, %v1322
      %v1325 = vshrl.u32 %v516, 16
      %v1327 = vrot.slane %v1325, 7
      %v1328 = vrot.slane %v1327, 1
      %v1330 = vshll.u32 %v531, 16
      %v1332 = vsel %vm1014, %v1328, %v1330
      %v1333 = vshrl.u32 %v531, 16
      %v1335 = vrot.slane %v1333, 7
      %v1336 = vrot.slane %v1335, 1
      %v1338 = vshll.u32 %v538, 16
      %v1340 = vsel %vm1014, %v1336, %v1338
      %v1341 = vshrl.u32 %v538, 16
      %v1343 = vrot.slane %v1341, 7
      %v1344 = vrot.slane %v1343, 1
      %v1346 = vshll.u32 %v539, 16
      %v1348 = vsel %vm1014, %v1344, %v1346
      %v1349 = vshrl.u32 %v539, 16
      %v1351 = vrot.slane %v1349, 7
      %v1352 = vrot.slane %v1351, 1
      %v1354 = vshll.u32 %v997, 16
      %v1356 = vsel %vm1014, %v1352, %v1354
      %v1358 = vshrl.u32 %v554, 16
      %v1360 = vrot.slane %v1358, 7
      %v1361 = vrot.slane %v1360, 1
      %v1363 = vshll.u32 %v561, 16
      %v1365 = vsel %vm1014, %v1361, %v1363
      %v1366 = vshrl.u32 %v561, 16
      %v1368 = vrot.slane %v1366, 7
      %v1369 = vrot.slane %v1368, 1
      %v1371 = vshll.u32 %v562, 16
      %v1373 = vsel %vm1014, %v1369, %v1371
      %v1374 = vshrl.u32 %v562, 16
      %v1376 = vrot.slane %v1374, 7
      %v1377 = vrot.slane %v1376, 1
      %v1379 = vshll.u32 %v563, 16
      %v1381 = vsel %vm1014, %v1377, %v1379
      %v1382 = vshrl.u32 %v563, 16
      %v1384 = vrot.slane %v1382, 7
      %v1385 = vrot.slane %v1384, 1
      %v1387 = vshll.u32 %v578, 16
      %v1389 = vsel %vm1014, %v1385, %v1387
      %v1390 = vshrl.u32 %v578, 16
      %v1392 = vrot.slane %v1390, 7
      %v1393 = vrot.slane %v1392, 1
      %v1395 = vshll.u32 %v585, 16
      %v1397 = vsel %vm1014, %v1393, %v1395
      %v1398 = vshrl.u32 %v585, 16
      %v1400 = vrot.slane %v1398, 7
      %v1401 = vrot.slane %v1400, 1
      %v1403 = vshll.u32 %v586, 16
      %v1405 = vsel %vm1014, %v1401, %v1403
      %v1406 = vshrl.u32 %v586, 16
      %v1408 = vrot.slane %v1406, 7
      %v1409 = vrot.slane %v1408, 1
      %v1411 = vshll.u32 %v998, 16
      %v1413 = vsel %vm1014, %v1409, %v1411
      %v1415 = vshrl.u32 %v601, 16
      %v1417 = vrot.slane %v1415, 7
      %v1418 = vrot.slane %v1417, 1
      %v1420 = vshll.u32 %v608, 16
      %v1422 = vsel %vm1014, %v1418, %v1420
      %v1423 = vshrl.u32 %v608, 16
      %v1425 = vrot.slane %v1423, 7
      %v1426 = vrot.slane %v1425, 1
      %v1428 = vshll.u32 %v609, 16
      %v1430 = vsel %vm1014, %v1426, %v1428
      %v1431 = vshrl.u32 %v609, 16
      %v1433 = vrot.slane %v1431, 7
      %v1434 = vrot.slane %v1433, 1
      %v1436 = vshll.u32 %v610, 16
      %v1438 = vsel %vm1014, %v1434, %v1436
      %v1439 = vshrl.u32 %v610, 16
      %v1441 = vrot.slane %v1439, 7
      %v1442 = vrot.slane %v1441, 1
      %v1444 = vshll.u32 %v625, 16
      %v1446 = vsel %vm1014, %v1442, %v1444
      %v1447 = vshrl.u32 %v625, 16
      %v1449 = vrot.slane %v1447, 7
      %v1450 = vrot.slane %v1449, 1
      %v1452 = vshll.u32 %v632, 16
      %v1454 = vsel %vm1014, %v1450, %v1452
      %v1455 = vshrl.u32 %v632, 16
      %v1457 = vrot.slane %v1455, 7
      %v1458 = vrot.slane %v1457, 1
      %v1460 = vshll.u32 %v633, 16
      %v1462 = vsel %vm1014, %v1458, %v1460
      %v1463 = vshrl.u32 %v633, 16
      %v1465 = vrot.slane %v1463, 7
      %v1466 = vrot.slane %v1465, 1
      %v1468 = vshll.u32 %v999, 16
      %v1470 = vsel %vm1014, %v1466, %v1468
      %v1471 = vcombine.low %v1023, %v1031
      %v1472 = vcombine.low %v1039, %v1047
      %v1473 = vcombine.low %v1055, %v1063
      %v1474 = vcombine.low %v1071, %v1080
      %v1476 = vunpack.c.l.s4 1966171168
      %v1477 = vunpack.c.0.s8 %v1476
      %v1478 = vlaneseq
      %v1479 = vshrl.u32 %v1478, 7
      %v1480 = vsub.s32 %v1477, %v1479
      %v1481 = vrot.slane %v1471, %v1480
      %v1483 = vunpack.c.l.s4 1966171168
      %v1484 = vunpack.c.0.s8 %v1483
      %v1485 = vlaneseq
      %v1486 = vshrl.u32 %v1485, 7
      %v1487 = vsub.s32 %v1484, %v1486
      %v1488 = vrot.slane %v1472, %v1487
      %v1490 = vunpack.c.l.s4 1966171168
      %v1491 = vunpack.c.0.s8 %v1490
      %v1492 = vlaneseq
      %v1493 = vshrl.u32 %v1492, 7
      %v1494 = vsub.s32 %v1491, %v1493
      %v1495 = vrot.slane %v1473, %v1494
      %v1497 = vunpack.c.l.s4 1966171168
      %v1498 = vunpack.c.0.s8 %v1497
      %v1499 = vlaneseq
      %v1500 = vshrl.u32 %v1499, 7
      %v1501 = vsub.s32 %v1498, %v1500
      %v1502 = vrot.slane %v1474, %v1501
      %v1503 = vcombine.low %v1481, %v1488
      %v1504 = vcombine.low %v1495, %v1502
      %v1506 = vunpack.c.l.s4 1966171168
      %v1507 = vunpack.c.0.s8 %v1506
      %v1508 = vlaneseq
      %v1509 = vshrl.u32 %v1508, 7
      %v1510 = vsub.s32 %v1507, %v1509
      %v1511 = vrot.slane %v1503, %v1510
      %v1513 = vunpack.c.l.s4 1966171168
      %v1514 = vunpack.c.0.s8 %v1513
      %v1515 = vlaneseq
      %v1516 = vshrl.u32 %v1515, 7
      %v1517 = vsub.s32 %v1514, %v1516
      %v1518 = vrot.slane %v1504, %v1517
      %v1519 = vcombine.low %v1511, %v1518
      %v1520 = vcombine.low %v1088, %v1096
      %v1521 = vcombine.low %v1104, %v1112
      %v1522 = vcombine.low %v1120, %v1128
      %v1523 = vcombine.low %v1137, %v1145
      %v1525 = vunpack.c.l.s4 1966171168
      %v1526 = vunpack.c.0.s8 %v1525
      %v1527 = vlaneseq
      %v1528 = vshrl.u32 %v1527, 7
      %v1529 = vsub.s32 %v1526, %v1528
      %v1530 = vrot.slane %v1520, %v1529
      %v1532 = vunpack.c.l.s4 1966171168
      %v1533 = vunpack.c.0.s8 %v1532
      %v1534 = vlaneseq
      %v1535 = vshrl.u32 %v1534, 7
      %v1536 = vsub.s32 %v1533, %v1535
      %v1537 = vrot.slane %v1521, %v1536
      %v1539 = vunpack.c.l.s4 1966171168
      %v1540 = vunpack.c.0.s8 %v1539
      %v1541 = vlaneseq
      %v1542 = vshrl.u32 %v1541, 7
      %v1543 = vsub.s32 %v1540, %v1542
      %v1544 = vrot.slane %v1522, %v1543
      %v1546 = vunpack.c.l.s4 1966171168
      %v1547 = vunpack.c.0.s8 %v1546
      %v1548 = vlaneseq
      %v1549 = vshrl.u32 %v1548, 7
      %v1550 = vsub.s32 %v1547, %v1549
      %v1551 = vrot.slane %v1523, %v1550
      %v1552 = vcombine.low %v1530, %v1537
      %v1553 = vcombine.low %v1544, %v1551
      %v1555 = vunpack.c.l.s4 1966171168
      %v1556 = vunpack.c.0.s8 %v1555
      %v1557 = vlaneseq
      %v1558 = vshrl.u32 %v1557, 7
      %v1559 = vsub.s32 %v1556, %v1558
      %v1560 = vrot.slane %v1552, %v1559
      %v1562 = vunpack.c.l.s4 1966171168
      %v1563 = vunpack.c.0.s8 %v1562
      %v1564 = vlaneseq
      %v1565 = vshrl.u32 %v1564, 7
      %v1566 = vsub.s32 %v1563, %v1565
      %v1567 = vrot.slane %v1553, %v1566
      %v1568 = vcombine.low %v1560, %v1567
      %v1569 = vcombine.low %v1153, %v1161
      %v1570 = vcombine.low %v1169, %v1177
      %v1571 = vcombine.low %v1185, %v1194
      %v1572 = vcombine.low %v1202, %v1210
      %v1574 = vunpack.c.l.s4 1966171168
      %v1575 = vunpack.c.0.s8 %v1574
      %v1576 = vlaneseq
      %v1577 = vshrl.u32 %v1576, 7
      %v1578 = vsub.s32 %v1575, %v1577
      %v1579 = vrot.slane %v1569, %v1578
      %v1581 = vunpack.c.l.s4 1966171168
      %v1582 = vunpack.c.0.s8 %v1581
      %v1583 = vlaneseq
      %v1584 = vshrl.u32 %v1583, 7
      %v1585 = vsub.s32 %v1582, %v1584
      %v1586 = vrot.slane %v1570, %v1585
      %v1588 = vunpack.c.l.s4 1966171168
      %v1589 = vunpack.c.0.s8 %v1588
      %v1590 = vlaneseq
      %v1591 = vshrl.u32 %v1590, 7
      %v1592 = vsub.s32 %v1589, %v1591
      %v1593 = vrot.slane %v1571, %v1592
      %v1595 = vunpack.c.l.s4 1966171168
      %v1596 = vunpack.c.0.s8 %v1595
      %v1597 = vlaneseq
      %v1598 = vshrl.u32 %v1597, 7
      %v1599 = vsub.s32 %v1596, %v1598
      %v1600 = vrot.slane %v1572, %v1599
      %v1601 = vcombine.low %v1579, %v1586
      %v1602 = vcombine.low %v1593, %v1600
      %v1604 = vunpack.c.l.s4 1966171168
      %v1605 = vunpack.c.0.s8 %v1604
      %v1606 = vlaneseq
      %v1607 = vshrl.u32 %v1606, 7
      %v1608 = vsub.s32 %v1605, %v1607
      %v1609 = vrot.slane %v1601, %v1608
      %v1611 = vunpack.c.l.s4 1966171168
      %v1612 = vunpack.c.0.s8 %v1611
      %v1613 = vlaneseq
      %v1614 = vshrl.u32 %v1613, 7
      %v1615 = vsub.s32 %v1612, %v1614
      %v1616 = vrot.slane %v1602, %v1615
      %v1617 = vcombine.low %v1609, %v1616
      %v1618 = vcombine.low %v1218, %v1226
      %v1619 = vcombine.low %v1234, %v1242
      %v1620 = vcombine.low %v1251, %v1259
      %v1621 = vcombine.low %v1267, %v1275
      %v1623 = vunpack.c.l.s4 1966171168
      %v1624 = vunpack.c.0.s8 %v1623
      %v1625 = vlaneseq
      %v1626 = vshrl.u32 %v1625, 7
      %v1627 = vsub.s32 %v1624, %v1626
      %v1628 = vrot.slane %v1618, %v1627
      %v1630 = vunpack.c.l.s4 1966171168
      %v1631 = vunpack.c.0.s8 %v1630
      %v1632 = vlaneseq
      %v1633 = vshrl.u32 %v1632, 7
      %v1634 = vsub.s32 %v1631, %v1633
      %v1635 = vrot.slane %v1619, %v1634
      %v1637 = vunpack.c.l.s4 1966171168
      %v1638 = vunpack.c.0.s8 %v1637
      %v1639 = vlaneseq
      %v1640 = vshrl.u32 %v1639, 7
      %v1641 = vsub.s32 %v1638, %v1640
      %v1642 = vrot.slane %v1620, %v1641
      %v1644 = vunpack.c.l.s4 1966171168
      %v1645 = vunpack.c.0.s8 %v1644
      %v1646 = vlaneseq
      %v1647 = vshrl.u32 %v1646, 7
      %v1648 = vsub.s32 %v1645, %v1647
      %v1649 = vrot.slane %v1621, %v1648
      %v1650 = vcombine.low %v1628, %v1635
      %v1651 = vcombine.low %v1642, %v1649
      %v1653 = vunpack.c.l.s4 1966171168
      %v1654 = vunpack.c.0.s8 %v1653
      %v1655 = vlaneseq
      %v1656 = vshrl.u32 %v1655, 7
      %v1657 = vsub.s32 %v1654, %v1656
      %v1658 = vrot.slane %v1650, %v1657
      %v1660 = vunpack.c.l.s4 1966171168
      %v1661 = vunpack.c.0.s8 %v1660
      %v1662 = vlaneseq
      %v1663 = vshrl.u32 %v1662, 7
      %v1664 = vsub.s32 %v1661, %v1663
      %v1665 = vrot.slane %v1651, %v1664
      %v1666 = vcombine.low %v1658, %v1665
      %v1667 = vcombine.low %v1283, %v1291
      %v1668 = vcombine.low %v1299, %v1308
      %v1669 = vcombine.low %v1316, %v1324
      %v1670 = vcombine.low %v1332, %v1340
      %v1672 = vunpack.c.l.s4 1966171168
      %v1673 = vunpack.c.0.s8 %v1672
      %v1674 = vlaneseq
      %v1675 = vshrl.u32 %v1674, 7
      %v1676 = vsub.s32 %v1673, %v1675
      %v1677 = vrot.slane %v1667, %v1676
      %v1679 = vunpack.c.l.s4 1966171168
      %v1680 = vunpack.c.0.s8 %v1679
      %v1681 = vlaneseq
      %v1682 = vshrl.u32 %v1681, 7
      %v1683 = vsub.s32 %v1680, %v1682
      %v1684 = vrot.slane %v1668, %v1683
      %v1686 = vunpack.c.l.s4 1966171168
      %v1687 = vunpack.c.0.s8 %v1686
      %v1688 = vlaneseq
      %v1689 = vshrl.u32 %v1688, 7
      %v1690 = vsub.s32 %v1687, %v1689
      %v1691 = vrot.slane %v1669, %v1690
      %v1693 = vunpack.c.l.s4 1966171168
      %v1694 = vunpack.c.0.s8 %v1693
      %v1695 = vlaneseq
      %v1696 = vshrl.u32 %v1695, 7
      %v1697 = vsub.s32 %v1694, %v1696
      %v1698 = vrot.slane %v1670, %v1697
      %v1699 = vcombine.low %v1677, %v1684
      %v1700 = vcombine.low %v1691, %v1698
      %v1702 = vunpack.c.l.s4 1966171168
      %v1703 = vunpack.c.0.s8 %v1702
      %v1704 = vlaneseq
      %v1705 = vshrl.u32 %v1704, 7
      %v1706 = vsub.s32 %v1703, %v1705
      %v1707 = vrot.slane %v1699, %v1706
      %v1709 = vunpack.c.l.s4 1966171168
      %v1710 = vunpack.c.0.s8 %v1709
      %v1711 = vlaneseq
      %v1712 = vshrl.u32 %v1711, 7
      %v1713 = vsub.s32 %v1710, %v1712
      %v1714 = vrot.slane %v1700, %v1713
      %v1715 = vcombine.low %v1707, %v1714
      %v1716 = vcombine.low %v1348, %v1356
      %v1717 = vcombine.low %v1365, %v1373
      %v1718 = vcombine.low %v1381, %v1389
      %v1719 = vcombine.low %v1397, %v1405
      %v1721 = vunpack.c.l.s4 1966171168
      %v1722 = vunpack.c.0.s8 %v1721
      %v1723 = vlaneseq
      %v1724 = vshrl.u32 %v1723, 7
      %v1725 = vsub.s32 %v1722, %v1724
      %v1726 = vrot.slane %v1716, %v1725
      %v1728 = vunpack.c.l.s4 1966171168
      %v1729 = vunpack.c.0.s8 %v1728
      %v1730 = vlaneseq
      %v1731 = vshrl.u32 %v1730, 7
      %v1732 = vsub.s32 %v1729, %v1731
      %v1733 = vrot.slane %v1717, %v1732
      %v1735 = vunpack.c.l.s4 1966171168
      %v1736 = vunpack.c.0.s8 %v1735
      %v1737 = vlaneseq
      %v1738 = vshrl.u32 %v1737, 7
      %v1739 = vsub.s32 %v1736, %v1738
      %v1740 = vrot.slane %v1718, %v1739
      %v1742 = vunpack.c.l.s4 1966171168
      %v1743 = vunpack.c.0.s8 %v1742
      %v1744 = vlaneseq
      %v1745 = vshrl.u32 %v1744, 7
      %v1746 = vsub.s32 %v1743, %v1745
      %v1747 = vrot.slane %v1719, %v1746
      %v1748 = vcombine.low %v1726, %v1733
      %v1749 = vcombine.low %v1740, %v1747
      %v1751 = vunpack.c.l.s4 1966171168
      %v1752 = vunpack.c.0.s8 %v1751
      %v1753 = vlaneseq
      %v1754 = vshrl.u32 %v1753, 7
      %v1755 = vsub.s32 %v1752, %v1754
      %v1756 = vrot.slane %v1748, %v1755
      %v1758 = vunpack.c.l.s4 1966171168
      %v1759 = vunpack.c.0.s8 %v1758
      %v1760 = vlaneseq
      %v1761 = vshrl.u32 %v1760, 7
      %v1762 = vsub.s32 %v1759, %v1761
      %v1763 = vrot.slane %v1749, %v1762
      %v1764 = vcombine.low %v1756, %v1763
      %v1765 = vcombine.low %v1413, %v1422
      %v1766 = vcombine.low %v1430, %v1438
      %v1767 = vcombine.low %v1446, %v1454
      %v1768 = vcombine.low %v1462, %v1470
      %v1770 = vunpack.c.l.s4 1966171168
      %v1771 = vunpack.c.0.s8 %v1770
      %v1772 = vlaneseq
      %v1773 = vshrl.u32 %v1772, 7
      %v1774 = vsub.s32 %v1771, %v1773
      %v1775 = vrot.slane %v1765, %v1774
      %v1777 = vunpack.c.l.s4 1966171168
      %v1778 = vunpack.c.0.s8 %v1777
      %v1779 = vlaneseq
      %v1780 = vshrl.u32 %v1779, 7
      %v1781 = vsub.s32 %v1778, %v1780
      %v1782 = vrot.slane %v1766, %v1781
      %v1784 = vunpack.c.l.s4 1966171168
      %v1785 = vunpack.c.0.s8 %v1784
      %v1786 = vlaneseq
      %v1787 = vshrl.u32 %v1786, 7
      %v1788 = vsub.s32 %v1785, %v1787
      %v1789 = vrot.slane %v1767, %v1788
      %v1791 = vunpack.c.l.s4 1966171168
      %v1792 = vunpack.c.0.s8 %v1791
      %v1793 = vlaneseq
      %v1794 = vshrl.u32 %v1793, 7
      %v1795 = vsub.s32 %v1792, %v1794
      %v1796 = vrot.slane %v1768, %v1795
      %v1797 = vcombine.low %v1775, %v1782
      %v1798 = vcombine.low %v1789, %v1796
      %v1800 = vunpack.c.l.s4 1966171168
      %v1801 = vunpack.c.0.s8 %v1800
      %v1802 = vlaneseq
      %v1803 = vshrl.u32 %v1802, 7
      %v1804 = vsub.s32 %v1801, %v1803
      %v1805 = vrot.slane %v1797, %v1804
      %v1807 = vunpack.c.l.s4 1966171168
      %v1808 = vunpack.c.0.s8 %v1807
      %v1809 = vlaneseq
      %v1810 = vshrl.u32 %v1809, 7
      %v1811 = vsub.s32 %v1808, %v1810
      %v1812 = vrot.slane %v1798, %v1811
      %v1813 = vcombine.low %v1805, %v1812
      %1814 = vrot.lane.b32.xlu0 %v1519, 4
      %v1815 = vpop.permute.xlu0 %1814
      %1816 = vrot.lane.b32.xlu0 %v1568, 4
      %v1817 = vpop.permute.xlu0 %1816
      %1818 = vrot.lane.b32.xlu0 %v1617, 4
      %v1819 = vpop.permute.xlu0 %1818
      %1820 = vrot.lane.b32.xlu0 %v1666, 4
      %v1821 = vpop.permute.xlu0 %1820
      %1822 = vrot.lane.b32.xlu0 %v1715, 4
      %v1823 = vpop.permute.xlu0 %1822
      %1824 = vrot.lane.b32.xlu0 %v1764, 4
      %v1825 = vpop.permute.xlu0 %1824
      %1826 = vrot.lane.b32.xlu0 %v1813, 4
      %v1827 = vpop.permute.xlu0 %1826
      %vm1835 = vcmask 64544
      %1836 = vst.msk [vmem:[#allocation2] sm:$0xff] %vm1835, %v1815
      %1837 = vst.msk [vmem:[#allocation2 + $0x8] sm:$0xff] %vm1835, %v1817
      %1838 = vst.msk [vmem:[#allocation2 + $0x10] sm:$0xff] %vm1835, %v1819
      %1839 = vst.msk [vmem:[#allocation2 + $0x18] sm:$0xff] %vm1835, %v1821
      %1840 = vst.msk [vmem:[#allocation2 + $0x20] sm:$0xff] %vm1835, %v1823
      %1841 = vst.msk [vmem:[#allocation2 + $0x28] sm:$0xff] %vm1835, %v1825
      %1842 = vst.msk [vmem:[#allocation2 + $0x30] sm:$0xff] %vm1835, %v1827
      %v1843 = vcombine.low %v279, %v280
      %v1844 = vcombine.low %v281, %v296
      %v1845 = vcombine.low %v303, %v304
      %v1846 = vcombine.low %v992, %v326
      %v1848 = vunpack.c.l.s4 1966171168
      %v1849 = vunpack.c.0.s8 %v1848
      %v1850 = vlaneseq
      %v1851 = vshrl.u32 %v1850, 7
      %v1852 = vsub.s32 %v1849, %v1851
      %v1853 = vrot.slane %v1843, %v1852
      %v1855 = vunpack.c.l.s4 1966171168
      %v1856 = vunpack.c.0.s8 %v1855
      %v1857 = vlaneseq
      %v1858 = vshrl.u32 %v1857, 7
      %v1859 = vsub.s32 %v1856, %v1858
      %v1860 = vrot.slane %v1844, %v1859
      %v1862 = vunpack.c.l.s4 1966171168
      %v1863 = vunpack.c.0.s8 %v1862
      %v1864 = vlaneseq
      %v1865 = vshrl.u32 %v1864, 7
      %v1866 = vsub.s32 %v1863, %v1865
      %v1867 = vrot.slane %v1845, %v1866
      %v1869 = vunpack.c.l.s4 1966171168
      %v1870 = vunpack.c.0.s8 %v1869
      %v1871 = vlaneseq
      %v1872 = vshrl.u32 %v1871, 7
      %v1873 = vsub.s32 %v1870, %v1872
      %v1874 = vrot.slane %v1846, %v1873
      %v1875 = vcombine.low %v1853, %v1860
      %v1876 = vcombine.low %v1867, %v1874
      %v1878 = vunpack.c.l.s4 1966171168
      %v1879 = vunpack.c.0.s8 %v1878
      %v1880 = vlaneseq
      %v1881 = vshrl.u32 %v1880, 7
      %v1882 = vsub.s32 %v1879, %v1881
      %v1883 = vrot.slane %v1875, %v1882
      %v1885 = vunpack.c.l.s4 1966171168
      %v1886 = vunpack.c.0.s8 %v1885
      %v1887 = vlaneseq
      %v1888 = vshrl.u32 %v1887, 7
      %v1889 = vsub.s32 %v1886, %v1888
      %v1890 = vrot.slane %v1876, %v1889
      %v1891 = vcombine.low %v1883, %v1890
      %v1892 = vcombine.low %v327, %v328
      %v1893 = vcombine.low %v343, %v350
      %v1894 = vcombine.low %v351, %v993
      %v1895 = vcombine.low %v373, %v374
      %v1897 = vunpack.c.l.s4 1966171168
      %v1898 = vunpack.c.0.s8 %v1897
      %v1899 = vlaneseq
      %v1900 = vshrl.u32 %v1899, 7
      %v1901 = vsub.s32 %v1898, %v1900
      %v1902 = vrot.slane %v1892, %v1901
      %v1904 = vunpack.c.l.s4 1966171168
      %v1905 = vunpack.c.0.s8 %v1904
      %v1906 = vlaneseq
      %v1907 = vshrl.u32 %v1906, 7
      %v1908 = vsub.s32 %v1905, %v1907
      %v1909 = vrot.slane %v1893, %v1908
      %v1911 = vunpack.c.l.s4 1966171168
      %v1912 = vunpack.c.0.s8 %v1911
      %v1913 = vlaneseq
      %v1914 = vshrl.u32 %v1913, 7
      %v1915 = vsub.s32 %v1912, %v1914
      %v1916 = vrot.slane %v1894, %v1915
      %v1918 = vunpack.c.l.s4 1966171168
      %v1919 = vunpack.c.0.s8 %v1918
      %v1920 = vlaneseq
      %v1921 = vshrl.u32 %v1920, 7
      %v1922 = vsub.s32 %v1919, %v1921
      %v1923 = vrot.slane %v1895, %v1922
      %v1924 = vcombine.low %v1902, %v1909
      %v1925 = vcombine.low %v1916, %v1923
      %v1927 = vunpack.c.l.s4 1966171168
      %v1928 = vunpack.c.0.s8 %v1927
      %v1929 = vlaneseq
      %v1930 = vshrl.u32 %v1929, 7
      %v1931 = vsub.s32 %v1928, %v1930
      %v1932 = vrot.slane %v1924, %v1931
      %v1934 = vunpack.c.l.s4 1966171168
      %v1935 = vunpack.c.0.s8 %v1934
      %v1936 = vlaneseq
      %v1937 = vshrl.u32 %v1936, 7
      %v1938 = vsub.s32 %v1935, %v1937
      %v1939 = vrot.slane %v1925, %v1938
      %v1940 = vcombine.low %v1932, %v1939
      %v1941 = vcombine.low %v375, %v390
      %v1942 = vcombine.low %v397, %v398
      %v1943 = vcombine.low %v994, %v420
      %v1944 = vcombine.low %v421, %v422
      %v1946 = vunpack.c.l.s4 1966171168
      %v1947 = vunpack.c.0.s8 %v1946
      %v1948 = vlaneseq
      %v1949 = vshrl.u32 %v1948, 7
      %v1950 = vsub.s32 %v1947, %v1949
      %v1951 = vrot.slane %v1941, %v1950
      %v1953 = vunpack.c.l.s4 1966171168
      %v1954 = vunpack.c.0.s8 %v1953
      %v1955 = vlaneseq
      %v1956 = vshrl.u32 %v1955, 7
      %v1957 = vsub.s32 %v1954, %v1956
      %v1958 = vrot.slane %v1942, %v1957
      %v1960 = vunpack.c.l.s4 1966171168
      %v1961 = vunpack.c.0.s8 %v1960
      %v1962 = vlaneseq
      %v1963 = vshrl.u32 %v1962, 7
      %v1964 = vsub.s32 %v1961, %v1963
      %v1965 = vrot.slane %v1943, %v1964
      %v1967 = vunpack.c.l.s4 1966171168
      %v1968 = vunpack.c.0.s8 %v1967
      %v1969 = vlaneseq
      %v1970 = vshrl.u32 %v1969, 7
      %v1971 = vsub.s32 %v1968, %v1970
      %v1972 = vrot.slane %v1944, %v1971
      %v1973 = vcombine.low %v1951, %v1958
      %v1974 = vcombine.low %v1965, %v1972
      %v1976 = vunpack.c.l.s4 1966171168
      %v1977 = vunpack.c.0.s8 %v1976
      %v1978 = vlaneseq
      %v1979 = vshrl.u32 %v1978, 7
      %v1980 = vsub.s32 %v1977, %v1979
      %v1981 = vrot.slane %v1973, %v1980
      %v1983 = vunpack.c.l.s4 1966171168
      %v1984 = vunpack.c.0.s8 %v1983
      %v1985 = vlaneseq
      %v1986 = vshrl.u32 %v1985, 7
      %v1987 = vsub.s32 %v1984, %v1986
      %v1988 = vrot.slane %v1974, %v1987
      %v1989 = vcombine.low %v1981, %v1988
      %v1990 = vcombine.low %v437, %v444
      %v1991 = vcombine.low %v445, %v995
      %v1992 = vcombine.low %v467, %v468
      %v1993 = vcombine.low %v469, %v484
      %v1995 = vunpack.c.l.s4 1966171168
      %v1996 = vunpack.c.0.s8 %v1995
      %v1997 = vlaneseq
      %v1998 = vshrl.u32 %v1997, 7
      %v1999 = vsub.s32 %v1996, %v1998
      %v2000 = vrot.slane %v1990, %v1999
      %v2002 = vunpack.c.l.s4 1966171168
      %v2003 = vunpack.c.0.s8 %v2002
      %v2004 = vlaneseq
      %v2005 = vshrl.u32 %v2004, 7
      %v2006 = vsub.s32 %v2003, %v2005
      %v2007 = vrot.slane %v1991, %v2006
      %v2009 = vunpack.c.l.s4 1966171168
      %v2010 = vunpack.c.0.s8 %v2009
      %v2011 = vlaneseq
      %v2012 = vshrl.u32 %v2011, 7
      %v2013 = vsub.s32 %v2010, %v2012
      %v2014 = vrot.slane %v1992, %v2013
      %v2016 = vunpack.c.l.s4 1966171168
      %v2017 = vunpack.c.0.s8 %v2016
      %v2018 = vlaneseq
      %v2019 = vshrl.u32 %v2018, 7
      %v2020 = vsub.s32 %v2017, %v2019
      %v2021 = vrot.slane %v1993, %v2020
      %v2022 = vcombine.low %v2000, %v2007
      %v2023 = vcombine.low %v2014, %v2021
      %v2025 = vunpack.c.l.s4 1966171168
      %v2026 = vunpack.c.0.s8 %v2025
      %v2027 = vlaneseq
      %v2028 = vshrl.u32 %v2027, 7
      %v2029 = vsub.s32 %v2026, %v2028
      %v2030 = vrot.slane %v2022, %v2029
      %v2032 = vunpack.c.l.s4 1966171168
      %v2033 = vunpack.c.0.s8 %v2032
      %v2034 = vlaneseq
      %v2035 = vshrl.u32 %v2034, 7
      %v2036 = vsub.s32 %v2033, %v2035
      %v2037 = vrot.slane %v2023, %v2036
      %v2038 = vcombine.low %v2030, %v2037
      %v2039 = vcombine.low %v491, %v492
      %v2040 = vcombine.low %v996, %v514
      %v2041 = vcombine.low %v515, %v516
      %v2042 = vcombine.low %v531, %v538
      %v2044 = vunpack.c.l.s4 1966171168
      %v2045 = vunpack.c.0.s8 %v2044
      %v2046 = vlaneseq
      %v2047 = vshrl.u32 %v2046, 7
      %v2048 = vsub.s32 %v2045, %v2047
      %v2049 = vrot.slane %v2039, %v2048
      %v2051 = vunpack.c.l.s4 1966171168
      %v2052 = vunpack.c.0.s8 %v2051
      %v2053 = vlaneseq
      %v2054 = vshrl.u32 %v2053, 7
      %v2055 = vsub.s32 %v2052, %v2054
      %v2056 = vrot.slane %v2040, %v2055
      %v2058 = vunpack.c.l.s4 1966171168
      %v2059 = vunpack.c.0.s8 %v2058
      %v2060 = vlaneseq
      %v2061 = vshrl.u32 %v2060, 7
      %v2062 = vsub.s32 %v2059, %v2061
      %v2063 = vrot.slane %v2041, %v2062
      %v2065 = vunpack.c.l.s4 1966171168
      %v2066 = vunpack.c.0.s8 %v2065
      %v2067 = vlaneseq
      %v2068 = vshrl.u32 %v2067, 7
      %v2069 = vsub.s32 %v2066, %v2068
      %v2070 = vrot.slane %v2042, %v2069
      %v2071 = vcombine.low %v2049, %v2056
      %v2072 = vcombine.low %v2063, %v2070
      %v2074 = vunpack.c.l.s4 1966171168
      %v2075 = vunpack.c.0.s8 %v2074
      %v2076 = vlaneseq
      %v2077 = vshrl.u32 %v2076, 7
      %v2078 = vsub.s32 %v2075, %v2077
      %v2079 = vrot.slane %v2071, %v2078
      %v2081 = vunpack.c.l.s4 1966171168
      %v2082 = vunpack.c.0.s8 %v2081
      %v2083 = vlaneseq
      %v2084 = vshrl.u32 %v2083, 7
      %v2085 = vsub.s32 %v2082, %v2084
      %v2086 = vrot.slane %v2072, %v2085
      %v2087 = vcombine.low %v2079, %v2086
      %v2088 = vcombine.low %v539, %v997
      %v2089 = vcombine.low %v561, %v562
      %v2090 = vcombine.low %v563, %v578
      %v2091 = vcombine.low %v585, %v586
      %v2093 = vunpack.c.l.s4 1966171168
      %v2094 = vunpack.c.0.s8 %v2093
      %v2095 = vlaneseq
      %v2096 = vshrl.u32 %v2095, 7
      %v2097 = vsub.s32 %v2094, %v2096
      %v2098 = vrot.slane %v2088, %v2097
      %v2100 = vunpack.c.l.s4 1966171168
      %v2101 = vunpack.c.0.s8 %v2100
      %v2102 = vlaneseq
      %v2103 = vshrl.u32 %v2102, 7
      %v2104 = vsub.s32 %v2101, %v2103
      %v2105 = vrot.slane %v2089, %v2104
      %v2107 = vunpack.c.l.s4 1966171168
      %v2108 = vunpack.c.0.s8 %v2107
      %v2109 = vlaneseq
      %v2110 = vshrl.u32 %v2109, 7
      %v2111 = vsub.s32 %v2108, %v2110
      %v2112 = vrot.slane %v2090, %v2111
      %v2114 = vunpack.c.l.s4 1966171168
      %v2115 = vunpack.c.0.s8 %v2114
      %v2116 = vlaneseq
      %v2117 = vshrl.u32 %v2116, 7
      %v2118 = vsub.s32 %v2115, %v2117
      %v2119 = vrot.slane %v2091, %v2118
      %v2120 = vcombine.low %v2098, %v2105
      %v2121 = vcombine.low %v2112, %v2119
      %v2123 = vunpack.c.l.s4 1966171168
      %v2124 = vunpack.c.0.s8 %v2123
      %v2125 = vlaneseq
      %v2126 = vshrl.u32 %v2125, 7
      %v2127 = vsub.s32 %v2124, %v2126
      %v2128 = vrot.slane %v2120, %v2127
      %v2130 = vunpack.c.l.s4 1966171168
      %v2131 = vunpack.c.0.s8 %v2130
      %v2132 = vlaneseq
      %v2133 = vshrl.u32 %v2132, 7
      %v2134 = vsub.s32 %v2131, %v2133
      %v2135 = vrot.slane %v2121, %v2134
      %v2136 = vcombine.low %v2128, %v2135
      %v2137 = vcombine.low %v998, %v608
      %v2138 = vcombine.low %v609, %v610
      %v2139 = vcombine.low %v625, %v632
      %v2140 = vcombine.low %v633, %v999
      %v2142 = vunpack.c.l.s4 1966171168
      %v2143 = vunpack.c.0.s8 %v2142
      %v2144 = vlaneseq
      %v2145 = vshrl.u32 %v2144, 7
      %v2146 = vsub.s32 %v2143, %v2145
      %v2147 = vrot.slane %v2137, %v2146
      %v2149 = vunpack.c.l.s4 1966171168
      %v2150 = vunpack.c.0.s8 %v2149
      %v2151 = vlaneseq
      %v2152 = vshrl.u32 %v2151, 7
      %v2153 = vsub.s32 %v2150, %v2152
      %v2154 = vrot.slane %v2138, %v2153
      %v2156 = vunpack.c.l.s4 1966171168
      %v2157 = vunpack.c.0.s8 %v2156
      %v2158 = vlaneseq
      %v2159 = vshrl.u32 %v2158, 7
      %v2160 = vsub.s32 %v2157, %v2159
      %v2161 = vrot.slane %v2139, %v2160
      %v2163 = vunpack.c.l.s4 1966171168
      %v2164 = vunpack.c.0.s8 %v2163
      %v2165 = vlaneseq
      %v2166 = vshrl.u32 %v2165, 7
      %v2167 = vsub.s32 %v2164, %v2166
      %v2168 = vrot.slane %v2140, %v2167
      %v2169 = vcombine.low %v2147, %v2154
      %v2170 = vcombine.low %v2161, %v2168
      %v2172 = vunpack.c.l.s4 1966171168
      %v2173 = vunpack.c.0.s8 %v2172
      %v2174 = vlaneseq
      %v2175 = vshrl.u32 %v2174, 7
      %v2176 = vsub.s32 %v2173, %v2175
      %v2177 = vrot.slane %v2169, %v2176
      %v2179 = vunpack.c.l.s4 1966171168
      %v2180 = vunpack.c.0.s8 %v2179
      %v2181 = vlaneseq
      %v2182 = vshrl.u32 %v2181, 7
      %v2183 = vsub.s32 %v2180, %v2182
      %v2184 = vrot.slane %v2170, %v2183
      %v2185 = vcombine.low %v2177, %v2184
      %2186 = vrot.lane.b32.xlu0 %v1891, 8
      %v2187 = vpop.permute.xlu0 %2186
      %2188 = vrot.lane.b32.xlu0 %v1940, 8
      %v2189 = vpop.permute.xlu0 %2188
      %2190 = vrot.lane.b32.xlu0 %v1989, 8
      %v2191 = vpop.permute.xlu0 %2190
      %2192 = vrot.lane.b32.xlu0 %v2038, 8
      %v2193 = vpop.permute.xlu0 %2192
      %2194 = vrot.lane.b32.xlu0 %v2087, 8
      %v2195 = vpop.permute.xlu0 %2194
      %2196 = vrot.lane.b32.xlu0 %v2136, 8
      %v2197 = vpop.permute.xlu0 %2196
      %2198 = vrot.lane.b32.xlu0 %v2185, 8
      %v2199 = vpop.permute.xlu0 %2198
      %vm2207 = vcmask 97344
      %2208 = vst.msk [vmem:[#allocation2] sm:$0xff] %vm2207, %v2187
      %2209 = vst.msk [vmem:[#allocation2 + $0x8] sm:$0xff] %vm2207, %v2189
      %2210 = vst.msk [vmem:[#allocation2 + $0x10] sm:$0xff] %vm2207, %v2191
      %2211 = vst.msk [vmem:[#allocation2 + $0x18] sm:$0xff] %vm2207, %v2193
      %2212 = vst.msk [vmem:[#allocation2 + $0x20] sm:$0xff] %vm2207, %v2195
      %2213 = vst.msk [vmem:[#allocation2 + $0x28] sm:$0xff] %vm2207, %v2197
      %2214 = vst.msk [vmem:[#allocation2 + $0x30] sm:$0xff] %vm2207, %v2199
      %s2215 = sadd.s32 %s222, 1
      %s2216 = smul.u32 %s2215, 2
      %s2217 = smul.addr %s2216, 4
      %s2218 = scalar_lea.vmem %s210, %s2217
      %v2219 = vld [vmem:[%s2218] sm:$0xf]
      %v2220 = vld [vmem:[%s2218 + $0x4] sm:$0xf]
      %v2221 = vld [vmem:[%s2218 + $0x8] sm:$0xf]
      %v2222 = vld [vmem:[%s2218 + $0xc] sm:$0xf]
      %v2223 = vld [vmem:[%s2218 + $0x10] sm:$0xf]
      %v2224 = vld [vmem:[%s2218 + $0x14] sm:$0xf]
      %v2225 = vld [vmem:[%s2218 + $0x18] sm:$0xf]
      %v2226 = vld [vmem:[%s2218 + $0x1c] sm:$0xf]
      %v2227 = vld [vmem:[%s2218 + $0x20] sm:$0xf]
      %v2228 = vld [vmem:[%s2218 + $0x24] sm:$0xf]
      %v2229 = vld [vmem:[%s2218 + $0x28] sm:$0xf]
      %v2230 = vld [vmem:[%s2218 + $0x2c] sm:$0xf]
      %v2231 = vld [vmem:[%s2218 + $0x30] sm:$0xf]
      %v2232 = vld [vmem:[%s2218 + $0x34] sm:$0xf]
      %v2233 = vld [vmem:[%s2218 + $0x38] sm:$0xf]
      %v2234 = vld [vmem:[%s2218 + $0x3c] sm:$0xf]
      %v2252 = vunpack.c.l.s4 1966171168
      %v2253 = vunpack.c.0.s8 %v2252
      %v2254 = vlaneseq
      %v2255 = vshrl.u32 %v2254, 7
      %v2256 = vsub.s32 %v2253, %v2255
      %v2257 = vrot.slane %v2219, %v2256
      %v2258 = vcombine.high %v2257, %v2257
      %v2260 = vunpack.c.l.s4 1966171168
      %v2261 = vunpack.c.0.s8 %v2260
      %v2262 = vlaneseq
      %v2263 = vshrl.u32 %v2262, 7
      %v2264 = vsub.s32 %v2261, %v2263
      %v2265 = vrot.slane %v2257, %v2264
      %v2267 = vunpack.c.l.s4 1966171168
      %v2268 = vunpack.c.0.s8 %v2267
      %v2269 = vlaneseq
      %v2270 = vshrl.u32 %v2269, 7
      %v2271 = vsub.s32 %v2268, %v2270
      %v2272 = vrot.slane %v2258, %v2271
      %v2273 = vcombine.high %v2265, %v2265
      %v2274 = vcombine.high %v2272, %v2272
      %v2276 = vunpack.c.l.s4 1966171168
      %v2277 = vunpack.c.0.s8 %v2276
      %v2278 = vlaneseq
      %v2279 = vshrl.u32 %v2278, 7
      %v2280 = vsub.s32 %v2277, %v2279
      %v2281 = vrot.slane %v2220, %v2280
      %v2282 = vcombine.high %v2281, %v2281
      %v2284 = vunpack.c.l.s4 1966171168
      %v2285 = vunpack.c.0.s8 %v2284
      %v2286 = vlaneseq
      %v2287 = vshrl.u32 %v2286, 7
      %v2288 = vsub.s32 %v2285, %v2287
      %v2289 = vrot.slane %v2281, %v2288
      %v2291 = vunpack.c.l.s4 1966171168
      %v2292 = vunpack.c.0.s8 %v2291
      %v2293 = vlaneseq
      %v2294 = vshrl.u32 %v2293, 7
      %v2295 = vsub.s32 %v2292, %v2294
      %v2296 = vrot.slane %v2282, %v2295
      %v2297 = vcombine.high %v2289, %v2289
      %v2299 = vunpack.c.l.s4 1966171168
      %v2300 = vunpack.c.0.s8 %v2299
      %v2301 = vlaneseq
      %v2302 = vshrl.u32 %v2301, 7
      %v2303 = vsub.s32 %v2300, %v2302
      %v2304 = vrot.slane %v2221, %v2303
      %v2305 = vcombine.high %v2304, %v2304
      %v2307 = vunpack.c.l.s4 1966171168
      %v2308 = vunpack.c.0.s8 %v2307
      %v2309 = vlaneseq
      %v2310 = vshrl.u32 %v2309, 7
      %v2311 = vsub.s32 %v2308, %v2310
      %v2312 = vrot.slane %v2304, %v2311
      %v2314 = vunpack.c.l.s4 1966171168
      %v2315 = vunpack.c.0.s8 %v2314
      %v2316 = vlaneseq
      %v2317 = vshrl.u32 %v2316, 7
      %v2318 = vsub.s32 %v2315, %v2317
      %v2319 = vrot.slane %v2305, %v2318
      %v2320 = vcombine.high %v2312, %v2312
      %v2321 = vcombine.high %v2319, %v2319
      %v2323 = vunpack.c.l.s4 1966171168
      %v2324 = vunpack.c.0.s8 %v2323
      %v2325 = vlaneseq
      %v2326 = vshrl.u32 %v2325, 7
      %v2327 = vsub.s32 %v2324, %v2326
      %v2328 = vrot.slane %v2222, %v2327
      %v2329 = vcombine.high %v2328, %v2328
      %v2331 = vunpack.c.l.s4 1966171168
      %v2332 = vunpack.c.0.s8 %v2331
      %v2333 = vlaneseq
      %v2334 = vshrl.u32 %v2333, 7
      %v2335 = vsub.s32 %v2332, %v2334
      %v2336 = vrot.slane %v2328, %v2335
      %v2338 = vunpack.c.l.s4 1966171168
      %v2339 = vunpack.c.0.s8 %v2338
      %v2340 = vlaneseq
      %v2341 = vshrl.u32 %v2340, 7
      %v2342 = vsub.s32 %v2339, %v2341
      %v2343 = vrot.slane %v2329, %v2342
      %v2344 = vcombine.high %v2336, %v2336
      %v2346 = vunpack.c.l.s4 1966171168
      %v2347 = vunpack.c.0.s8 %v2346
      %v2348 = vlaneseq
      %v2349 = vshrl.u32 %v2348, 7
      %v2350 = vsub.s32 %v2347, %v2349
      %v2351 = vrot.slane %v2223, %v2350
      %v2352 = vcombine.high %v2351, %v2351
      %v2354 = vunpack.c.l.s4 1966171168
      %v2355 = vunpack.c.0.s8 %v2354
      %v2356 = vlaneseq
      %v2357 = vshrl.u32 %v2356, 7
      %v2358 = vsub.s32 %v2355, %v2357
      %v2359 = vrot.slane %v2351, %v2358
      %v2361 = vunpack.c.l.s4 1966171168
      %v2362 = vunpack.c.0.s8 %v2361
      %v2363 = vlaneseq
      %v2364 = vshrl.u32 %v2363, 7
      %v2365 = vsub.s32 %v2362, %v2364
      %v2366 = vrot.slane %v2352, %v2365
      %v2367 = vcombine.high %v2359, %v2359
      %v2368 = vcombine.high %v2366, %v2366
      %v2370 = vunpack.c.l.s4 1966171168
      %v2371 = vunpack.c.0.s8 %v2370
      %v2372 = vlaneseq
      %v2373 = vshrl.u32 %v2372, 7
      %v2374 = vsub.s32 %v2371, %v2373
      %v2375 = vrot.slane %v2224, %v2374
      %v2376 = vcombine.high %v2375, %v2375
      %v2378 = vunpack.c.l.s4 1966171168
      %v2379 = vunpack.c.0.s8 %v2378
      %v2380 = vlaneseq
      %v2381 = vshrl.u32 %v2380, 7
      %v2382 = vsub.s32 %v2379, %v2381
      %v2383 = vrot.slane %v2375, %v2382
      %v2385 = vunpack.c.l.s4 1966171168
      %v2386 = vunpack.c.0.s8 %v2385
      %v2387 = vlaneseq
      %v2388 = vshrl.u32 %v2387, 7
      %v2389 = vsub.s32 %v2386, %v2388
      %v2390 = vrot.slane %v2376, %v2389
      %v2391 = vcombine.high %v2383, %v2383
      %v2393 = vunpack.c.l.s4 1966171168
      %v2394 = vunpack.c.0.s8 %v2393
      %v2395 = vlaneseq
      %v2396 = vshrl.u32 %v2395, 7
      %v2397 = vsub.s32 %v2394, %v2396
      %v2398 = vrot.slane %v2225, %v2397
      %v2399 = vcombine.high %v2398, %v2398
      %v2401 = vunpack.c.l.s4 1966171168
      %v2402 = vunpack.c.0.s8 %v2401
      %v2403 = vlaneseq
      %v2404 = vshrl.u32 %v2403, 7
      %v2405 = vsub.s32 %v2402, %v2404
      %v2406 = vrot.slane %v2398, %v2405
      %v2408 = vunpack.c.l.s4 1966171168
      %v2409 = vunpack.c.0.s8 %v2408
      %v2410 = vlaneseq
      %v2411 = vshrl.u32 %v2410, 7
      %v2412 = vsub.s32 %v2409, %v2411
      %v2413 = vrot.slane %v2399, %v2412
      %v2414 = vcombine.high %v2406, %v2406
      %v2415 = vcombine.high %v2413, %v2413
      %v2417 = vunpack.c.l.s4 1966171168
      %v2418 = vunpack.c.0.s8 %v2417
      %v2419 = vlaneseq
      %v2420 = vshrl.u32 %v2419, 7
      %v2421 = vsub.s32 %v2418, %v2420
      %v2422 = vrot.slane %v2226, %v2421
      %v2423 = vcombine.high %v2422, %v2422
      %v2425 = vunpack.c.l.s4 1966171168
      %v2426 = vunpack.c.0.s8 %v2425
      %v2427 = vlaneseq
      %v2428 = vshrl.u32 %v2427, 7
      %v2429 = vsub.s32 %v2426, %v2428
      %v2430 = vrot.slane %v2422, %v2429
      %v2432 = vunpack.c.l.s4 1966171168
      %v2433 = vunpack.c.0.s8 %v2432
      %v2434 = vlaneseq
      %v2435 = vshrl.u32 %v2434, 7
      %v2436 = vsub.s32 %v2433, %v2435
      %v2437 = vrot.slane %v2423, %v2436
      %v2438 = vcombine.high %v2430, %v2430
      %v2440 = vunpack.c.l.s4 1966171168
      %v2441 = vunpack.c.0.s8 %v2440
      %v2442 = vlaneseq
      %v2443 = vshrl.u32 %v2442, 7
      %v2444 = vsub.s32 %v2441, %v2443
      %v2445 = vrot.slane %v2227, %v2444
      %v2446 = vcombine.high %v2445, %v2445
      %v2448 = vunpack.c.l.s4 1966171168
      %v2449 = vunpack.c.0.s8 %v2448
      %v2450 = vlaneseq
      %v2451 = vshrl.u32 %v2450, 7
      %v2452 = vsub.s32 %v2449, %v2451
      %v2453 = vrot.slane %v2445, %v2452
      %v2455 = vunpack.c.l.s4 1966171168
      %v2456 = vunpack.c.0.s8 %v2455
      %v2457 = vlaneseq
      %v2458 = vshrl.u32 %v2457, 7
      %v2459 = vsub.s32 %v2456, %v2458
      %v2460 = vrot.slane %v2446, %v2459
      %v2461 = vcombine.high %v2453, %v2453
      %v2462 = vcombine.high %v2460, %v2460
      %v2464 = vunpack.c.l.s4 1966171168
      %v2465 = vunpack.c.0.s8 %v2464
      %v2466 = vlaneseq
      %v2467 = vshrl.u32 %v2466, 7
      %v2468 = vsub.s32 %v2465, %v2467
      %v2469 = vrot.slane %v2228, %v2468
      %v2470 = vcombine.high %v2469, %v2469
      %v2472 = vunpack.c.l.s4 1966171168
      %v2473 = vunpack.c.0.s8 %v2472
      %v2474 = vlaneseq
      %v2475 = vshrl.u32 %v2474, 7
      %v2476 = vsub.s32 %v2473, %v2475
      %v2477 = vrot.slane %v2469, %v2476
      %v2479 = vunpack.c.l.s4 1966171168
      %v2480 = vunpack.c.0.s8 %v2479
      %v2481 = vlaneseq
      %v2482 = vshrl.u32 %v2481, 7
      %v2483 = vsub.s32 %v2480, %v2482
      %v2484 = vrot.slane %v2470, %v2483
      %v2485 = vcombine.high %v2477, %v2477
      %v2487 = vunpack.c.l.s4 1966171168
      %v2488 = vunpack.c.0.s8 %v2487
      %v2489 = vlaneseq
      %v2490 = vshrl.u32 %v2489, 7
      %v2491 = vsub.s32 %v2488, %v2490
      %v2492 = vrot.slane %v2229, %v2491
      %v2493 = vcombine.high %v2492, %v2492
      %v2495 = vunpack.c.l.s4 1966171168
      %v2496 = vunpack.c.0.s8 %v2495
      %v2497 = vlaneseq
      %v2498 = vshrl.u32 %v2497, 7
      %v2499 = vsub.s32 %v2496, %v2498
      %v2500 = vrot.slane %v2492, %v2499
      %v2502 = vunpack.c.l.s4 1966171168
      %v2503 = vunpack.c.0.s8 %v2502
      %v2504 = vlaneseq
      %v2505 = vshrl.u32 %v2504, 7
      %v2506 = vsub.s32 %v2503, %v2505
      %v2507 = vrot.slane %v2493, %v2506
      %v2508 = vcombine.high %v2500, %v2500
      %v2509 = vcombine.high %v2507, %v2507
      %v2511 = vunpack.c.l.s4 1966171168
      %v2512 = vunpack.c.0.s8 %v2511
      %v2513 = vlaneseq
      %v2514 = vshrl.u32 %v2513, 7
      %v2515 = vsub.s32 %v2512, %v2514
      %v2516 = vrot.slane %v2230, %v2515
      %v2517 = vcombine.high %v2516, %v2516
      %v2519 = vunpack.c.l.s4 1966171168
      %v2520 = vunpack.c.0.s8 %v2519
      %v2521 = vlaneseq
      %v2522 = vshrl.u32 %v2521, 7
      %v2523 = vsub.s32 %v2520, %v2522
      %v2524 = vrot.slane %v2516, %v2523
      %v2526 = vunpack.c.l.s4 1966171168
      %v2527 = vunpack.c.0.s8 %v2526
      %v2528 = vlaneseq
      %v2529 = vshrl.u32 %v2528, 7
      %v2530 = vsub.s32 %v2527, %v2529
      %v2531 = vrot.slane %v2517, %v2530
      %v2532 = vcombine.high %v2524, %v2524
      %v2534 = vunpack.c.l.s4 1966171168
      %v2535 = vunpack.c.0.s8 %v2534
      %v2536 = vlaneseq
      %v2537 = vshrl.u32 %v2536, 7
      %v2538 = vsub.s32 %v2535, %v2537
      %v2539 = vrot.slane %v2231, %v2538
      %v2540 = vcombine.high %v2539, %v2539
      %v2542 = vunpack.c.l.s4 1966171168
      %v2543 = vunpack.c.0.s8 %v2542
      %v2544 = vlaneseq
      %v2545 = vshrl.u32 %v2544, 7
      %v2546 = vsub.s32 %v2543, %v2545
      %v2547 = vrot.slane %v2539, %v2546
      %v2549 = vunpack.c.l.s4 1966171168
      %v2550 = vunpack.c.0.s8 %v2549
      %v2551 = vlaneseq
      %v2552 = vshrl.u32 %v2551, 7
      %v2553 = vsub.s32 %v2550, %v2552
      %v2554 = vrot.slane %v2540, %v2553
      %v2555 = vcombine.high %v2547, %v2547
      %v2556 = vcombine.high %v2554, %v2554
      %v2558 = vunpack.c.l.s4 1966171168
      %v2559 = vunpack.c.0.s8 %v2558
      %v2560 = vlaneseq
      %v2561 = vshrl.u32 %v2560, 7
      %v2562 = vsub.s32 %v2559, %v2561
      %v2563 = vrot.slane %v2232, %v2562
      %v2564 = vcombine.high %v2563, %v2563
      %v2566 = vunpack.c.l.s4 1966171168
      %v2567 = vunpack.c.0.s8 %v2566
      %v2568 = vlaneseq
      %v2569 = vshrl.u32 %v2568, 7
      %v2570 = vsub.s32 %v2567, %v2569
      %v2571 = vrot.slane %v2563, %v2570
      %v2573 = vunpack.c.l.s4 1966171168
      %v2574 = vunpack.c.0.s8 %v2573
      %v2575 = vlaneseq
      %v2576 = vshrl.u32 %v2575, 7
      %v2577 = vsub.s32 %v2574, %v2576
      %v2578 = vrot.slane %v2564, %v2577
      %v2579 = vcombine.high %v2571, %v2571
      %v2581 = vunpack.c.l.s4 1966171168
      %v2582 = vunpack.c.0.s8 %v2581
      %v2583 = vlaneseq
      %v2584 = vshrl.u32 %v2583, 7
      %v2585 = vsub.s32 %v2582, %v2584
      %v2586 = vrot.slane %v2233, %v2585
      %v2587 = vcombine.high %v2586, %v2586
      %v2589 = vunpack.c.l.s4 1966171168
      %v2590 = vunpack.c.0.s8 %v2589
      %v2591 = vlaneseq
      %v2592 = vshrl.u32 %v2591, 7
      %v2593 = vsub.s32 %v2590, %v2592
      %v2594 = vrot.slane %v2586, %v2593
      %v2596 = vunpack.c.l.s4 1966171168
      %v2597 = vunpack.c.0.s8 %v2596
      %v2598 = vlaneseq
      %v2599 = vshrl.u32 %v2598, 7
      %v2600 = vsub.s32 %v2597, %v2599
      %v2601 = vrot.slane %v2587, %v2600
      %v2602 = vcombine.high %v2594, %v2594
      %v2603 = vcombine.high %v2601, %v2601
      %v2605 = vunpack.c.l.s4 1966171168
      %v2606 = vunpack.c.0.s8 %v2605
      %v2607 = vlaneseq
      %v2608 = vshrl.u32 %v2607, 7
      %v2609 = vsub.s32 %v2606, %v2608
      %v2610 = vrot.slane %v2234, %v2609
      %v2611 = vcombine.high %v2610, %v2610
      %v2613 = vunpack.c.l.s4 1966171168
      %v2614 = vunpack.c.0.s8 %v2613
      %v2615 = vlaneseq
      %v2616 = vshrl.u32 %v2615, 7
      %v2617 = vsub.s32 %v2614, %v2616
      %v2618 = vrot.slane %v2610, %v2617
      %v2620 = vunpack.c.l.s4 1966171168
      %v2621 = vunpack.c.0.s8 %v2620
      %v2622 = vlaneseq
      %v2623 = vshrl.u32 %v2622, 7
      %v2624 = vsub.s32 %v2621, %v2623
      %v2625 = vrot.slane %v2611, %v2624
      %v2626 = vcombine.high %v2618, %v2618
      %v2627 = vcombine.low %v2265, %v2272
      %v2628 = vcombine.low %v2273, %v2274
      %v2629 = vcombine.low %v2289, %v2296
      %v2630 = vcombine.low %v2297, %v2312
      %v2632 = vunpack.c.l.s4 1966171168
      %v2633 = vunpack.c.0.s8 %v2632
      %v2634 = vlaneseq
      %v2635 = vshrl.u32 %v2634, 7
      %v2636 = vsub.s32 %v2633, %v2635
      %v2637 = vrot.slane %v2627, %v2636
      %v2639 = vunpack.c.l.s4 1966171168
      %v2640 = vunpack.c.0.s8 %v2639
      %v2641 = vlaneseq
      %v2642 = vshrl.u32 %v2641, 7
      %v2643 = vsub.s32 %v2640, %v2642
      %v2644 = vrot.slane %v2628, %v2643
      %v2646 = vunpack.c.l.s4 1966171168
      %v2647 = vunpack.c.0.s8 %v2646
      %v2648 = vlaneseq
      %v2649 = vshrl.u32 %v2648, 7
      %v2650 = vsub.s32 %v2647, %v2649
      %v2651 = vrot.slane %v2629, %v2650
      %v2653 = vunpack.c.l.s4 1966171168
      %v2654 = vunpack.c.0.s8 %v2653
      %v2655 = vlaneseq
      %v2656 = vshrl.u32 %v2655, 7
      %v2657 = vsub.s32 %v2654, %v2656
      %v2658 = vrot.slane %v2630, %v2657
      %v2659 = vcombine.low %v2637, %v2644
      %v2660 = vcombine.low %v2651, %v2658
      %v2662 = vunpack.c.l.s4 1966171168
      %v2663 = vunpack.c.0.s8 %v2662
      %v2664 = vlaneseq
      %v2665 = vshrl.u32 %v2664, 7
      %v2666 = vsub.s32 %v2663, %v2665
      %v2667 = vrot.slane %v2659, %v2666
      %v2669 = vunpack.c.l.s4 1966171168
      %v2670 = vunpack.c.0.s8 %v2669
      %v2671 = vlaneseq
      %v2672 = vshrl.u32 %v2671, 7
      %v2673 = vsub.s32 %v2670, %v2672
      %v2674 = vrot.slane %v2660, %v2673
      %v2675 = vcombine.low %v2667, %v2674
      %v2676 = vcombine.low %v2319, %v2320
      %v2677 = vcombine.low %v2321, %v2336
      %v2678 = vcombine.low %v2343, %v2344
      %v2679 = vcombine.low %v2359, %v2366
      %v2681 = vunpack.c.l.s4 1966171168
      %v2682 = vunpack.c.0.s8 %v2681
      %v2683 = vlaneseq
      %v2684 = vshrl.u32 %v2683, 7
      %v2685 = vsub.s32 %v2682, %v2684
      %v2686 = vrot.slane %v2676, %v2685
      %v2688 = vunpack.c.l.s4 1966171168
      %v2689 = vunpack.c.0.s8 %v2688
      %v2690 = vlaneseq
      %v2691 = vshrl.u32 %v2690, 7
      %v2692 = vsub.s32 %v2689, %v2691
      %v2693 = vrot.slane %v2677, %v2692
      %v2695 = vunpack.c.l.s4 1966171168
      %v2696 = vunpack.c.0.s8 %v2695
      %v2697 = vlaneseq
      %v2698 = vshrl.u32 %v2697, 7
      %v2699 = vsub.s32 %v2696, %v2698
      %v2700 = vrot.slane %v2678, %v2699
      %v2702 = vunpack.c.l.s4 1966171168
      %v2703 = vunpack.c.0.s8 %v2702
      %v2704 = vlaneseq
      %v2705 = vshrl.u32 %v2704, 7
      %v2706 = vsub.s32 %v2703, %v2705
      %v2707 = vrot.slane %v2679, %v2706
      %v2708 = vcombine.low %v2686, %v2693
      %v2709 = vcombine.low %v2700, %v2707
      %v2711 = vunpack.c.l.s4 1966171168
      %v2712 = vunpack.c.0.s8 %v2711
      %v2713 = vlaneseq
      %v2714 = vshrl.u32 %v2713, 7
      %v2715 = vsub.s32 %v2712, %v2714
      %v2716 = vrot.slane %v2708, %v2715
      %v2718 = vunpack.c.l.s4 1966171168
      %v2719 = vunpack.c.0.s8 %v2718
      %v2720 = vlaneseq
      %v2721 = vshrl.u32 %v2720, 7
      %v2722 = vsub.s32 %v2719, %v2721
      %v2723 = vrot.slane %v2709, %v2722
      %v2724 = vcombine.low %v2716, %v2723
      %v2725 = vcombine.low %v2367, %v2368
      %v2726 = vcombine.low %v2383, %v2390
      %v2727 = vcombine.low %v2391, %v2406
      %v2728 = vcombine.low %v2413, %v2414
      %v2730 = vunpack.c.l.s4 1966171168
      %v2731 = vunpack.c.0.s8 %v2730
      %v2732 = vlaneseq
      %v2733 = vshrl.u32 %v2732, 7
      %v2734 = vsub.s32 %v2731, %v2733
      %v2735 = vrot.slane %v2725, %v2734
      %v2737 = vunpack.c.l.s4 1966171168
      %v2738 = vunpack.c.0.s8 %v2737
      %v2739 = vlaneseq
      %v2740 = vshrl.u32 %v2739, 7
      %v2741 = vsub.s32 %v2738, %v2740
      %v2742 = vrot.slane %v2726, %v2741
      %v2744 = vunpack.c.l.s4 1966171168
      %v2745 = vunpack.c.0.s8 %v2744
      %v2746 = vlaneseq
      %v2747 = vshrl.u32 %v2746, 7
      %v2748 = vsub.s32 %v2745, %v2747
      %v2749 = vrot.slane %v2727, %v2748
      %v2751 = vunpack.c.l.s4 1966171168
      %v2752 = vunpack.c.0.s8 %v2751
      %v2753 = vlaneseq
      %v2754 = vshrl.u32 %v2753, 7
      %v2755 = vsub.s32 %v2752, %v2754
      %v2756 = vrot.slane %v2728, %v2755
      %v2757 = vcombine.low %v2735, %v2742
      %v2758 = vcombine.low %v2749, %v2756
      %v2760 = vunpack.c.l.s4 1966171168
      %v2761 = vunpack.c.0.s8 %v2760
      %v2762 = vlaneseq
      %v2763 = vshrl.u32 %v2762, 7
      %v2764 = vsub.s32 %v2761, %v2763
      %v2765 = vrot.slane %v2757, %v2764
      %v2767 = vunpack.c.l.s4 1966171168
      %v2768 = vunpack.c.0.s8 %v2767
      %v2769 = vlaneseq
      %v2770 = vshrl.u32 %v2769, 7
      %v2771 = vsub.s32 %v2768, %v2770
      %v2772 = vrot.slane %v2758, %v2771
      %v2773 = vcombine.low %v2765, %v2772
      %v2774 = vcombine.low %v2415, %v2430
      %v2775 = vcombine.low %v2437, %v2438
      %v2776 = vcombine.low %v2453, %v2460
      %v2777 = vcombine.low %v2461, %v2462
      %v2779 = vunpack.c.l.s4 1966171168
      %v2780 = vunpack.c.0.s8 %v2779
      %v2781 = vlaneseq
      %v2782 = vshrl.u32 %v2781, 7
      %v2783 = vsub.s32 %v2780, %v2782
      %v2784 = vrot.slane %v2774, %v2783
      %v2786 = vunpack.c.l.s4 1966171168
      %v2787 = vunpack.c.0.s8 %v2786
      %v2788 = vlaneseq
      %v2789 = vshrl.u32 %v2788, 7
      %v2790 = vsub.s32 %v2787, %v2789
      %v2791 = vrot.slane %v2775, %v2790
      %v2793 = vunpack.c.l.s4 1966171168
      %v2794 = vunpack.c.0.s8 %v2793
      %v2795 = vlaneseq
      %v2796 = vshrl.u32 %v2795, 7
      %v2797 = vsub.s32 %v2794, %v2796
      %v2798 = vrot.slane %v2776, %v2797
      %v2800 = vunpack.c.l.s4 1966171168
      %v2801 = vunpack.c.0.s8 %v2800
      %v2802 = vlaneseq
      %v2803 = vshrl.u32 %v2802, 7
      %v2804 = vsub.s32 %v2801, %v2803
      %v2805 = vrot.slane %v2777, %v2804
      %v2806 = vcombine.low %v2784, %v2791
      %v2807 = vcombine.low %v2798, %v2805
      %v2809 = vunpack.c.l.s4 1966171168
      %v2810 = vunpack.c.0.s8 %v2809
      %v2811 = vlaneseq
      %v2812 = vshrl.u32 %v2811, 7
      %v2813 = vsub.s32 %v2810, %v2812
      %v2814 = vrot.slane %v2806, %v2813
      %v2816 = vunpack.c.l.s4 1966171168
      %v2817 = vunpack.c.0.s8 %v2816
      %v2818 = vlaneseq
      %v2819 = vshrl.u32 %v2818, 7
      %v2820 = vsub.s32 %v2817, %v2819
      %v2821 = vrot.slane %v2807, %v2820
      %v2822 = vcombine.low %v2814, %v2821
      %v2823 = vcombine.low %v2477, %v2484
      %v2824 = vcombine.low %v2485, %v2500
      %v2825 = vcombine.low %v2507, %v2508
      %v2826 = vcombine.low %v2509, %v2524
      %v2828 = vunpack.c.l.s4 1966171168
      %v2829 = vunpack.c.0.s8 %v2828
      %v2830 = vlaneseq
      %v2831 = vshrl.u32 %v2830, 7
      %v2832 = vsub.s32 %v2829, %v2831
      %v2833 = vrot.slane %v2823, %v2832
      %v2835 = vunpack.c.l.s4 1966171168
      %v2836 = vunpack.c.0.s8 %v2835
      %v2837 = vlaneseq
      %v2838 = vshrl.u32 %v2837, 7
      %v2839 = vsub.s32 %v2836, %v2838
      %v2840 = vrot.slane %v2824, %v2839
      %v2842 = vunpack.c.l.s4 1966171168
      %v2843 = vunpack.c.0.s8 %v2842
      %v2844 = vlaneseq
      %v2845 = vshrl.u32 %v2844, 7
      %v2846 = vsub.s32 %v2843, %v2845
      %v2847 = vrot.slane %v2825, %v2846
      %v2849 = vunpack.c.l.s4 1966171168
      %v2850 = vunpack.c.0.s8 %v2849
      %v2851 = vlaneseq
      %v2852 = vshrl.u32 %v2851, 7
      %v2853 = vsub.s32 %v2850, %v2852
      %v2854 = vrot.slane %v2826, %v2853
      %v2855 = vcombine.low %v2833, %v2840
      %v2856 = vcombine.low %v2847, %v2854
      %v2858 = vunpack.c.l.s4 1966171168
      %v2859 = vunpack.c.0.s8 %v2858
      %v2860 = vlaneseq
      %v2861 = vshrl.u32 %v2860, 7
      %v2862 = vsub.s32 %v2859, %v2861
      %v2863 = vrot.slane %v2855, %v2862
      %v2865 = vunpack.c.l.s4 1966171168
      %v2866 = vunpack.c.0.s8 %v2865
      %v2867 = vlaneseq
      %v2868 = vshrl.u32 %v2867, 7
      %v2869 = vsub.s32 %v2866, %v2868
      %v2870 = vrot.slane %v2856, %v2869
      %v2871 = vcombine.low %v2863, %v2870
      %v2872 = vcombine.low %v2531, %v2532
      %v2873 = vcombine.low %v2547, %v2554
      %v2874 = vcombine.low %v2555, %v2556
      %v2875 = vcombine.low %v2571, %v2578
      %v2877 = vunpack.c.l.s4 1966171168
      %v2878 = vunpack.c.0.s8 %v2877
      %v2879 = vlaneseq
      %v2880 = vshrl.u32 %v2879, 7
      %v2881 = vsub.s32 %v2878, %v2880
      %v2882 = vrot.slane %v2872, %v2881
      %v2884 = vunpack.c.l.s4 1966171168
      %v2885 = vunpack.c.0.s8 %v2884
      %v2886 = vlaneseq
      %v2887 = vshrl.u32 %v2886, 7
      %v2888 = vsub.s32 %v2885, %v2887
      %v2889 = vrot.slane %v2873, %v2888
      %v2891 = vunpack.c.l.s4 1966171168
      %v2892 = vunpack.c.0.s8 %v2891
      %v2893 = vlaneseq
      %v2894 = vshrl.u32 %v2893, 7
      %v2895 = vsub.s32 %v2892, %v2894
      %v2896 = vrot.slane %v2874, %v2895
      %v2898 = vunpack.c.l.s4 1966171168
      %v2899 = vunpack.c.0.s8 %v2898
      %v2900 = vlaneseq
      %v2901 = vshrl.u32 %v2900, 7
      %v2902 = vsub.s32 %v2899, %v2901
      %v2903 = vrot.slane %v2875, %v2902
      %v2904 = vcombine.low %v2882, %v2889
      %v2905 = vcombine.low %v2896, %v2903
      %v2907 = vunpack.c.l.s4 1966171168
      %v2908 = vunpack.c.0.s8 %v2907
      %v2909 = vlaneseq
      %v2910 = vshrl.u32 %v2909, 7
      %v2911 = vsub.s32 %v2908, %v2910
      %v2912 = vrot.slane %v2904, %v2911
      %v2914 = vunpack.c.l.s4 1966171168
      %v2915 = vunpack.c.0.s8 %v2914
      %v2916 = vlaneseq
      %v2917 = vshrl.u32 %v2916, 7
      %v2918 = vsub.s32 %v2915, %v2917
      %v2919 = vrot.slane %v2905, %v2918
      %v2920 = vcombine.low %v2912, %v2919
      %v2921 = vcombine.low %v2579, %v2594
      %v2922 = vcombine.low %v2601, %v2602
      %v2923 = vcombine.low %v2603, %v2618
      %v2924 = vcombine.low %v2625, %v2626
      %v2926 = vunpack.c.l.s4 1966171168
      %v2927 = vunpack.c.0.s8 %v2926
      %v2928 = vlaneseq
      %v2929 = vshrl.u32 %v2928, 7
      %v2930 = vsub.s32 %v2927, %v2929
      %v2931 = vrot.slane %v2921, %v2930
      %v2933 = vunpack.c.l.s4 1966171168
      %v2934 = vunpack.c.0.s8 %v2933
      %v2935 = vlaneseq
      %v2936 = vshrl.u32 %v2935, 7
      %v2937 = vsub.s32 %v2934, %v2936
      %v2938 = vrot.slane %v2922, %v2937
      %v2940 = vunpack.c.l.s4 1966171168
      %v2941 = vunpack.c.0.s8 %v2940
      %v2942 = vlaneseq
      %v2943 = vshrl.u32 %v2942, 7
      %v2944 = vsub.s32 %v2941, %v2943
      %v2945 = vrot.slane %v2923, %v2944
      %v2947 = vunpack.c.l.s4 1966171168
      %v2948 = vunpack.c.0.s8 %v2947
      %v2949 = vlaneseq
      %v2950 = vshrl.u32 %v2949, 7
      %v2951 = vsub.s32 %v2948, %v2950
      %v2952 = vrot.slane %v2924, %v2951
      %v2953 = vcombine.low %v2931, %v2938
      %v2954 = vcombine.low %v2945, %v2952
      %v2956 = vunpack.c.l.s4 1966171168
      %v2957 = vunpack.c.0.s8 %v2956
      %v2958 = vlaneseq
      %v2959 = vshrl.u32 %v2958, 7
      %v2960 = vsub.s32 %v2957, %v2959
      %v2961 = vrot.slane %v2953, %v2960
      %v2963 = vunpack.c.l.s4 1966171168
      %v2964 = vunpack.c.0.s8 %v2963
      %v2965 = vlaneseq
      %v2966 = vshrl.u32 %v2965, 7
      %v2967 = vsub.s32 %v2964, %v2966
      %v2968 = vrot.slane %v2954, %v2967
      %v2969 = vcombine.low %v2961, %v2968
      %2970 = vrot.lane.b32.xlu0 %v2675, 12
      %v2971 = vpop.permute.xlu0 %2970
      %2972 = vrot.lane.b32.xlu0 %v2724, 12
      %v2973 = vpop.permute.xlu0 %2972
      %2974 = vrot.lane.b32.xlu0 %v2773, 12
      %v2975 = vpop.permute.xlu0 %2974
      %2976 = vrot.lane.b32.xlu0 %v2822, 12
      %v2977 = vpop.permute.xlu0 %2976
      %2978 = vrot.lane.b32.xlu0 %v2871, 12
      %v2979 = vpop.permute.xlu0 %2978
      %2980 = vrot.lane.b32.xlu0 %v2920, 12
      %v2981 = vpop.permute.xlu0 %2980
      %2982 = vrot.lane.b32.xlu0 %v2969, 12
      %v2983 = vpop.permute.xlu0 %2982
      %vm2991 = vcmask 130144
      %2992 = vst.msk [vmem:[#allocation2] sm:$0xff] %vm2991, %v2971
      %2993 = vst.msk [vmem:[#allocation2 + $0x8] sm:$0xff] %vm2991, %v2973
      %2994 = vst.msk [vmem:[#allocation2 + $0x10] sm:$0xff] %vm2991, %v2975
      %2995 = vst.msk [vmem:[#allocation2 + $0x18] sm:$0xff] %vm2991, %v2977
      %2996 = vst.msk [vmem:[#allocation2 + $0x20] sm:$0xff] %vm2991, %v2979
      %2997 = vst.msk [vmem:[#allocation2 + $0x28] sm:$0xff] %vm2991, %v2981
      %2998 = vst.msk [vmem:[#allocation2 + $0x30] sm:$0xff] %vm2991, %v2983
      %v2999 = vcombine.high %v2296, %v2296
      %v3000 = vcombine.high %v2343, %v2343
      %v3001 = vcombine.high %v2390, %v2390
      %v3002 = vcombine.high %v2437, %v2437
      %v3003 = vcombine.high %v2484, %v2484
      %v3004 = vcombine.high %v2531, %v2531
      %v3005 = vcombine.high %v2578, %v2578
      %v3006 = vcombine.high %v2625, %v2625
      %v3008 = vshrl.u32 %v2265, 16
      %v3010 = vrot.slane %v3008, 7
      %v3011 = vrot.slane %v3010, 1
      %v3013 = vshll.u32 %v2272, 16
      %v3015 = vsel %vm1014, %v3011, %v3013
      %v3016 = vshrl.u32 %v2272, 16
      %v3018 = vrot.slane %v3016, 7
      %v3019 = vrot.slane %v3018, 1
      %v3021 = vshll.u32 %v2273, 16
      %v3023 = vsel %vm1014, %v3019, %v3021
      %v3024 = vshrl.u32 %v2273, 16
      %v3026 = vrot.slane %v3024, 7
      %v3027 = vrot.slane %v3026, 1
      %v3029 = vshll.u32 %v2274, 16
      %v3031 = vsel %vm1014, %v3027, %v3029
      %v3032 = vshrl.u32 %v2274, 16
      %v3034 = vrot.slane %v3032, 7
      %v3035 = vrot.slane %v3034, 1
      %v3037 = vshll.u32 %v2289, 16
      %v3039 = vsel %vm1014, %v3035, %v3037
      %v3040 = vshrl.u32 %v2289, 16
      %v3042 = vrot.slane %v3040, 7
      %v3043 = vrot.slane %v3042, 1
      %v3045 = vshll.u32 %v2296, 16
      %v3047 = vsel %vm1014, %v3043, %v3045
      %v3048 = vshrl.u32 %v2296, 16
      %v3050 = vrot.slane %v3048, 7
      %v3051 = vrot.slane %v3050, 1
      %v3053 = vshll.u32 %v2297, 16
      %v3055 = vsel %vm1014, %v3051, %v3053
      %v3056 = vshrl.u32 %v2297, 16
      %v3058 = vrot.slane %v3056, 7
      %v3059 = vrot.slane %v3058, 1
      %v3061 = vshll.u32 %v2999, 16
      %v3063 = vsel %vm1014, %v3059, %v3061
      %v3065 = vshrl.u32 %v2312, 16
      %v3067 = vrot.slane %v3065, 7
      %v3068 = vrot.slane %v3067, 1
      %v3070 = vshll.u32 %v2319, 16
      %v3072 = vsel %vm1014, %v3068, %v3070
      %v3073 = vshrl.u32 %v2319, 16
      %v3075 = vrot.slane %v3073, 7
      %v3076 = vrot.slane %v3075, 1
      %v3078 = vshll.u32 %v2320, 16
      %v3080 = vsel %vm1014, %v3076, %v3078
      %v3081 = vshrl.u32 %v2320, 16
      %v3083 = vrot.slane %v3081, 7
      %v3084 = vrot.slane %v3083, 1
      %v3086 = vshll.u32 %v2321, 16
      %v3088 = vsel %vm1014, %v3084, %v3086
      %v3089 = vshrl.u32 %v2321, 16
      %v3091 = vrot.slane %v3089, 7
      %v3092 = vrot.slane %v3091, 1
      %v3094 = vshll.u32 %v2336, 16
      %v3096 = vsel %vm1014, %v3092, %v3094
      %v3097 = vshrl.u32 %v2336, 16
      %v3099 = vrot.slane %v3097, 7
      %v3100 = vrot.slane %v3099, 1
      %v3102 = vshll.u32 %v2343, 16
      %v3104 = vsel %vm1014, %v3100, %v3102
      %v3105 = vshrl.u32 %v2343, 16
      %v3107 = vrot.slane %v3105, 7
      %v3108 = vrot.slane %v3107, 1
      %v3110 = vshll.u32 %v2344, 16
      %v3112 = vsel %vm1014, %v3108, %v3110
      %v3113 = vshrl.u32 %v2344, 16
      %v3115 = vrot.slane %v3113, 7
      %v3116 = vrot.slane %v3115, 1
      %v3118 = vshll.u32 %v3000, 16
      %v3120 = vsel %vm1014, %v3116, %v3118
      %v3122 = vshrl.u32 %v2359, 16
      %v3124 = vrot.slane %v3122, 7
      %v3125 = vrot.slane %v3124, 1
      %v3127 = vshll.u32 %v2366, 16
      %v3129 = vsel %vm1014, %v3125, %v3127
      %v3130 = vshrl.u32 %v2366, 16
      %v3132 = vrot.slane %v3130, 7
      %v3133 = vrot.slane %v3132, 1
      %v3135 = vshll.u32 %v2367, 16
      %v3137 = vsel %vm1014, %v3133, %v3135
      %v3138 = vshrl.u32 %v2367, 16
      %v3140 = vrot.slane %v3138, 7
      %v3141 = vrot.slane %v3140, 1
      %v3143 = vshll.u32 %v2368, 16
      %v3145 = vsel %vm1014, %v3141, %v3143
      %v3146 = vshrl.u32 %v2368, 16
      %v3148 = vrot.slane %v3146, 7
      %v3149 = vrot.slane %v3148, 1
      %v3151 = vshll.u32 %v2383, 16
      %v3153 = vsel %vm1014, %v3149, %v3151
      %v3154 = vshrl.u32 %v2383, 16
      %v3156 = vrot.slane %v3154, 7
      %v3157 = vrot.slane %v3156, 1
      %v3159 = vshll.u32 %v2390, 16
      %v3161 = vsel %vm1014, %v3157, %v3159
      %v3162 = vshrl.u32 %v2390, 16
      %v3164 = vrot.slane %v3162, 7
      %v3165 = vrot.slane %v3164, 1
      %v3167 = vshll.u32 %v2391, 16
      %v3169 = vsel %vm1014, %v3165, %v3167
      %v3170 = vshrl.u32 %v2391, 16
      %v3172 = vrot.slane %v3170, 7
      %v3173 = vrot.slane %v3172, 1
      %v3175 = vshll.u32 %v3001, 16
      %v3177 = vsel %vm1014, %v3173, %v3175
      %v3179 = vshrl.u32 %v2406, 16
      %v3181 = vrot.slane %v3179, 7
      %v3182 = vrot.slane %v3181, 1
      %v3184 = vshll.u32 %v2413, 16
      %v3186 = vsel %vm1014, %v3182, %v3184
      %v3187 = vshrl.u32 %v2413, 16
      %v3189 = vrot.slane %v3187, 7
      %v3190 = vrot.slane %v3189, 1
      %v3192 = vshll.u32 %v2414, 16
      %v3194 = vsel %vm1014, %v3190, %v3192
      %v3195 = vshrl.u32 %v2414, 16
      %v3197 = vrot.slane %v3195, 7
      %v3198 = vrot.slane %v3197, 1
      %v3200 = vshll.u32 %v2415, 16
      %v3202 = vsel %vm1014, %v3198, %v3200
      %v3203 = vshrl.u32 %v2415, 16
      %v3205 = vrot.slane %v3203, 7
      %v3206 = vrot.slane %v3205, 1
      %v3208 = vshll.u32 %v2430, 16
      %v3210 = vsel %vm1014, %v3206, %v3208
      %v3211 = vshrl.u32 %v2430, 16
      %v3213 = vrot.slane %v3211, 7
      %v3214 = vrot.slane %v3213, 1
      %v3216 = vshll.u32 %v2437, 16
      %v3218 = vsel %vm1014, %v3214, %v3216
      %v3219 = vshrl.u32 %v2437, 16
      %v3221 = vrot.slane %v3219, 7
      %v3222 = vrot.slane %v3221, 1
      %v3224 = vshll.u32 %v2438, 16
      %v3226 = vsel %vm1014, %v3222, %v3224
      %v3227 = vshrl.u32 %v2438, 16
      %v3229 = vrot.slane %v3227, 7
      %v3230 = vrot.slane %v3229, 1
      %v3232 = vshll.u32 %v3002, 16
      %v3234 = vsel %vm1014, %v3230, %v3232
      %v3236 = vshrl.u32 %v2453, 16
      %v3238 = vrot.slane %v3236, 7
      %v3239 = vrot.slane %v3238, 1
      %v3241 = vshll.u32 %v2460, 16
      %v3243 = vsel %vm1014, %v3239, %v3241
      %v3244 = vshrl.u32 %v2460, 16
      %v3246 = vrot.slane %v3244, 7
      %v3247 = vrot.slane %v3246, 1
      %v3249 = vshll.u32 %v2461, 16
      %v3251 = vsel %vm1014, %v3247, %v3249
      %v3252 = vshrl.u32 %v2461, 16
      %v3254 = vrot.slane %v3252, 7
      %v3255 = vrot.slane %v3254, 1
      %v3257 = vshll.u32 %v2462, 16
      %v3259 = vsel %vm1014, %v3255, %v3257
      %v3260 = vshrl.u32 %v2462, 16
      %v3262 = vrot.slane %v3260, 7
      %v3263 = vrot.slane %v3262, 1
      %v3265 = vshll.u32 %v2477, 16
      %v3267 = vsel %vm1014, %v3263, %v3265
      %v3268 = vshrl.u32 %v2477, 16
      %v3270 = vrot.slane %v3268, 7
      %v3271 = vrot.slane %v3270, 1
      %v3273 = vshll.u32 %v2484, 16
      %v3275 = vsel %vm1014, %v3271, %v3273
      %v3276 = vshrl.u32 %v2484, 16
      %v3278 = vrot.slane %v3276, 7
      %v3279 = vrot.slane %v3278, 1
      %v3281 = vshll.u32 %v2485, 16
      %v3283 = vsel %vm1014, %v3279, %v3281
      %v3284 = vshrl.u32 %v2485, 16
      %v3286 = vrot.slane %v3284, 7
      %v3287 = vrot.slane %v3286, 1
      %v3289 = vshll.u32 %v3003, 16
      %v3291 = vsel %vm1014, %v3287, %v3289
      %v3293 = vshrl.u32 %v2500, 16
      %v3295 = vrot.slane %v3293, 7
      %v3296 = vrot.slane %v3295, 1
      %v3298 = vshll.u32 %v2507, 16
      %v3300 = vsel %vm1014, %v3296, %v3298
      %v3301 = vshrl.u32 %v2507, 16
      %v3303 = vrot.slane %v3301, 7
      %v3304 = vrot.slane %v3303, 1
      %v3306 = vshll.u32 %v2508, 16
      %v3308 = vsel %vm1014, %v3304, %v3306
      %v3309 = vshrl.u32 %v2508, 16
      %v3311 = vrot.slane %v3309, 7
      %v3312 = vrot.slane %v3311, 1
      %v3314 = vshll.u32 %v2509, 16
      %v3316 = vsel %vm1014, %v3312, %v3314
      %v3317 = vshrl.u32 %v2509, 16
      %v3319 = vrot.slane %v3317, 7
      %v3320 = vrot.slane %v3319, 1
      %v3322 = vshll.u32 %v2524, 16
      %v3324 = vsel %vm1014, %v3320, %v3322
      %v3325 = vshrl.u32 %v2524, 16
      %v3327 = vrot.slane %v3325, 7
      %v3328 = vrot.slane %v3327, 1
      %v3330 = vshll.u32 %v2531, 16
      %v3332 = vsel %vm1014, %v3328, %v3330
      %v3333 = vshrl.u32 %v2531, 16
      %v3335 = vrot.slane %v3333, 7
      %v3336 = vrot.slane %v3335, 1
      %v3338 = vshll.u32 %v2532, 16
      %v3340 = vsel %vm1014, %v3336, %v3338
      %v3341 = vshrl.u32 %v2532, 16
      %v3343 = vrot.slane %v3341, 7
      %v3344 = vrot.slane %v3343, 1
      %v3346 = vshll.u32 %v3004, 16
      %v3348 = vsel %vm1014, %v3344, %v3346
      %v3350 = vshrl.u32 %v2547, 16
      %v3352 = vrot.slane %v3350, 7
      %v3353 = vrot.slane %v3352, 1
      %v3355 = vshll.u32 %v2554, 16
      %v3357 = vsel %vm1014, %v3353, %v3355
      %v3358 = vshrl.u32 %v2554, 16
      %v3360 = vrot.slane %v3358, 7
      %v3361 = vrot.slane %v3360, 1
      %v3363 = vshll.u32 %v2555, 16
      %v3365 = vsel %vm1014, %v3361, %v3363
      %v3366 = vshrl.u32 %v2555, 16
      %v3368 = vrot.slane %v3366, 7
      %v3369 = vrot.slane %v3368, 1
      %v3371 = vshll.u32 %v2556, 16
      %v3373 = vsel %vm1014, %v3369, %v3371
      %v3374 = vshrl.u32 %v2556, 16
      %v3376 = vrot.slane %v3374, 7
      %v3377 = vrot.slane %v3376, 1
      %v3379 = vshll.u32 %v2571, 16
      %v3381 = vsel %vm1014, %v3377, %v3379
      %v3382 = vshrl.u32 %v2571, 16
      %v3384 = vrot.slane %v3382, 7
      %v3385 = vrot.slane %v3384, 1
      %v3387 = vshll.u32 %v2578, 16
      %v3389 = vsel %vm1014, %v3385, %v3387
      %v3390 = vshrl.u32 %v2578, 16
      %v3392 = vrot.slane %v3390, 7
      %v3393 = vrot.slane %v3392, 1
      %v3395 = vshll.u32 %v2579, 16
      %v3397 = vsel %vm1014, %v3393, %v3395
      %v3398 = vshrl.u32 %v2579, 16
      %v3400 = vrot.slane %v3398, 7
      %v3401 = vrot.slane %v3400, 1
      %v3403 = vshll.u32 %v3005, 16
      %v3405 = vsel %vm1014, %v3401, %v3403
      %v3407 = vshrl.u32 %v2594, 16
      %v3409 = vrot.slane %v3407, 7
      %v3410 = vrot.slane %v3409, 1
      %v3412 = vshll.u32 %v2601, 16
      %v3414 = vsel %vm1014, %v3410, %v3412
      %v3415 = vshrl.u32 %v2601, 16
      %v3417 = vrot.slane %v3415, 7
      %v3418 = vrot.slane %v3417, 1
      %v3420 = vshll.u32 %v2602, 16
      %v3422 = vsel %vm1014, %v3418, %v3420
      %v3423 = vshrl.u32 %v2602, 16
      %v3425 = vrot.slane %v3423, 7
      %v3426 = vrot.slane %v3425, 1
      %v3428 = vshll.u32 %v2603, 16
      %v3430 = vsel %vm1014, %v3426, %v3428
      %v3431 = vshrl.u32 %v2603, 16
      %v3433 = vrot.slane %v3431, 7
      %v3434 = vrot.slane %v3433, 1
      %v3436 = vshll.u32 %v2618, 16
      %v3438 = vsel %vm1014, %v3434, %v3436
      %v3439 = vshrl.u32 %v2618, 16
      %v3441 = vrot.slane %v3439, 7
      %v3442 = vrot.slane %v3441, 1
      %v3444 = vshll.u32 %v2625, 16
      %v3446 = vsel %vm1014, %v3442, %v3444
      %v3447 = vshrl.u32 %v2625, 16
      %v3449 = vrot.slane %v3447, 7
      %v3450 = vrot.slane %v3449, 1
      %v3452 = vshll.u32 %v2626, 16
      %v3454 = vsel %vm1014, %v3450, %v3452
      %v3455 = vshrl.u32 %v2626, 16
      %v3457 = vrot.slane %v3455, 7
      %v3458 = vrot.slane %v3457, 1
      %v3460 = vshll.u32 %v3006, 16
      %v3462 = vsel %vm1014, %v3458, %v3460
      %v3463 = vcombine.low %v3015, %v3023
      %v3464 = vcombine.low %v3031, %v3039
      %v3465 = vcombine.low %v3047, %v3055
      %v3466 = vcombine.low %v3063, %v3072
      %v3468 = vunpack.c.l.s4 1966171168
      %v3469 = vunpack.c.0.s8 %v3468
      %v3470 = vlaneseq
      %v3471 = vshrl.u32 %v3470, 7
      %v3472 = vsub.s32 %v3469, %v3471
      %v3473 = vrot.slane %v3463, %v3472
      %v3475 = vunpack.c.l.s4 1966171168
      %v3476 = vunpack.c.0.s8 %v3475
      %v3477 = vlaneseq
      %v3478 = vshrl.u32 %v3477, 7
      %v3479 = vsub.s32 %v3476, %v3478
      %v3480 = vrot.slane %v3464, %v3479
      %v3482 = vunpack.c.l.s4 1966171168
      %v3483 = vunpack.c.0.s8 %v3482
      %v3484 = vlaneseq
      %v3485 = vshrl.u32 %v3484, 7
      %v3486 = vsub.s32 %v3483, %v3485
      %v3487 = vrot.slane %v3465, %v3486
      %v3489 = vunpack.c.l.s4 1966171168
      %v3490 = vunpack.c.0.s8 %v3489
      %v3491 = vlaneseq
      %v3492 = vshrl.u32 %v3491, 7
      %v3493 = vsub.s32 %v3490, %v3492
      %v3494 = vrot.slane %v3466, %v3493
      %v3495 = vcombine.low %v3473, %v3480
      %v3496 = vcombine.low %v3487, %v3494
      %v3498 = vunpack.c.l.s4 1966171168
      %v3499 = vunpack.c.0.s8 %v3498
      %v3500 = vlaneseq
      %v3501 = vshrl.u32 %v3500, 7
      %v3502 = vsub.s32 %v3499, %v3501
      %v3503 = vrot.slane %v3495, %v3502
      %v3505 = vunpack.c.l.s4 1966171168
      %v3506 = vunpack.c.0.s8 %v3505
      %v3507 = vlaneseq
      %v3508 = vshrl.u32 %v3507, 7
      %v3509 = vsub.s32 %v3506, %v3508
      %v3510 = vrot.slane %v3496, %v3509
      %v3511 = vcombine.low %v3503, %v3510
      %v3512 = vcombine.low %v3080, %v3088
      %v3513 = vcombine.low %v3096, %v3104
      %v3514 = vcombine.low %v3112, %v3120
      %v3515 = vcombine.low %v3129, %v3137
      %v3517 = vunpack.c.l.s4 1966171168
      %v3518 = vunpack.c.0.s8 %v3517
      %v3519 = vlaneseq
      %v3520 = vshrl.u32 %v3519, 7
      %v3521 = vsub.s32 %v3518, %v3520
      %v3522 = vrot.slane %v3512, %v3521
      %v3524 = vunpack.c.l.s4 1966171168
      %v3525 = vunpack.c.0.s8 %v3524
      %v3526 = vlaneseq
      %v3527 = vshrl.u32 %v3526, 7
      %v3528 = vsub.s32 %v3525, %v3527
      %v3529 = vrot.slane %v3513, %v3528
      %v3531 = vunpack.c.l.s4 1966171168
      %v3532 = vunpack.c.0.s8 %v3531
      %v3533 = vlaneseq
      %v3534 = vshrl.u32 %v3533, 7
      %v3535 = vsub.s32 %v3532, %v3534
      %v3536 = vrot.slane %v3514, %v3535
      %v3538 = vunpack.c.l.s4 1966171168
      %v3539 = vunpack.c.0.s8 %v3538
      %v3540 = vlaneseq
      %v3541 = vshrl.u32 %v3540, 7
      %v3542 = vsub.s32 %v3539, %v3541
      %v3543 = vrot.slane %v3515, %v3542
      %v3544 = vcombine.low %v3522, %v3529
      %v3545 = vcombine.low %v3536, %v3543
      %v3547 = vunpack.c.l.s4 1966171168
      %v3548 = vunpack.c.0.s8 %v3547
      %v3549 = vlaneseq
      %v3550 = vshrl.u32 %v3549, 7
      %v3551 = vsub.s32 %v3548, %v3550
      %v3552 = vrot.slane %v3544, %v3551
      %v3554 = vunpack.c.l.s4 1966171168
      %v3555 = vunpack.c.0.s8 %v3554
      %v3556 = vlaneseq
      %v3557 = vshrl.u32 %v3556, 7
      %v3558 = vsub.s32 %v3555, %v3557
      %v3559 = vrot.slane %v3545, %v3558
      %v3560 = vcombine.low %v3552, %v3559
      %v3561 = vcombine.low %v3145, %v3153
      %v3562 = vcombine.low %v3161, %v3169
      %v3563 = vcombine.low %v3177, %v3186
      %v3564 = vcombine.low %v3194, %v3202
      %v3566 = vunpack.c.l.s4 1966171168
      %v3567 = vunpack.c.0.s8 %v3566
      %v3568 = vlaneseq
      %v3569 = vshrl.u32 %v3568, 7
      %v3570 = vsub.s32 %v3567, %v3569
      %v3571 = vrot.slane %v3561, %v3570
      %v3573 = vunpack.c.l.s4 1966171168
      %v3574 = vunpack.c.0.s8 %v3573
      %v3575 = vlaneseq
      %v3576 = vshrl.u32 %v3575, 7
      %v3577 = vsub.s32 %v3574, %v3576
      %v3578 = vrot.slane %v3562, %v3577
      %v3580 = vunpack.c.l.s4 1966171168
      %v3581 = vunpack.c.0.s8 %v3580
      %v3582 = vlaneseq
      %v3583 = vshrl.u32 %v3582, 7
      %v3584 = vsub.s32 %v3581, %v3583
      %v3585 = vrot.slane %v3563, %v3584
      %v3587 = vunpack.c.l.s4 1966171168
      %v3588 = vunpack.c.0.s8 %v3587
      %v3589 = vlaneseq
      %v3590 = vshrl.u32 %v3589, 7
      %v3591 = vsub.s32 %v3588, %v3590
      %v3592 = vrot.slane %v3564, %v3591
      %v3593 = vcombine.low %v3571, %v3578
      %v3594 = vcombine.low %v3585, %v3592
      %v3596 = vunpack.c.l.s4 1966171168
      %v3597 = vunpack.c.0.s8 %v3596
      %v3598 = vlaneseq
      %v3599 = vshrl.u32 %v3598, 7
      %v3600 = vsub.s32 %v3597, %v3599
      %v3601 = vrot.slane %v3593, %v3600
      %v3603 = vunpack.c.l.s4 1966171168
      %v3604 = vunpack.c.0.s8 %v3603
      %v3605 = vlaneseq
      %v3606 = vshrl.u32 %v3605, 7
      %v3607 = vsub.s32 %v3604, %v3606
      %v3608 = vrot.slane %v3594, %v3607
      %v3609 = vcombine.low %v3601, %v3608
      %v3610 = vcombine.low %v3210, %v3218
      %v3611 = vcombine.low %v3226, %v3234
      %v3612 = vcombine.low %v3243, %v3251
      %v3613 = vcombine.low %v3259, %v3267
      %v3615 = vunpack.c.l.s4 1966171168
      %v3616 = vunpack.c.0.s8 %v3615
      %v3617 = vlaneseq
      %v3618 = vshrl.u32 %v3617, 7
      %v3619 = vsub.s32 %v3616, %v3618
      %v3620 = vrot.slane %v3610, %v3619
      %v3622 = vunpack.c.l.s4 1966171168
      %v3623 = vunpack.c.0.s8 %v3622
      %v3624 = vlaneseq
      %v3625 = vshrl.u32 %v3624, 7
      %v3626 = vsub.s32 %v3623, %v3625
      %v3627 = vrot.slane %v3611, %v3626
      %v3629 = vunpack.c.l.s4 1966171168
      %v3630 = vunpack.c.0.s8 %v3629
      %v3631 = vlaneseq
      %v3632 = vshrl.u32 %v3631, 7
      %v3633 = vsub.s32 %v3630, %v3632
      %v3634 = vrot.slane %v3612, %v3633
      %v3636 = vunpack.c.l.s4 1966171168
      %v3637 = vunpack.c.0.s8 %v3636
      %v3638 = vlaneseq
      %v3639 = vshrl.u32 %v3638, 7
      %v3640 = vsub.s32 %v3637, %v3639
      %v3641 = vrot.slane %v3613, %v3640
      %v3642 = vcombine.low %v3620, %v3627
      %v3643 = vcombine.low %v3634, %v3641
      %v3645 = vunpack.c.l.s4 1966171168
      %v3646 = vunpack.c.0.s8 %v3645
      %v3647 = vlaneseq
      %v3648 = vshrl.u32 %v3647, 7
      %v3649 = vsub.s32 %v3646, %v3648
      %v3650 = vrot.slane %v3642, %v3649
      %v3652 = vunpack.c.l.s4 1966171168
      %v3653 = vunpack.c.0.s8 %v3652
      %v3654 = vlaneseq
      %v3655 = vshrl.u32 %v3654, 7
      %v3656 = vsub.s32 %v3653, %v3655
      %v3657 = vrot.slane %v3643, %v3656
      %v3658 = vcombine.low %v3650, %v3657
      %v3659 = vcombine.low %v3275, %v3283
      %v3660 = vcombine.low %v3291, %v3300
      %v3661 = vcombine.low %v3308, %v3316
      %v3662 = vcombine.low %v3324, %v3332
      %v3664 = vunpack.c.l.s4 1966171168
      %v3665 = vunpack.c.0.s8 %v3664
      %v3666 = vlaneseq
      %v3667 = vshrl.u32 %v3666, 7
      %v3668 = vsub.s32 %v3665, %v3667
      %v3669 = vrot.slane %v3659, %v3668
      %v3671 = vunpack.c.l.s4 1966171168
      %v3672 = vunpack.c.0.s8 %v3671
      %v3673 = vlaneseq
      %v3674 = vshrl.u32 %v3673, 7
      %v3675 = vsub.s32 %v3672, %v3674
      %v3676 = vrot.slane %v3660, %v3675
      %v3678 = vunpack.c.l.s4 1966171168
      %v3679 = vunpack.c.0.s8 %v3678
      %v3680 = vlaneseq
      %v3681 = vshrl.u32 %v3680, 7
      %v3682 = vsub.s32 %v3679, %v3681
      %v3683 = vrot.slane %v3661, %v3682
      %v3685 = vunpack.c.l.s4 1966171168
      %v3686 = vunpack.c.0.s8 %v3685
      %v3687 = vlaneseq
      %v3688 = vshrl.u32 %v3687, 7
      %v3689 = vsub.s32 %v3686, %v3688
      %v3690 = vrot.slane %v3662, %v3689
      %v3691 = vcombine.low %v3669, %v3676
      %v3692 = vcombine.low %v3683, %v3690
      %v3694 = vunpack.c.l.s4 1966171168
      %v3695 = vunpack.c.0.s8 %v3694
      %v3696 = vlaneseq
      %v3697 = vshrl.u32 %v3696, 7
      %v3698 = vsub.s32 %v3695, %v3697
      %v3699 = vrot.slane %v3691, %v3698
      %v3701 = vunpack.c.l.s4 1966171168
      %v3702 = vunpack.c.0.s8 %v3701
      %v3703 = vlaneseq
      %v3704 = vshrl.u32 %v3703, 7
      %v3705 = vsub.s32 %v3702, %v3704
      %v3706 = vrot.slane %v3692, %v3705
      %v3707 = vcombine.low %v3699, %v3706
      %v3708 = vcombine.low %v3340, %v3348
      %v3709 = vcombine.low %v3357, %v3365
      %v3710 = vcombine.low %v3373, %v3381
      %v3711 = vcombine.low %v3389, %v3397
      %v3713 = vunpack.c.l.s4 1966171168
      %v3714 = vunpack.c.0.s8 %v3713
      %v3715 = vlaneseq
      %v3716 = vshrl.u32 %v3715, 7
      %v3717 = vsub.s32 %v3714, %v3716
      %v3718 = vrot.slane %v3708, %v3717
      %v3720 = vunpack.c.l.s4 1966171168
      %v3721 = vunpack.c.0.s8 %v3720
      %v3722 = vlaneseq
      %v3723 = vshrl.u32 %v3722, 7
      %v3724 = vsub.s32 %v3721, %v3723
      %v3725 = vrot.slane %v3709, %v3724
      %v3727 = vunpack.c.l.s4 1966171168
      %v3728 = vunpack.c.0.s8 %v3727
      %v3729 = vlaneseq
      %v3730 = vshrl.u32 %v3729, 7
      %v3731 = vsub.s32 %v3728, %v3730
      %v3732 = vrot.slane %v3710, %v3731
      %v3734 = vunpack.c.l.s4 1966171168
      %v3735 = vunpack.c.0.s8 %v3734
      %v3736 = vlaneseq
      %v3737 = vshrl.u32 %v3736, 7
      %v3738 = vsub.s32 %v3735, %v3737
      %v3739 = vrot.slane %v3711, %v3738
      %v3740 = vcombine.low %v3718, %v3725
      %v3741 = vcombine.low %v3732, %v3739
      %v3743 = vunpack.c.l.s4 1966171168
      %v3744 = vunpack.c.0.s8 %v3743
      %v3745 = vlaneseq
      %v3746 = vshrl.u32 %v3745, 7
      %v3747 = vsub.s32 %v3744, %v3746
      %v3748 = vrot.slane %v3740, %v3747
      %v3750 = vunpack.c.l.s4 1966171168
      %v3751 = vunpack.c.0.s8 %v3750
      %v3752 = vlaneseq
      %v3753 = vshrl.u32 %v3752, 7
      %v3754 = vsub.s32 %v3751, %v3753
      %v3755 = vrot.slane %v3741, %v3754
      %v3756 = vcombine.low %v3748, %v3755
      %v3757 = vcombine.low %v3405, %v3414
      %v3758 = vcombine.low %v3422, %v3430
      %v3759 = vcombine.low %v3438, %v3446
      %v3760 = vcombine.low %v3454, %v3462
      %v3762 = vunpack.c.l.s4 1966171168
      %v3763 = vunpack.c.0.s8 %v3762
      %v3764 = vlaneseq
      %v3765 = vshrl.u32 %v3764, 7
      %v3766 = vsub.s32 %v3763, %v3765
      %v3767 = vrot.slane %v3757, %v3766
      %v3769 = vunpack.c.l.s4 1966171168
      %v3770 = vunpack.c.0.s8 %v3769
      %v3771 = vlaneseq
      %v3772 = vshrl.u32 %v3771, 7
      %v3773 = vsub.s32 %v3770, %v3772
      %v3774 = vrot.slane %v3758, %v3773
      %v3776 = vunpack.c.l.s4 1966171168
      %v3777 = vunpack.c.0.s8 %v3776
      %v3778 = vlaneseq
      %v3779 = vshrl.u32 %v3778, 7
      %v3780 = vsub.s32 %v3777, %v3779
      %v3781 = vrot.slane %v3759, %v3780
      %v3783 = vunpack.c.l.s4 1966171168
      %v3784 = vunpack.c.0.s8 %v3783
      %v3785 = vlaneseq
      %v3786 = vshrl.u32 %v3785, 7
      %v3787 = vsub.s32 %v3784, %v3786
      %v3788 = vrot.slane %v3760, %v3787
      %v3789 = vcombine.low %v3767, %v3774
      %v3790 = vcombine.low %v3781, %v3788
      %v3792 = vunpack.c.l.s4 1966171168
      %v3793 = vunpack.c.0.s8 %v3792
      %v3794 = vlaneseq
      %v3795 = vshrl.u32 %v3794, 7
      %v3796 = vsub.s32 %v3793, %v3795
      %v3797 = vrot.slane %v3789, %v3796
      %v3799 = vunpack.c.l.s4 1966171168
      %v3800 = vunpack.c.0.s8 %v3799
      %v3801 = vlaneseq
      %v3802 = vshrl.u32 %v3801, 7
      %v3803 = vsub.s32 %v3800, %v3802
      %v3804 = vrot.slane %v3790, %v3803
      %v3805 = vcombine.low %v3797, %v3804
      %3806 = vrot.lane.b32.xlu0 %v3511, 16
      %v3807 = vpop.permute.xlu0 %3806
      %3808 = vrot.lane.b32.xlu0 %v3560, 16
      %v3809 = vpop.permute.xlu0 %3808
      %3810 = vrot.lane.b32.xlu0 %v3609, 16
      %v3811 = vpop.permute.xlu0 %3810
      %3812 = vrot.lane.b32.xlu0 %v3658, 16
      %v3813 = vpop.permute.xlu0 %3812
      %3814 = vrot.lane.b32.xlu0 %v3707, 16
      %v3815 = vpop.permute.xlu0 %3814
      %3816 = vrot.lane.b32.xlu0 %v3756, 16
      %v3817 = vpop.permute.xlu0 %3816
      %3818 = vrot.lane.b32.xlu0 %v3805, 16
      %v3819 = vpop.permute.xlu0 %3818
      %vm3827 = vcmask 162944
      %3828 = vst.msk [vmem:[#allocation2] sm:$0xff] %vm3827, %v3807
      %3829 = vst.msk [vmem:[#allocation2 + $0x8] sm:$0xff] %vm3827, %v3809
      %3830 = vst.msk [vmem:[#allocation2 + $0x10] sm:$0xff] %vm3827, %v3811
      %3831 = vst.msk [vmem:[#allocation2 + $0x18] sm:$0xff] %vm3827, %v3813
      %3832 = vst.msk [vmem:[#allocation2 + $0x20] sm:$0xff] %vm3827, %v3815
      %3833 = vst.msk [vmem:[#allocation2 + $0x28] sm:$0xff] %vm3827, %v3817
      %3834 = vst.msk [vmem:[#allocation2 + $0x30] sm:$0xff] %vm3827, %v3819
      %v3835 = vcombine.low %v2272, %v2273
      %v3836 = vcombine.low %v2274, %v2289
      %v3837 = vcombine.low %v2296, %v2297
      %v3838 = vcombine.low %v2999, %v2319
      %v3840 = vunpack.c.l.s4 1966171168
      %v3841 = vunpack.c.0.s8 %v3840
      %v3842 = vlaneseq
      %v3843 = vshrl.u32 %v3842, 7
      %v3844 = vsub.s32 %v3841, %v3843
      %v3845 = vrot.slane %v3835, %v3844
      %v3847 = vunpack.c.l.s4 1966171168
      %v3848 = vunpack.c.0.s8 %v3847
      %v3849 = vlaneseq
      %v3850 = vshrl.u32 %v3849, 7
      %v3851 = vsub.s32 %v3848, %v3850
      %v3852 = vrot.slane %v3836, %v3851
      %v3854 = vunpack.c.l.s4 1966171168
      %v3855 = vunpack.c.0.s8 %v3854
      %v3856 = vlaneseq
      %v3857 = vshrl.u32 %v3856, 7
      %v3858 = vsub.s32 %v3855, %v3857
      %v3859 = vrot.slane %v3837, %v3858
      %v3861 = vunpack.c.l.s4 1966171168
      %v3862 = vunpack.c.0.s8 %v3861
      %v3863 = vlaneseq
      %v3864 = vshrl.u32 %v3863, 7
      %v3865 = vsub.s32 %v3862, %v3864
      %v3866 = vrot.slane %v3838, %v3865
      %v3867 = vcombine.low %v3845, %v3852
      %v3868 = vcombine.low %v3859, %v3866
      %v3870 = vunpack.c.l.s4 1966171168
      %v3871 = vunpack.c.0.s8 %v3870
      %v3872 = vlaneseq
      %v3873 = vshrl.u32 %v3872, 7
      %v3874 = vsub.s32 %v3871, %v3873
      %v3875 = vrot.slane %v3867, %v3874
      %v3877 = vunpack.c.l.s4 1966171168
      %v3878 = vunpack.c.0.s8 %v3877
      %v3879 = vlaneseq
      %v3880 = vshrl.u32 %v3879, 7
      %v3881 = vsub.s32 %v3878, %v3880
      %v3882 = vrot.slane %v3868, %v3881
      %v3883 = vcombine.low %v3875, %v3882
      %v3884 = vcombine.low %v2320, %v2321
      %v3885 = vcombine.low %v2336, %v2343
      %v3886 = vcombine.low %v2344, %v3000
      %v3887 = vcombine.low %v2366, %v2367
      %v3889 = vunpack.c.l.s4 1966171168
      %v3890 = vunpack.c.0.s8 %v3889
      %v3891 = vlaneseq
      %v3892 = vshrl.u32 %v3891, 7
      %v3893 = vsub.s32 %v3890, %v3892
      %v3894 = vrot.slane %v3884, %v3893
      %v3896 = vunpack.c.l.s4 1966171168
      %v3897 = vunpack.c.0.s8 %v3896
      %v3898 = vlaneseq
      %v3899 = vshrl.u32 %v3898, 7
      %v3900 = vsub.s32 %v3897, %v3899
      %v3901 = vrot.slane %v3885, %v3900
      %v3903 = vunpack.c.l.s4 1966171168
      %v3904 = vunpack.c.0.s8 %v3903
      %v3905 = vlaneseq
      %v3906 = vshrl.u32 %v3905, 7
      %v3907 = vsub.s32 %v3904, %v3906
      %v3908 = vrot.slane %v3886, %v3907
      %v3910 = vunpack.c.l.s4 1966171168
      %v3911 = vunpack.c.0.s8 %v3910
      %v3912 = vlaneseq
      %v3913 = vshrl.u32 %v3912, 7
      %v3914 = vsub.s32 %v3911, %v3913
      %v3915 = vrot.slane %v3887, %v3914
      %v3916 = vcombine.low %v3894, %v3901
      %v3917 = vcombine.low %v3908, %v3915
      %v3919 = vunpack.c.l.s4 1966171168
      %v3920 = vunpack.c.0.s8 %v3919
      %v3921 = vlaneseq
      %v3922 = vshrl.u32 %v3921, 7
      %v3923 = vsub.s32 %v3920, %v3922
      %v3924 = vrot.slane %v3916, %v3923
      %v3926 = vunpack.c.l.s4 1966171168
      %v3927 = vunpack.c.0.s8 %v3926
      %v3928 = vlaneseq
      %v3929 = vshrl.u32 %v3928, 7
      %v3930 = vsub.s32 %v3927, %v3929
      %v3931 = vrot.slane %v3917, %v3930
      %v3932 = vcombine.low %v3924, %v3931
      %v3933 = vcombine.low %v2368, %v2383
      %v3934 = vcombine.low %v2390, %v2391
      %v3935 = vcombine.low %v3001, %v2413
      %v3936 = vcombine.low %v2414, %v2415
      %v3938 = vunpack.c.l.s4 1966171168
      %v3939 = vunpack.c.0.s8 %v3938
      %v3940 = vlaneseq
      %v3941 = vshrl.u32 %v3940, 7
      %v3942 = vsub.s32 %v3939, %v3941
      %v3943 = vrot.slane %v3933, %v3942
      %v3945 = vunpack.c.l.s4 1966171168
      %v3946 = vunpack.c.0.s8 %v3945
      %v3947 = vlaneseq
      %v3948 = vshrl.u32 %v3947, 7
      %v3949 = vsub.s32 %v3946, %v3948
      %v3950 = vrot.slane %v3934, %v3949
      %v3952 = vunpack.c.l.s4 1966171168
      %v3953 = vunpack.c.0.s8 %v3952
      %v3954 = vlaneseq
      %v3955 = vshrl.u32 %v3954, 7
      %v3956 = vsub.s32 %v3953, %v3955
      %v3957 = vrot.slane %v3935, %v3956
      %v3959 = vunpack.c.l.s4 1966171168
      %v3960 = vunpack.c.0.s8 %v3959
      %v3961 = vlaneseq
      %v3962 = vshrl.u32 %v3961, 7
      %v3963 = vsub.s32 %v3960, %v3962
      %v3964 = vrot.slane %v3936, %v3963
      %v3965 = vcombine.low %v3943, %v3950
      %v3966 = vcombine.low %v3957, %v3964
      %v3968 = vunpack.c.l.s4 1966171168
      %v3969 = vunpack.c.0.s8 %v3968
      %v3970 = vlaneseq
      %v3971 = vshrl.u32 %v3970, 7
      %v3972 = vsub.s32 %v3969, %v3971
      %v3973 = vrot.slane %v3965, %v3972
      %v3975 = vunpack.c.l.s4 1966171168
      %v3976 = vunpack.c.0.s8 %v3975
      %v3977 = vlaneseq
      %v3978 = vshrl.u32 %v3977, 7
      %v3979 = vsub.s32 %v3976, %v3978
      %v3980 = vrot.slane %v3966, %v3979
      %v3981 = vcombine.low %v3973, %v3980
      %v3982 = vcombine.low %v2430, %v2437
      %v3983 = vcombine.low %v2438, %v3002
      %v3984 = vcombine.low %v2460, %v2461
      %v3985 = vcombine.low %v2462, %v2477
      %v3987 = vunpack.c.l.s4 1966171168
      %v3988 = vunpack.c.0.s8 %v3987
      %v3989 = vlaneseq
      %v3990 = vshrl.u32 %v3989, 7
      %v3991 = vsub.s32 %v3988, %v3990
      %v3992 = vrot.slane %v3982, %v3991
      %v3994 = vunpack.c.l.s4 1966171168
      %v3995 = vunpack.c.0.s8 %v3994
      %v3996 = vlaneseq
      %v3997 = vshrl.u32 %v3996, 7
      %v3998 = vsub.s32 %v3995, %v3997
      %v3999 = vrot.slane %v3983, %v3998
      %v4001 = vunpack.c.l.s4 1966171168
      %v4002 = vunpack.c.0.s8 %v4001
      %v4003 = vlaneseq
      %v4004 = vshrl.u32 %v4003, 7
      %v4005 = vsub.s32 %v4002, %v4004
      %v4006 = vrot.slane %v3984, %v4005
      %v4008 = vunpack.c.l.s4 1966171168
      %v4009 = vunpack.c.0.s8 %v4008
      %v4010 = vlaneseq
      %v4011 = vshrl.u32 %v4010, 7
      %v4012 = vsub.s32 %v4009, %v4011
      %v4013 = vrot.slane %v3985, %v4012
      %v4014 = vcombine.low %v3992, %v3999
      %v4015 = vcombine.low %v4006, %v4013
      %v4017 = vunpack.c.l.s4 1966171168
      %v4018 = vunpack.c.0.s8 %v4017
      %v4019 = vlaneseq
      %v4020 = vshrl.u32 %v4019, 7
      %v4021 = vsub.s32 %v4018, %v4020
      %v4022 = vrot.slane %v4014, %v4021
      %v4024 = vunpack.c.l.s4 1966171168
      %v4025 = vunpack.c.0.s8 %v4024
      %v4026 = vlaneseq
      %v4027 = vshrl.u32 %v4026, 7
      %v4028 = vsub.s32 %v4025, %v4027
      %v4029 = vrot.slane %v4015, %v4028
      %v4030 = vcombine.low %v4022, %v4029
      %v4031 = vcombine.low %v2484, %v2485
      %v4032 = vcombine.low %v3003, %v2507
      %v4033 = vcombine.low %v2508, %v2509
      %v4034 = vcombine.low %v2524, %v2531
      %v4036 = vunpack.c.l.s4 1966171168
      %v4037 = vunpack.c.0.s8 %v4036
      %v4038 = vlaneseq
      %v4039 = vshrl.u32 %v4038, 7
      %v4040 = vsub.s32 %v4037, %v4039
      %v4041 = vrot.slane %v4031, %v4040
      %v4043 = vunpack.c.l.s4 1966171168
      %v4044 = vunpack.c.0.s8 %v4043
      %v4045 = vlaneseq
      %v4046 = vshrl.u32 %v4045, 7
      %v4047 = vsub.s32 %v4044, %v4046
      %v4048 = vrot.slane %v4032, %v4047
      %v4050 = vunpack.c.l.s4 1966171168
      %v4051 = vunpack.c.0.s8 %v4050
      %v4052 = vlaneseq
      %v4053 = vshrl.u32 %v4052, 7
      %v4054 = vsub.s32 %v4051, %v4053
      %v4055 = vrot.slane %v4033, %v4054
      %v4057 = vunpack.c.l.s4 1966171168
      %v4058 = vunpack.c.0.s8 %v4057
      %v4059 = vlaneseq
      %v4060 = vshrl.u32 %v4059, 7
      %v4061 = vsub.s32 %v4058, %v4060
      %v4062 = vrot.slane %v4034, %v4061
      %v4063 = vcombine.low %v4041, %v4048
      %v4064 = vcombine.low %v4055, %v4062
      %v4066 = vunpack.c.l.s4 1966171168
      %v4067 = vunpack.c.0.s8 %v4066
      %v4068 = vlaneseq
      %v4069 = vshrl.u32 %v4068, 7
      %v4070 = vsub.s32 %v4067, %v4069
      %v4071 = vrot.slane %v4063, %v4070
      %v4073 = vunpack.c.l.s4 1966171168
      %v4074 = vunpack.c.0.s8 %v4073
      %v4075 = vlaneseq
      %v4076 = vshrl.u32 %v4075, 7
      %v4077 = vsub.s32 %v4074, %v4076
      %v4078 = vrot.slane %v4064, %v4077
      %v4079 = vcombine.low %v4071, %v4078
      %v4080 = vcombine.low %v2532, %v3004
      %v4081 = vcombine.low %v2554, %v2555
      %v4082 = vcombine.low %v2556, %v2571
      %v4083 = vcombine.low %v2578, %v2579
      %v4085 = vunpack.c.l.s4 1966171168
      %v4086 = vunpack.c.0.s8 %v4085
      %v4087 = vlaneseq
      %v4088 = vshrl.u32 %v4087, 7
      %v4089 = vsub.s32 %v4086, %v4088
      %v4090 = vrot.slane %v4080, %v4089
      %v4092 = vunpack.c.l.s4 1966171168
      %v4093 = vunpack.c.0.s8 %v4092
      %v4094 = vlaneseq
      %v4095 = vshrl.u32 %v4094, 7
      %v4096 = vsub.s32 %v4093, %v4095
      %v4097 = vrot.slane %v4081, %v4096
      %v4099 = vunpack.c.l.s4 1966171168
      %v4100 = vunpack.c.0.s8 %v4099
      %v4101 = vlaneseq
      %v4102 = vshrl.u32 %v4101, 7
      %v4103 = vsub.s32 %v4100, %v4102
      %v4104 = vrot.slane %v4082, %v4103
      %v4106 = vunpack.c.l.s4 1966171168
      %v4107 = vunpack.c.0.s8 %v4106
      %v4108 = vlaneseq
      %v4109 = vshrl.u32 %v4108, 7
      %v4110 = vsub.s32 %v4107, %v4109
      %v4111 = vrot.slane %v4083, %v4110
      %v4112 = vcombine.low %v4090, %v4097
      %v4113 = vcombine.low %v4104, %v4111
      %v4115 = vunpack.c.l.s4 1966171168
      %v4116 = vunpack.c.0.s8 %v4115
      %v4117 = vlaneseq
      %v4118 = vshrl.u32 %v4117, 7
      %v4119 = vsub.s32 %v4116, %v4118
      %v4120 = vrot.slane %v4112, %v4119
      %v4122 = vunpack.c.l.s4 1966171168
      %v4123 = vunpack.c.0.s8 %v4122
      %v4124 = vlaneseq
      %v4125 = vshrl.u32 %v4124, 7
      %v4126 = vsub.s32 %v4123, %v4125
      %v4127 = vrot.slane %v4113, %v4126
      %v4128 = vcombine.low %v4120, %v4127
      %v4129 = vcombine.low %v3005, %v2601
      %v4130 = vcombine.low %v2602, %v2603
      %v4131 = vcombine.low %v2618, %v2625
      %v4132 = vcombine.low %v2626, %v3006
      %v4134 = vunpack.c.l.s4 1966171168
      %v4135 = vunpack.c.0.s8 %v4134
      %v4136 = vlaneseq
      %v4137 = vshrl.u32 %v4136, 7
      %v4138 = vsub.s32 %v4135, %v4137
      %v4139 = vrot.slane %v4129, %v4138
      %v4141 = vunpack.c.l.s4 1966171168
      %v4142 = vunpack.c.0.s8 %v4141
      %v4143 = vlaneseq
      %v4144 = vshrl.u32 %v4143, 7
      %v4145 = vsub.s32 %v4142, %v4144
      %v4146 = vrot.slane %v4130, %v4145
      %v4148 = vunpack.c.l.s4 1966171168
      %v4149 = vunpack.c.0.s8 %v4148
      %v4150 = vlaneseq
      %v4151 = vshrl.u32 %v4150, 7
      %v4152 = vsub.s32 %v4149, %v4151
      %v4153 = vrot.slane %v4131, %v4152
      %v4155 = vunpack.c.l.s4 1966171168
      %v4156 = vunpack.c.0.s8 %v4155
      %v4157 = vlaneseq
      %v4158 = vshrl.u32 %v4157, 7
      %v4159 = vsub.s32 %v4156, %v4158
      %v4160 = vrot.slane %v4132, %v4159
      %v4161 = vcombine.low %v4139, %v4146
      %v4162 = vcombine.low %v4153, %v4160
      %v4164 = vunpack.c.l.s4 1966171168
      %v4165 = vunpack.c.0.s8 %v4164
      %v4166 = vlaneseq
      %v4167 = vshrl.u32 %v4166, 7
      %v4168 = vsub.s32 %v4165, %v4167
      %v4169 = vrot.slane %v4161, %v4168
      %v4171 = vunpack.c.l.s4 1966171168
      %v4172 = vunpack.c.0.s8 %v4171
      %v4173 = vlaneseq
      %v4174 = vshrl.u32 %v4173, 7
      %v4175 = vsub.s32 %v4172, %v4174
      %v4176 = vrot.slane %v4162, %v4175
      %v4177 = vcombine.low %v4169, %v4176
      %4178 = vrot.lane.b32.xlu0 %v3883, 20
      %v4179 = vpop.permute.xlu0 %4178
      %4180 = vrot.lane.b32.xlu0 %v3932, 20
      %v4181 = vpop.permute.xlu0 %4180
      %4182 = vrot.lane.b32.xlu0 %v3981, 20
      %v4183 = vpop.permute.xlu0 %4182
      %4184 = vrot.lane.b32.xlu0 %v4030, 20
      %v4185 = vpop.permute.xlu0 %4184
      %4186 = vrot.lane.b32.xlu0 %v4079, 20
      %v4187 = vpop.permute.xlu0 %4186
      %4188 = vrot.lane.b32.xlu0 %v4128, 20
      %v4189 = vpop.permute.xlu0 %4188
      %4190 = vrot.lane.b32.xlu0 %v4177, 20
      %v4191 = vpop.permute.xlu0 %4190
      %vm4199 = vcmask 195744
      %4200 = vst.msk [vmem:[#allocation2] sm:$0xff] %vm4199, %v4179
      %4201 = vst.msk [vmem:[#allocation2 + $0x8] sm:$0xff] %vm4199, %v4181
      %4202 = vst.msk [vmem:[#allocation2 + $0x10] sm:$0xff] %vm4199, %v4183
      %4203 = vst.msk [vmem:[#allocation2 + $0x18] sm:$0xff] %vm4199, %v4185
      %4204 = vst.msk [vmem:[#allocation2 + $0x20] sm:$0xff] %vm4199, %v4187
      %4205 = vst.msk [vmem:[#allocation2 + $0x28] sm:$0xff] %vm4199, %v4189
      %4206 = vst.msk [vmem:[#allocation2 + $0x30] sm:$0xff] %vm4199, %v4191
      %s4207 = sadd.s32 %s222, 2
      %s4208 = smul.u32 %s4207, 2
      %s4209 = smul.addr %s4208, 4
      %s4210 = scalar_lea.vmem %s210, %s4209
      %v4211 = vld [vmem:[%s4210] sm:$0xf]
      %v4212 = vld [vmem:[%s4210 + $0x4] sm:$0xf]
      %v4213 = vld [vmem:[%s4210 + $0x8] sm:$0xf]
      %v4214 = vld [vmem:[%s4210 + $0xc] sm:$0xf]
      %v4215 = vld [vmem:[%s4210 + $0x10] sm:$0xf]
      %v4216 = vld [vmem:[%s4210 + $0x14] sm:$0xf]
      %v4217 = vld [vmem:[%s4210 + $0x18] sm:$0xf]
      %v4218 = vld [vmem:[%s4210 + $0x1c] sm:$0xf]
      %v4219 = vld [vmem:[%s4210 + $0x20] sm:$0xf]
      %v4220 = vld [vmem:[%s4210 + $0x24] sm:$0xf]
      %v4221 = vld [vmem:[%s4210 + $0x28] sm:$0xf]
      %v4222 = vld [vmem:[%s4210 + $0x2c] sm:$0xf]
      %v4223 = vld [vmem:[%s4210 + $0x30] sm:$0xf]
      %v4224 = vld [vmem:[%s4210 + $0x34] sm:$0xf]
      %v4225 = vld [vmem:[%s4210 + $0x38] sm:$0xf]
      %v4226 = vld [vmem:[%s4210 + $0x3c] sm:$0xf]
      %v4244 = vunpack.c.l.s4 1966171168
      %v4245 = vunpack.c.0.s8 %v4244
      %v4246 = vlaneseq
      %v4247 = vshrl.u32 %v4246, 7
      %v4248 = vsub.s32 %v4245, %v4247
      %v4249 = vrot.slane %v4211, %v4248
      %v4250 = vcombine.high %v4249, %v4249
      %v4252 = vunpack.c.l.s4 1966171168
      %v4253 = vunpack.c.0.s8 %v4252
      %v4254 = vlaneseq
      %v4255 = vshrl.u32 %v4254, 7
      %v4256 = vsub.s32 %v4253, %v4255
      %v4257 = vrot.slane %v4249, %v4256
      %v4259 = vunpack.c.l.s4 1966171168
      %v4260 = vunpack.c.0.s8 %v4259
      %v4261 = vlaneseq
      %v4262 = vshrl.u32 %v4261, 7
      %v4263 = vsub.s32 %v4260, %v4262
      %v4264 = vrot.slane %v4250, %v4263
      %v4265 = vcombine.high %v4257, %v4257
      %v4266 = vcombine.high %v4264, %v4264
      %v4268 = vunpack.c.l.s4 1966171168
      %v4269 = vunpack.c.0.s8 %v4268
      %v4270 = vlaneseq
      %v4271 = vshrl.u32 %v4270, 7
      %v4272 = vsub.s32 %v4269, %v4271
      %v4273 = vrot.slane %v4212, %v4272
      %v4274 = vcombine.high %v4273, %v4273
      %v4276 = vunpack.c.l.s4 1966171168
      %v4277 = vunpack.c.0.s8 %v4276
      %v4278 = vlaneseq
      %v4279 = vshrl.u32 %v4278, 7
      %v4280 = vsub.s32 %v4277, %v4279
      %v4281 = vrot.slane %v4273, %v4280
      %v4283 = vunpack.c.l.s4 1966171168
      %v4284 = vunpack.c.0.s8 %v4283
      %v4285 = vlaneseq
      %v4286 = vshrl.u32 %v4285, 7
      %v4287 = vsub.s32 %v4284, %v4286
      %v4288 = vrot.slane %v4274, %v4287
      %v4289 = vcombine.high %v4281, %v4281
      %v4291 = vunpack.c.l.s4 1966171168
      %v4292 = vunpack.c.0.s8 %v4291
      %v4293 = vlaneseq
      %v4294 = vshrl.u32 %v4293, 7
      %v4295 = vsub.s32 %v4292, %v4294
      %v4296 = vrot.slane %v4213, %v4295
      %v4297 = vcombine.high %v4296, %v4296
      %v4299 = vunpack.c.l.s4 1966171168
      %v4300 = vunpack.c.0.s8 %v4299
      %v4301 = vlaneseq
      %v4302 = vshrl.u32 %v4301, 7
      %v4303 = vsub.s32 %v4300, %v4302
      %v4304 = vrot.slane %v4296, %v4303
      %v4306 = vunpack.c.l.s4 1966171168
      %v4307 = vunpack.c.0.s8 %v4306
      %v4308 = vlaneseq
      %v4309 = vshrl.u32 %v4308, 7
      %v4310 = vsub.s32 %v4307, %v4309
      %v4311 = vrot.slane %v4297, %v4310
      %v4312 = vcombine.high %v4304, %v4304
      %v4313 = vcombine.high %v4311, %v4311
      %v4315 = vunpack.c.l.s4 1966171168
      %v4316 = vunpack.c.0.s8 %v4315
      %v4317 = vlaneseq
      %v4318 = vshrl.u32 %v4317, 7
      %v4319 = vsub.s32 %v4316, %v4318
      %v4320 = vrot.slane %v4214, %v4319
      %v4321 = vcombine.high %v4320, %v4320
      %v4323 = vunpack.c.l.s4 1966171168
      %v4324 = vunpack.c.0.s8 %v4323
      %v4325 = vlaneseq
      %v4326 = vshrl.u32 %v4325, 7
      %v4327 = vsub.s32 %v4324, %v4326
      %v4328 = vrot.slane %v4320, %v4327
      %v4330 = vunpack.c.l.s4 1966171168
      %v4331 = vunpack.c.0.s8 %v4330
      %v4332 = vlaneseq
      %v4333 = vshrl.u32 %v4332, 7
      %v4334 = vsub.s32 %v4331, %v4333
      %v4335 = vrot.slane %v4321, %v4334
      %v4336 = vcombine.high %v4328, %v4328
      %v4338 = vunpack.c.l.s4 1966171168
      %v4339 = vunpack.c.0.s8 %v4338
      %v4340 = vlaneseq
      %v4341 = vshrl.u32 %v4340, 7
      %v4342 = vsub.s32 %v4339, %v4341
      %v4343 = vrot.slane %v4215, %v4342
      %v4344 = vcombine.high %v4343, %v4343
      %v4346 = vunpack.c.l.s4 1966171168
      %v4347 = vunpack.c.0.s8 %v4346
      %v4348 = vlaneseq
      %v4349 = vshrl.u32 %v4348, 7
      %v4350 = vsub.s32 %v4347, %v4349
      %v4351 = vrot.slane %v4343, %v4350
      %v4353 = vunpack.c.l.s4 1966171168
      %v4354 = vunpack.c.0.s8 %v4353
      %v4355 = vlaneseq
      %v4356 = vshrl.u32 %v4355, 7
      %v4357 = vsub.s32 %v4354, %v4356
      %v4358 = vrot.slane %v4344, %v4357
      %v4359 = vcombine.high %v4351, %v4351
      %v4360 = vcombine.high %v4358, %v4358
      %v4362 = vunpack.c.l.s4 1966171168
      %v4363 = vunpack.c.0.s8 %v4362
      %v4364 = vlaneseq
      %v4365 = vshrl.u32 %v4364, 7
      %v4366 = vsub.s32 %v4363, %v4365
      %v4367 = vrot.slane %v4216, %v4366
      %v4368 = vcombine.high %v4367, %v4367
      %v4370 = vunpack.c.l.s4 1966171168
      %v4371 = vunpack.c.0.s8 %v4370
      %v4372 = vlaneseq
      %v4373 = vshrl.u32 %v4372, 7
      %v4374 = vsub.s32 %v4371, %v4373
      %v4375 = vrot.slane %v4367, %v4374
      %v4377 = vunpack.c.l.s4 1966171168
      %v4378 = vunpack.c.0.s8 %v4377
      %v4379 = vlaneseq
      %v4380 = vshrl.u32 %v4379, 7
      %v4381 = vsub.s32 %v4378, %v4380
      %v4382 = vrot.slane %v4368, %v4381
      %v4383 = vcombine.high %v4375, %v4375
      %v4385 = vunpack.c.l.s4 1966171168
      %v4386 = vunpack.c.0.s8 %v4385
      %v4387 = vlaneseq
      %v4388 = vshrl.u32 %v4387, 7
      %v4389 = vsub.s32 %v4386, %v4388
      %v4390 = vrot.slane %v4217, %v4389
      %v4391 = vcombine.high %v4390, %v4390
      %v4393 = vunpack.c.l.s4 1966171168
      %v4394 = vunpack.c.0.s8 %v4393
      %v4395 = vlaneseq
      %v4396 = vshrl.u32 %v4395, 7
      %v4397 = vsub.s32 %v4394, %v4396
      %v4398 = vrot.slane %v4390, %v4397
      %v4400 = vunpack.c.l.s4 1966171168
      %v4401 = vunpack.c.0.s8 %v4400
      %v4402 = vlaneseq
      %v4403 = vshrl.u32 %v4402, 7
      %v4404 = vsub.s32 %v4401, %v4403
      %v4405 = vrot.slane %v4391, %v4404
      %v4406 = vcombine.high %v4398, %v4398
      %v4407 = vcombine.high %v4405, %v4405
      %v4409 = vunpack.c.l.s4 1966171168
      %v4410 = vunpack.c.0.s8 %v4409
      %v4411 = vlaneseq
      %v4412 = vshrl.u32 %v4411, 7
      %v4413 = vsub.s32 %v4410, %v4412
      %v4414 = vrot.slane %v4218, %v4413
      %v4415 = vcombine.high %v4414, %v4414
      %v4417 = vunpack.c.l.s4 1966171168
      %v4418 = vunpack.c.0.s8 %v4417
      %v4419 = vlaneseq
      %v4420 = vshrl.u32 %v4419, 7
      %v4421 = vsub.s32 %v4418, %v4420
      %v4422 = vrot.slane %v4414, %v4421
      %v4424 = vunpack.c.l.s4 1966171168
      %v4425 = vunpack.c.0.s8 %v4424
      %v4426 = vlaneseq
      %v4427 = vshrl.u32 %v4426, 7
      %v4428 = vsub.s32 %v4425, %v4427
      %v4429 = vrot.slane %v4415, %v4428
      %v4430 = vcombine.high %v4422, %v4422
      %v4432 = vunpack.c.l.s4 1966171168
      %v4433 = vunpack.c.0.s8 %v4432
      %v4434 = vlaneseq
      %v4435 = vshrl.u32 %v4434, 7
      %v4436 = vsub.s32 %v4433, %v4435
      %v4437 = vrot.slane %v4219, %v4436
      %v4438 = vcombine.high %v4437, %v4437
      %v4440 = vunpack.c.l.s4 1966171168
      %v4441 = vunpack.c.0.s8 %v4440
      %v4442 = vlaneseq
      %v4443 = vshrl.u32 %v4442, 7
      %v4444 = vsub.s32 %v4441, %v4443
      %v4445 = vrot.slane %v4437, %v4444
      %v4447 = vunpack.c.l.s4 1966171168
      %v4448 = vunpack.c.0.s8 %v4447
      %v4449 = vlaneseq
      %v4450 = vshrl.u32 %v4449, 7
      %v4451 = vsub.s32 %v4448, %v4450
      %v4452 = vrot.slane %v4438, %v4451
      %v4453 = vcombine.high %v4445, %v4445
      %v4454 = vcombine.high %v4452, %v4452
      %v4456 = vunpack.c.l.s4 1966171168
      %v4457 = vunpack.c.0.s8 %v4456
      %v4458 = vlaneseq
      %v4459 = vshrl.u32 %v4458, 7
      %v4460 = vsub.s32 %v4457, %v4459
      %v4461 = vrot.slane %v4220, %v4460
      %v4462 = vcombine.high %v4461, %v4461
      %v4464 = vunpack.c.l.s4 1966171168
      %v4465 = vunpack.c.0.s8 %v4464
      %v4466 = vlaneseq
      %v4467 = vshrl.u32 %v4466, 7
      %v4468 = vsub.s32 %v4465, %v4467
      %v4469 = vrot.slane %v4461, %v4468
      %v4471 = vunpack.c.l.s4 1966171168
      %v4472 = vunpack.c.0.s8 %v4471
      %v4473 = vlaneseq
      %v4474 = vshrl.u32 %v4473, 7
      %v4475 = vsub.s32 %v4472, %v4474
      %v4476 = vrot.slane %v4462, %v4475
      %v4477 = vcombine.high %v4469, %v4469
      %v4479 = vunpack.c.l.s4 1966171168
      %v4480 = vunpack.c.0.s8 %v4479
      %v4481 = vlaneseq
      %v4482 = vshrl.u32 %v4481, 7
      %v4483 = vsub.s32 %v4480, %v4482
      %v4484 = vrot.slane %v4221, %v4483
      %v4485 = vcombine.high %v4484, %v4484
      %v4487 = vunpack.c.l.s4 1966171168
      %v4488 = vunpack.c.0.s8 %v4487
      %v4489 = vlaneseq
      %v4490 = vshrl.u32 %v4489, 7
      %v4491 = vsub.s32 %v4488, %v4490
      %v4492 = vrot.slane %v4484, %v4491
      %v4494 = vunpack.c.l.s4 1966171168
      %v4495 = vunpack.c.0.s8 %v4494
      %v4496 = vlaneseq
      %v4497 = vshrl.u32 %v4496, 7
      %v4498 = vsub.s32 %v4495, %v4497
      %v4499 = vrot.slane %v4485, %v4498
      %v4500 = vcombine.high %v4492, %v4492
      %v4501 = vcombine.high %v4499, %v4499
      %v4503 = vunpack.c.l.s4 1966171168
      %v4504 = vunpack.c.0.s8 %v4503
      %v4505 = vlaneseq
      %v4506 = vshrl.u32 %v4505, 7
      %v4507 = vsub.s32 %v4504, %v4506
      %v4508 = vrot.slane %v4222, %v4507
      %v4509 = vcombine.high %v4508, %v4508
      %v4511 = vunpack.c.l.s4 1966171168
      %v4512 = vunpack.c.0.s8 %v4511
      %v4513 = vlaneseq
      %v4514 = vshrl.u32 %v4513, 7
      %v4515 = vsub.s32 %v4512, %v4514
      %v4516 = vrot.slane %v4508, %v4515
      %v4518 = vunpack.c.l.s4 1966171168
      %v4519 = vunpack.c.0.s8 %v4518
      %v4520 = vlaneseq
      %v4521 = vshrl.u32 %v4520, 7
      %v4522 = vsub.s32 %v4519, %v4521
      %v4523 = vrot.slane %v4509, %v4522
      %v4524 = vcombine.high %v4516, %v4516
      %v4526 = vunpack.c.l.s4 1966171168
      %v4527 = vunpack.c.0.s8 %v4526
      %v4528 = vlaneseq
      %v4529 = vshrl.u32 %v4528, 7
      %v4530 = vsub.s32 %v4527, %v4529
      %v4531 = vrot.slane %v4223, %v4530
      %v4532 = vcombine.high %v4531, %v4531
      %v4534 = vunpack.c.l.s4 1966171168
      %v4535 = vunpack.c.0.s8 %v4534
      %v4536 = vlaneseq
      %v4537 = vshrl.u32 %v4536, 7
      %v4538 = vsub.s32 %v4535, %v4537
      %v4539 = vrot.slane %v4531, %v4538
      %v4541 = vunpack.c.l.s4 1966171168
      %v4542 = vunpack.c.0.s8 %v4541
      %v4543 = vlaneseq
      %v4544 = vshrl.u32 %v4543, 7
      %v4545 = vsub.s32 %v4542, %v4544
      %v4546 = vrot.slane %v4532, %v4545
      %v4547 = vcombine.high %v4539, %v4539
      %v4548 = vcombine.high %v4546, %v4546
      %v4550 = vunpack.c.l.s4 1966171168
      %v4551 = vunpack.c.0.s8 %v4550
      %v4552 = vlaneseq
      %v4553 = vshrl.u32 %v4552, 7
      %v4554 = vsub.s32 %v4551, %v4553
      %v4555 = vrot.slane %v4224, %v4554
      %v4556 = vcombine.high %v4555, %v4555
      %v4558 = vunpack.c.l.s4 1966171168
      %v4559 = vunpack.c.0.s8 %v4558
      %v4560 = vlaneseq
      %v4561 = vshrl.u32 %v4560, 7
      %v4562 = vsub.s32 %v4559, %v4561
      %v4563 = vrot.slane %v4555, %v4562
      %v4565 = vunpack.c.l.s4 1966171168
      %v4566 = vunpack.c.0.s8 %v4565
      %v4567 = vlaneseq
      %v4568 = vshrl.u32 %v4567, 7
      %v4569 = vsub.s32 %v4566, %v4568
      %v4570 = vrot.slane %v4556, %v4569
      %v4571 = vcombine.high %v4563, %v4563
      %v4573 = vunpack.c.l.s4 1966171168
      %v4574 = vunpack.c.0.s8 %v4573
      %v4575 = vlaneseq
      %v4576 = vshrl.u32 %v4575, 7
      %v4577 = vsub.s32 %v4574, %v4576
      %v4578 = vrot.slane %v4225, %v4577
      %v4579 = vcombine.high %v4578, %v4578
      %v4581 = vunpack.c.l.s4 1966171168
      %v4582 = vunpack.c.0.s8 %v4581
      %v4583 = vlaneseq
      %v4584 = vshrl.u32 %v4583, 7
      %v4585 = vsub.s32 %v4582, %v4584
      %v4586 = vrot.slane %v4578, %v4585
      %v4588 = vunpack.c.l.s4 1966171168
      %v4589 = vunpack.c.0.s8 %v4588
      %v4590 = vlaneseq
      %v4591 = vshrl.u32 %v4590, 7
      %v4592 = vsub.s32 %v4589, %v4591
      %v4593 = vrot.slane %v4579, %v4592
      %v4594 = vcombine.high %v4586, %v4586
      %v4595 = vcombine.high %v4593, %v4593
      %v4597 = vunpack.c.l.s4 1966171168
      %v4598 = vunpack.c.0.s8 %v4597
      %v4599 = vlaneseq
      %v4600 = vshrl.u32 %v4599, 7
      %v4601 = vsub.s32 %v4598, %v4600
      %v4602 = vrot.slane %v4226, %v4601
      %v4603 = vcombine.high %v4602, %v4602
      %v4605 = vunpack.c.l.s4 1966171168
      %v4606 = vunpack.c.0.s8 %v4605
      %v4607 = vlaneseq
      %v4608 = vshrl.u32 %v4607, 7
      %v4609 = vsub.s32 %v4606, %v4608
      %v4610 = vrot.slane %v4602, %v4609
      %v4612 = vunpack.c.l.s4 1966171168
      %v4613 = vunpack.c.0.s8 %v4612
      %v4614 = vlaneseq
      %v4615 = vshrl.u32 %v4614, 7
      %v4616 = vsub.s32 %v4613, %v4615
      %v4617 = vrot.slane %v4603, %v4616
      %v4618 = vcombine.high %v4610, %v4610
      %v4619 = vcombine.low %v4257, %v4264
      %v4620 = vcombine.low %v4265, %v4266
      %v4621 = vcombine.low %v4281, %v4288
      %v4622 = vcombine.low %v4289, %v4304
      %v4624 = vunpack.c.l.s4 1966171168
      %v4625 = vunpack.c.0.s8 %v4624
      %v4626 = vlaneseq
      %v4627 = vshrl.u32 %v4626, 7
      %v4628 = vsub.s32 %v4625, %v4627
      %v4629 = vrot.slane %v4619, %v4628
      %v4631 = vunpack.c.l.s4 1966171168
      %v4632 = vunpack.c.0.s8 %v4631
      %v4633 = vlaneseq
      %v4634 = vshrl.u32 %v4633, 7
      %v4635 = vsub.s32 %v4632, %v4634
      %v4636 = vrot.slane %v4620, %v4635
      %v4638 = vunpack.c.l.s4 1966171168
      %v4639 = vunpack.c.0.s8 %v4638
      %v4640 = vlaneseq
      %v4641 = vshrl.u32 %v4640, 7
      %v4642 = vsub.s32 %v4639, %v4641
      %v4643 = vrot.slane %v4621, %v4642
      %v4645 = vunpack.c.l.s4 1966171168
      %v4646 = vunpack.c.0.s8 %v4645
      %v4647 = vlaneseq
      %v4648 = vshrl.u32 %v4647, 7
      %v4649 = vsub.s32 %v4646, %v4648
      %v4650 = vrot.slane %v4622, %v4649
      %v4651 = vcombine.low %v4629, %v4636
      %v4652 = vcombine.low %v4643, %v4650
      %v4654 = vunpack.c.l.s4 1966171168
      %v4655 = vunpack.c.0.s8 %v4654
      %v4656 = vlaneseq
      %v4657 = vshrl.u32 %v4656, 7
      %v4658 = vsub.s32 %v4655, %v4657
      %v4659 = vrot.slane %v4651, %v4658
      %v4661 = vunpack.c.l.s4 1966171168
      %v4662 = vunpack.c.0.s8 %v4661
      %v4663 = vlaneseq
      %v4664 = vshrl.u32 %v4663, 7
      %v4665 = vsub.s32 %v4662, %v4664
      %v4666 = vrot.slane %v4652, %v4665
      %v4667 = vcombine.low %v4659, %v4666
      %v4668 = vcombine.low %v4311, %v4312
      %v4669 = vcombine.low %v4313, %v4328
      %v4670 = vcombine.low %v4335, %v4336
      %v4671 = vcombine.low %v4351, %v4358
      %v4673 = vunpack.c.l.s4 1966171168
      %v4674 = vunpack.c.0.s8 %v4673
      %v4675 = vlaneseq
      %v4676 = vshrl.u32 %v4675, 7
      %v4677 = vsub.s32 %v4674, %v4676
      %v4678 = vrot.slane %v4668, %v4677
      %v4680 = vunpack.c.l.s4 1966171168
      %v4681 = vunpack.c.0.s8 %v4680
      %v4682 = vlaneseq
      %v4683 = vshrl.u32 %v4682, 7
      %v4684 = vsub.s32 %v4681, %v4683
      %v4685 = vrot.slane %v4669, %v4684
      %v4687 = vunpack.c.l.s4 1966171168
      %v4688 = vunpack.c.0.s8 %v4687
      %v4689 = vlaneseq
      %v4690 = vshrl.u32 %v4689, 7
      %v4691 = vsub.s32 %v4688, %v4690
      %v4692 = vrot.slane %v4670, %v4691
      %v4694 = vunpack.c.l.s4 1966171168
      %v4695 = vunpack.c.0.s8 %v4694
      %v4696 = vlaneseq
      %v4697 = vshrl.u32 %v4696, 7
      %v4698 = vsub.s32 %v4695, %v4697
      %v4699 = vrot.slane %v4671, %v4698
      %v4700 = vcombine.low %v4678, %v4685
      %v4701 = vcombine.low %v4692, %v4699
      %v4703 = vunpack.c.l.s4 1966171168
      %v4704 = vunpack.c.0.s8 %v4703
      %v4705 = vlaneseq
      %v4706 = vshrl.u32 %v4705, 7
      %v4707 = vsub.s32 %v4704, %v4706
      %v4708 = vrot.slane %v4700, %v4707
      %v4710 = vunpack.c.l.s4 1966171168
      %v4711 = vunpack.c.0.s8 %v4710
      %v4712 = vlaneseq
      %v4713 = vshrl.u32 %v4712, 7
      %v4714 = vsub.s32 %v4711, %v4713
      %v4715 = vrot.slane %v4701, %v4714
      %v4716 = vcombine.low %v4708, %v4715
      %v4717 = vcombine.low %v4359, %v4360
      %v4718 = vcombine.low %v4375, %v4382
      %v4719 = vcombine.low %v4383, %v4398
      %v4720 = vcombine.low %v4405, %v4406
      %v4722 = vunpack.c.l.s4 1966171168
      %v4723 = vunpack.c.0.s8 %v4722
      %v4724 = vlaneseq
      %v4725 = vshrl.u32 %v4724, 7
      %v4726 = vsub.s32 %v4723, %v4725
      %v4727 = vrot.slane %v4717, %v4726
      %v4729 = vunpack.c.l.s4 1966171168
      %v4730 = vunpack.c.0.s8 %v4729
      %v4731 = vlaneseq
      %v4732 = vshrl.u32 %v4731, 7
      %v4733 = vsub.s32 %v4730, %v4732
      %v4734 = vrot.slane %v4718, %v4733
      %v4736 = vunpack.c.l.s4 1966171168
      %v4737 = vunpack.c.0.s8 %v4736
      %v4738 = vlaneseq
      %v4739 = vshrl.u32 %v4738, 7
      %v4740 = vsub.s32 %v4737, %v4739
      %v4741 = vrot.slane %v4719, %v4740
      %v4743 = vunpack.c.l.s4 1966171168
      %v4744 = vunpack.c.0.s8 %v4743
      %v4745 = vlaneseq
      %v4746 = vshrl.u32 %v4745, 7
      %v4747 = vsub.s32 %v4744, %v4746
      %v4748 = vrot.slane %v4720, %v4747
      %v4749 = vcombine.low %v4727, %v4734
      %v4750 = vcombine.low %v4741, %v4748
      %v4752 = vunpack.c.l.s4 1966171168
      %v4753 = vunpack.c.0.s8 %v4752
      %v4754 = vlaneseq
      %v4755 = vshrl.u32 %v4754, 7
      %v4756 = vsub.s32 %v4753, %v4755
      %v4757 = vrot.slane %v4749, %v4756
      %v4759 = vunpack.c.l.s4 1966171168
      %v4760 = vunpack.c.0.s8 %v4759
      %v4761 = vlaneseq
      %v4762 = vshrl.u32 %v4761, 7
      %v4763 = vsub.s32 %v4760, %v4762
      %v4764 = vrot.slane %v4750, %v4763
      %v4765 = vcombine.low %v4757, %v4764
      %v4766 = vcombine.low %v4407, %v4422
      %v4767 = vcombine.low %v4429, %v4430
      %v4768 = vcombine.low %v4445, %v4452
      %v4769 = vcombine.low %v4453, %v4454
      %v4771 = vunpack.c.l.s4 1966171168
      %v4772 = vunpack.c.0.s8 %v4771
      %v4773 = vlaneseq
      %v4774 = vshrl.u32 %v4773, 7
      %v4775 = vsub.s32 %v4772, %v4774
      %v4776 = vrot.slane %v4766, %v4775
      %v4778 = vunpack.c.l.s4 1966171168
      %v4779 = vunpack.c.0.s8 %v4778
      %v4780 = vlaneseq
      %v4781 = vshrl.u32 %v4780, 7
      %v4782 = vsub.s32 %v4779, %v4781
      %v4783 = vrot.slane %v4767, %v4782
      %v4785 = vunpack.c.l.s4 1966171168
      %v4786 = vunpack.c.0.s8 %v4785
      %v4787 = vlaneseq
      %v4788 = vshrl.u32 %v4787, 7
      %v4789 = vsub.s32 %v4786, %v4788
      %v4790 = vrot.slane %v4768, %v4789
      %v4792 = vunpack.c.l.s4 1966171168
      %v4793 = vunpack.c.0.s8 %v4792
      %v4794 = vlaneseq
      %v4795 = vshrl.u32 %v4794, 7
      %v4796 = vsub.s32 %v4793, %v4795
      %v4797 = vrot.slane %v4769, %v4796
      %v4798 = vcombine.low %v4776, %v4783
      %v4799 = vcombine.low %v4790, %v4797
      %v4801 = vunpack.c.l.s4 1966171168
      %v4802 = vunpack.c.0.s8 %v4801
      %v4803 = vlaneseq
      %v4804 = vshrl.u32 %v4803, 7
      %v4805 = vsub.s32 %v4802, %v4804
      %v4806 = vrot.slane %v4798, %v4805
      %v4808 = vunpack.c.l.s4 1966171168
      %v4809 = vunpack.c.0.s8 %v4808
      %v4810 = vlaneseq
      %v4811 = vshrl.u32 %v4810, 7
      %v4812 = vsub.s32 %v4809, %v4811
      %v4813 = vrot.slane %v4799, %v4812
      %v4814 = vcombine.low %v4806, %v4813
      %v4815 = vcombine.low %v4469, %v4476
      %v4816 = vcombine.low %v4477, %v4492
      %v4817 = vcombine.low %v4499, %v4500
      %v4818 = vcombine.low %v4501, %v4516
      %v4820 = vunpack.c.l.s4 1966171168
      %v4821 = vunpack.c.0.s8 %v4820
      %v4822 = vlaneseq
      %v4823 = vshrl.u32 %v4822, 7
      %v4824 = vsub.s32 %v4821, %v4823
      %v4825 = vrot.slane %v4815, %v4824
      %v4827 = vunpack.c.l.s4 1966171168
      %v4828 = vunpack.c.0.s8 %v4827
      %v4829 = vlaneseq
      %v4830 = vshrl.u32 %v4829, 7
      %v4831 = vsub.s32 %v4828, %v4830
      %v4832 = vrot.slane %v4816, %v4831
      %v4834 = vunpack.c.l.s4 1966171168
      %v4835 = vunpack.c.0.s8 %v4834
      %v4836 = vlaneseq
      %v4837 = vshrl.u32 %v4836, 7
      %v4838 = vsub.s32 %v4835, %v4837
      %v4839 = vrot.slane %v4817, %v4838
      %v4841 = vunpack.c.l.s4 1966171168
      %v4842 = vunpack.c.0.s8 %v4841
      %v4843 = vlaneseq
      %v4844 = vshrl.u32 %v4843, 7
      %v4845 = vsub.s32 %v4842, %v4844
      %v4846 = vrot.slane %v4818, %v4845
      %v4847 = vcombine.low %v4825, %v4832
      %v4848 = vcombine.low %v4839, %v4846
      %v4850 = vunpack.c.l.s4 1966171168
      %v4851 = vunpack.c.0.s8 %v4850
      %v4852 = vlaneseq
      %v4853 = vshrl.u32 %v4852, 7
      %v4854 = vsub.s32 %v4851, %v4853
      %v4855 = vrot.slane %v4847, %v4854
      %v4857 = vunpack.c.l.s4 1966171168
      %v4858 = vunpack.c.0.s8 %v4857
      %v4859 = vlaneseq
      %v4860 = vshrl.u32 %v4859, 7
      %v4861 = vsub.s32 %v4858, %v4860
      %v4862 = vrot.slane %v4848, %v4861
      %v4863 = vcombine.low %v4855, %v4862
      %v4864 = vcombine.low %v4523, %v4524
      %v4865 = vcombine.low %v4539, %v4546
      %v4866 = vcombine.low %v4547, %v4548
      %v4867 = vcombine.low %v4563, %v4570
      %v4869 = vunpack.c.l.s4 1966171168
      %v4870 = vunpack.c.0.s8 %v4869
      %v4871 = vlaneseq
      %v4872 = vshrl.u32 %v4871, 7
      %v4873 = vsub.s32 %v4870, %v4872
      %v4874 = vrot.slane %v4864, %v4873
      %v4876 = vunpack.c.l.s4 1966171168
      %v4877 = vunpack.c.0.s8 %v4876
      %v4878 = vlaneseq
      %v4879 = vshrl.u32 %v4878, 7
      %v4880 = vsub.s32 %v4877, %v4879
      %v4881 = vrot.slane %v4865, %v4880
      %v4883 = vunpack.c.l.s4 1966171168
      %v4884 = vunpack.c.0.s8 %v4883
      %v4885 = vlaneseq
      %v4886 = vshrl.u32 %v4885, 7
      %v4887 = vsub.s32 %v4884, %v4886
      %v4888 = vrot.slane %v4866, %v4887
      %v4890 = vunpack.c.l.s4 1966171168
      %v4891 = vunpack.c.0.s8 %v4890
      %v4892 = vlaneseq
      %v4893 = vshrl.u32 %v4892, 7
      %v4894 = vsub.s32 %v4891, %v4893
      %v4895 = vrot.slane %v4867, %v4894
      %v4896 = vcombine.low %v4874, %v4881
      %v4897 = vcombine.low %v4888, %v4895
      %v4899 = vunpack.c.l.s4 1966171168
      %v4900 = vunpack.c.0.s8 %v4899
      %v4901 = vlaneseq
      %v4902 = vshrl.u32 %v4901, 7
      %v4903 = vsub.s32 %v4900, %v4902
      %v4904 = vrot.slane %v4896, %v4903
      %v4906 = vunpack.c.l.s4 1966171168
      %v4907 = vunpack.c.0.s8 %v4906
      %v4908 = vlaneseq
      %v4909 = vshrl.u32 %v4908, 7
      %v4910 = vsub.s32 %v4907, %v4909
      %v4911 = vrot.slane %v4897, %v4910
      %v4912 = vcombine.low %v4904, %v4911
      %v4913 = vcombine.low %v4571, %v4586
      %v4914 = vcombine.low %v4593, %v4594
      %v4915 = vcombine.low %v4595, %v4610
      %v4916 = vcombine.low %v4617, %v4618
      %v4918 = vunpack.c.l.s4 1966171168
      %v4919 = vunpack.c.0.s8 %v4918
      %v4920 = vlaneseq
      %v4921 = vshrl.u32 %v4920, 7
      %v4922 = vsub.s32 %v4919, %v4921
      %v4923 = vrot.slane %v4913, %v4922
      %v4925 = vunpack.c.l.s4 1966171168
      %v4926 = vunpack.c.0.s8 %v4925
      %v4927 = vlaneseq
      %v4928 = vshrl.u32 %v4927, 7
      %v4929 = vsub.s32 %v4926, %v4928
      %v4930 = vrot.slane %v4914, %v4929
      %v4932 = vunpack.c.l.s4 1966171168
      %v4933 = vunpack.c.0.s8 %v4932
      %v4934 = vlaneseq
      %v4935 = vshrl.u32 %v4934, 7
      %v4936 = vsub.s32 %v4933, %v4935
      %v4937 = vrot.slane %v4915, %v4936
      %v4939 = vunpack.c.l.s4 1966171168
      %v4940 = vunpack.c.0.s8 %v4939
      %v4941 = vlaneseq
      %v4942 = vshrl.u32 %v4941, 7
      %v4943 = vsub.s32 %v4940, %v4942
      %v4944 = vrot.slane %v4916, %v4943
      %v4945 = vcombine.low %v4923, %v4930
      %v4946 = vcombine.low %v4937, %v4944
      %v4948 = vunpack.c.l.s4 1966171168
      %v4949 = vunpack.c.0.s8 %v4948
      %v4950 = vlaneseq
      %v4951 = vshrl.u32 %v4950, 7
      %v4952 = vsub.s32 %v4949, %v4951
      %v4953 = vrot.slane %v4945, %v4952
      %v4955 = vunpack.c.l.s4 1966171168
      %v4956 = vunpack.c.0.s8 %v4955
      %v4957 = vlaneseq
      %v4958 = vshrl.u32 %v4957, 7
      %v4959 = vsub.s32 %v4956, %v4958
      %v4960 = vrot.slane %v4946, %v4959
      %v4961 = vcombine.low %v4953, %v4960
      %4962 = vrot.lane.b32.xlu0 %v4667, 24
      %v4963 = vpop.permute.xlu0 %4962
      %4964 = vrot.lane.b32.xlu0 %v4716, 24
      %v4965 = vpop.permute.xlu0 %4964
      %4966 = vrot.lane.b32.xlu0 %v4765, 24
      %v4967 = vpop.permute.xlu0 %4966
      %4968 = vrot.lane.b32.xlu0 %v4814, 24
      %v4969 = vpop.permute.xlu0 %4968
      %4970 = vrot.lane.b32.xlu0 %v4863, 24
      %v4971 = vpop.permute.xlu0 %4970
      %4972 = vrot.lane.b32.xlu0 %v4912, 24
      %v4973 = vpop.permute.xlu0 %4972
      %4974 = vrot.lane.b32.xlu0 %v4961, 24
      %v4975 = vpop.permute.xlu0 %4974
      %vm4983 = vcmask 228544
      %4984 = vst.msk [vmem:[#allocation2] sm:$0xff] %vm4983, %v4963
      %4985 = vst.msk [vmem:[#allocation2 + $0x8] sm:$0xff] %vm4983, %v4965
      %4986 = vst.msk [vmem:[#allocation2 + $0x10] sm:$0xff] %vm4983, %v4967
      %4987 = vst.msk [vmem:[#allocation2 + $0x18] sm:$0xff] %vm4983, %v4969
      %4988 = vst.msk [vmem:[#allocation2 + $0x20] sm:$0xff] %vm4983, %v4971
      %4989 = vst.msk [vmem:[#allocation2 + $0x28] sm:$0xff] %vm4983, %v4973
      %4990 = vst.msk [vmem:[#allocation2 + $0x30] sm:$0xff] %vm4983, %v4975
      %v4991 = vcombine.high %v4288, %v4288
      %v4992 = vcombine.high %v4335, %v4335
      %v4993 = vcombine.high %v4382, %v4382
      %v4994 = vcombine.high %v4429, %v4429
      %v4995 = vcombine.high %v4476, %v4476
      %v4996 = vcombine.high %v4523, %v4523
      %v4997 = vcombine.high %v4570, %v4570
      %v4998 = vcombine.high %v4617, %v4617
      %v5000 = vshrl.u32 %v4257, 16
      %v5002 = vrot.slane %v5000, 7
      %v5003 = vrot.slane %v5002, 1
      %v5005 = vshll.u32 %v4264, 16
      %v5007 = vsel %vm1014, %v5003, %v5005
      %v5008 = vshrl.u32 %v4264, 16
      %v5010 = vrot.slane %v5008, 7
      %v5011 = vrot.slane %v5010, 1
      %v5013 = vshll.u32 %v4265, 16
      %v5015 = vsel %vm1014, %v5011, %v5013
      %v5016 = vshrl.u32 %v4265, 16
      %v5018 = vrot.slane %v5016, 7
      %v5019 = vrot.slane %v5018, 1
      %v5021 = vshll.u32 %v4266, 16
      %v5023 = vsel %vm1014, %v5019, %v5021
      %v5024 = vshrl.u32 %v4266, 16
      %v5026 = vrot.slane %v5024, 7
      %v5027 = vrot.slane %v5026, 1
      %v5029 = vshll.u32 %v4281, 16
      %v5031 = vsel %vm1014, %v5027, %v5029
      %v5032 = vshrl.u32 %v4281, 16
      %v5034 = vrot.slane %v5032, 7
      %v5035 = vrot.slane %v5034, 1
      %v5037 = vshll.u32 %v4288, 16
      %v5039 = vsel %vm1014, %v5035, %v5037
      %v5040 = vshrl.u32 %v4288, 16
      %v5042 = vrot.slane %v5040, 7
      %v5043 = vrot.slane %v5042, 1
      %v5045 = vshll.u32 %v4289, 16
      %v5047 = vsel %vm1014, %v5043, %v5045
      %v5048 = vshrl.u32 %v4289, 16
      %v5050 = vrot.slane %v5048, 7
      %v5051 = vrot.slane %v5050, 1
      %v5053 = vshll.u32 %v4991, 16
      %v5055 = vsel %vm1014, %v5051, %v5053
      %v5057 = vshrl.u32 %v4304, 16
      %v5059 = vrot.slane %v5057, 7
      %v5060 = vrot.slane %v5059, 1
      %v5062 = vshll.u32 %v4311, 16
      %v5064 = vsel %vm1014, %v5060, %v5062
      %v5065 = vshrl.u32 %v4311, 16
      %v5067 = vrot.slane %v5065, 7
      %v5068 = vrot.slane %v5067, 1
      %v5070 = vshll.u32 %v4312, 16
      %v5072 = vsel %vm1014, %v5068, %v5070
      %v5073 = vshrl.u32 %v4312, 16
      %v5075 = vrot.slane %v5073, 7
      %v5076 = vrot.slane %v5075, 1
      %v5078 = vshll.u32 %v4313, 16
      %v5080 = vsel %vm1014, %v5076, %v5078
      %v5081 = vshrl.u32 %v4313, 16
      %v5083 = vrot.slane %v5081, 7
      %v5084 = vrot.slane %v5083, 1
      %v5086 = vshll.u32 %v4328, 16
      %v5088 = vsel %vm1014, %v5084, %v5086
      %v5089 = vshrl.u32 %v4328, 16
      %v5091 = vrot.slane %v5089, 7
      %v5092 = vrot.slane %v5091, 1
      %v5094 = vshll.u32 %v4335, 16
      %v5096 = vsel %vm1014, %v5092, %v5094
      %v5097 = vshrl.u32 %v4335, 16
      %v5099 = vrot.slane %v5097, 7
      %v5100 = vrot.slane %v5099, 1
      %v5102 = vshll.u32 %v4336, 16
      %v5104 = vsel %vm1014, %v5100, %v5102
      %v5105 = vshrl.u32 %v4336, 16
      %v5107 = vrot.slane %v5105, 7
      %v5108 = vrot.slane %v5107, 1
      %v5110 = vshll.u32 %v4992, 16
      %v5112 = vsel %vm1014, %v5108, %v5110
      %v5114 = vshrl.u32 %v4351, 16
      %v5116 = vrot.slane %v5114, 7
      %v5117 = vrot.slane %v5116, 1
      %v5119 = vshll.u32 %v4358, 16
      %v5121 = vsel %vm1014, %v5117, %v5119
      %v5122 = vshrl.u32 %v4358, 16
      %v5124 = vrot.slane %v5122, 7
      %v5125 = vrot.slane %v5124, 1
      %v5127 = vshll.u32 %v4359, 16
      %v5129 = vsel %vm1014, %v5125, %v5127
      %v5130 = vshrl.u32 %v4359, 16
      %v5132 = vrot.slane %v5130, 7
      %v5133 = vrot.slane %v5132, 1
      %v5135 = vshll.u32 %v4360, 16
      %v5137 = vsel %vm1014, %v5133, %v5135
      %v5138 = vshrl.u32 %v4360, 16
      %v5140 = vrot.slane %v5138, 7
      %v5141 = vrot.slane %v5140, 1
      %v5143 = vshll.u32 %v4375, 16
      %v5145 = vsel %vm1014, %v5141, %v5143
      %v5146 = vshrl.u32 %v4375, 16
      %v5148 = vrot.slane %v5146, 7
      %v5149 = vrot.slane %v5148, 1
      %v5151 = vshll.u32 %v4382, 16
      %v5153 = vsel %vm1014, %v5149, %v5151
      %v5154 = vshrl.u32 %v4382, 16
      %v5156 = vrot.slane %v5154, 7
      %v5157 = vrot.slane %v5156, 1
      %v5159 = vshll.u32 %v4383, 16
      %v5161 = vsel %vm1014, %v5157, %v5159
      %v5162 = vshrl.u32 %v4383, 16
      %v5164 = vrot.slane %v5162, 7
      %v5165 = vrot.slane %v5164, 1
      %v5167 = vshll.u32 %v4993, 16
      %v5169 = vsel %vm1014, %v5165, %v5167
      %v5171 = vshrl.u32 %v4398, 16
      %v5173 = vrot.slane %v5171, 7
      %v5174 = vrot.slane %v5173, 1
      %v5176 = vshll.u32 %v4405, 16
      %v5178 = vsel %vm1014, %v5174, %v5176
      %v5179 = vshrl.u32 %v4405, 16
      %v5181 = vrot.slane %v5179, 7
      %v5182 = vrot.slane %v5181, 1
      %v5184 = vshll.u32 %v4406, 16
      %v5186 = vsel %vm1014, %v5182, %v5184
      %v5187 = vshrl.u32 %v4406, 16
      %v5189 = vrot.slane %v5187, 7
      %v5190 = vrot.slane %v5189, 1
      %v5192 = vshll.u32 %v4407, 16
      %v5194 = vsel %vm1014, %v5190, %v5192
      %v5195 = vshrl.u32 %v4407, 16
      %v5197 = vrot.slane %v5195, 7
      %v5198 = vrot.slane %v5197, 1
      %v5200 = vshll.u32 %v4422, 16
      %v5202 = vsel %vm1014, %v5198, %v5200
      %v5203 = vshrl.u32 %v4422, 16
      %v5205 = vrot.slane %v5203, 7
      %v5206 = vrot.slane %v5205, 1
      %v5208 = vshll.u32 %v4429, 16
      %v5210 = vsel %vm1014, %v5206, %v5208
      %v5211 = vshrl.u32 %v4429, 16
      %v5213 = vrot.slane %v5211, 7
      %v5214 = vrot.slane %v5213, 1
      %v5216 = vshll.u32 %v4430, 16
      %v5218 = vsel %vm1014, %v5214, %v5216
      %v5219 = vshrl.u32 %v4430, 16
      %v5221 = vrot.slane %v5219, 7
      %v5222 = vrot.slane %v5221, 1
      %v5224 = vshll.u32 %v4994, 16
      %v5226 = vsel %vm1014, %v5222, %v5224
      %v5228 = vshrl.u32 %v4445, 16
      %v5230 = vrot.slane %v5228, 7
      %v5231 = vrot.slane %v5230, 1
      %v5233 = vshll.u32 %v4452, 16
      %v5235 = vsel %vm1014, %v5231, %v5233
      %v5236 = vshrl.u32 %v4452, 16
      %v5238 = vrot.slane %v5236, 7
      %v5239 = vrot.slane %v5238, 1
      %v5241 = vshll.u32 %v4453, 16
      %v5243 = vsel %vm1014, %v5239, %v5241
      %v5244 = vshrl.u32 %v4453, 16
      %v5246 = vrot.slane %v5244, 7
      %v5247 = vrot.slane %v5246, 1
      %v5249 = vshll.u32 %v4454, 16
      %v5251 = vsel %vm1014, %v5247, %v5249
      %v5252 = vshrl.u32 %v4454, 16
      %v5254 = vrot.slane %v5252, 7
      %v5255 = vrot.slane %v5254, 1
      %v5257 = vshll.u32 %v4469, 16
      %v5259 = vsel %vm1014, %v5255, %v5257
      %v5260 = vshrl.u32 %v4469, 16
      %v5262 = vrot.slane %v5260, 7
      %v5263 = vrot.slane %v5262, 1
      %v5265 = vshll.u32 %v4476, 16
      %v5267 = vsel %vm1014, %v5263, %v5265
      %v5268 = vshrl.u32 %v4476, 16
      %v5270 = vrot.slane %v5268, 7
      %v5271 = vrot.slane %v5270, 1
      %v5273 = vshll.u32 %v4477, 16
      %v5275 = vsel %vm1014, %v5271, %v5273
      %v5276 = vshrl.u32 %v4477, 16
      %v5278 = vrot.slane %v5276, 7
      %v5279 = vrot.slane %v5278, 1
      %v5281 = vshll.u32 %v4995, 16
      %v5283 = vsel %vm1014, %v5279, %v5281
      %v5285 = vshrl.u32 %v4492, 16
      %v5287 = vrot.slane %v5285, 7
      %v5288 = vrot.slane %v5287, 1
      %v5290 = vshll.u32 %v4499, 16
      %v5292 = vsel %vm1014, %v5288, %v5290
      %v5293 = vshrl.u32 %v4499, 16
      %v5295 = vrot.slane %v5293, 7
      %v5296 = vrot.slane %v5295, 1
      %v5298 = vshll.u32 %v4500, 16
      %v5300 = vsel %vm1014, %v5296, %v5298
      %v5301 = vshrl.u32 %v4500, 16
      %v5303 = vrot.slane %v5301, 7
      %v5304 = vrot.slane %v5303, 1
      %v5306 = vshll.u32 %v4501, 16
      %v5308 = vsel %vm1014, %v5304, %v5306
      %v5309 = vshrl.u32 %v4501, 16
      %v5311 = vrot.slane %v5309, 7
      %v5312 = vrot.slane %v5311, 1
      %v5314 = vshll.u32 %v4516, 16
      %v5316 = vsel %vm1014, %v5312, %v5314
      %v5317 = vshrl.u32 %v4516, 16
      %v5319 = vrot.slane %v5317, 7
      %v5320 = vrot.slane %v5319, 1
      %v5322 = vshll.u32 %v4523, 16
      %v5324 = vsel %vm1014, %v5320, %v5322
      %v5325 = vshrl.u32 %v4523, 16
      %v5327 = vrot.slane %v5325, 7
      %v5328 = vrot.slane %v5327, 1
      %v5330 = vshll.u32 %v4524, 16
      %v5332 = vsel %vm1014, %v5328, %v5330
      %v5333 = vshrl.u32 %v4524, 16
      %v5335 = vrot.slane %v5333, 7
      %v5336 = vrot.slane %v5335, 1
      %v5338 = vshll.u32 %v4996, 16
      %v5340 = vsel %vm1014, %v5336, %v5338
      %v5342 = vshrl.u32 %v4539, 16
      %v5344 = vrot.slane %v5342, 7
      %v5345 = vrot.slane %v5344, 1
      %v5347 = vshll.u32 %v4546, 16
      %v5349 = vsel %vm1014, %v5345, %v5347
      %v5350 = vshrl.u32 %v4546, 16
      %v5352 = vrot.slane %v5350, 7
      %v5353 = vrot.slane %v5352, 1
      %v5355 = vshll.u32 %v4547, 16
      %v5357 = vsel %vm1014, %v5353, %v5355
      %v5358 = vshrl.u32 %v4547, 16
      %v5360 = vrot.slane %v5358, 7
      %v5361 = vrot.slane %v5360, 1
      %v5363 = vshll.u32 %v4548, 16
      %v5365 = vsel %vm1014, %v5361, %v5363
      %v5366 = vshrl.u32 %v4548, 16
      %v5368 = vrot.slane %v5366, 7
      %v5369 = vrot.slane %v5368, 1
      %v5371 = vshll.u32 %v4563, 16
      %v5373 = vsel %vm1014, %v5369, %v5371
      %v5374 = vshrl.u32 %v4563, 16
      %v5376 = vrot.slane %v5374, 7
      %v5377 = vrot.slane %v5376, 1
      %v5379 = vshll.u32 %v4570, 16
      %v5381 = vsel %vm1014, %v5377, %v5379
      %v5382 = vshrl.u32 %v4570, 16
      %v5384 = vrot.slane %v5382, 7
      %v5385 = vrot.slane %v5384, 1
      %v5387 = vshll.u32 %v4571, 16
      %v5389 = vsel %vm1014, %v5385, %v5387
      %v5390 = vshrl.u32 %v4571, 16
      %v5392 = vrot.slane %v5390, 7
      %v5393 = vrot.slane %v5392, 1
      %v5395 = vshll.u32 %v4997, 16
      %v5397 = vsel %vm1014, %v5393, %v5395
      %v5399 = vshrl.u32 %v4586, 16
      %v5401 = vrot.slane %v5399, 7
      %v5402 = vrot.slane %v5401, 1
      %v5404 = vshll.u32 %v4593, 16
      %v5406 = vsel %vm1014, %v5402, %v5404
      %v5407 = vshrl.u32 %v4593, 16
      %v5409 = vrot.slane %v5407, 7
      %v5410 = vrot.slane %v5409, 1
      %v5412 = vshll.u32 %v4594, 16
      %v5414 = vsel %vm1014, %v5410, %v5412
      %v5415 = vshrl.u32 %v4594, 16
      %v5417 = vrot.slane %v5415, 7
      %v5418 = vrot.slane %v5417, 1
      %v5420 = vshll.u32 %v4595, 16
      %v5422 = vsel %vm1014, %v5418, %v5420
      %v5423 = vshrl.u32 %v4595, 16
      %v5425 = vrot.slane %v5423, 7
      %v5426 = vrot.slane %v5425, 1
      %v5428 = vshll.u32 %v4610, 16
      %v5430 = vsel %vm1014, %v5426, %v5428
      %v5431 = vshrl.u32 %v4610, 16
      %v5433 = vrot.slane %v5431, 7
      %v5434 = vrot.slane %v5433, 1
      %v5436 = vshll.u32 %v4617, 16
      %v5438 = vsel %vm1014, %v5434, %v5436
      %v5439 = vshrl.u32 %v4617, 16
      %v5441 = vrot.slane %v5439, 7
      %v5442 = vrot.slane %v5441, 1
      %v5444 = vshll.u32 %v4618, 16
      %v5446 = vsel %vm1014, %v5442, %v5444
      %v5447 = vshrl.u32 %v4618, 16
      %v5449 = vrot.slane %v5447, 7
      %v5450 = vrot.slane %v5449, 1
      %v5452 = vshll.u32 %v4998, 16
      %v5454 = vsel %vm1014, %v5450, %v5452
      %v5455 = vcombine.low %v5007, %v5015
      %v5456 = vcombine.low %v5023, %v5031
      %v5457 = vcombine.low %v5039, %v5047
      %v5458 = vcombine.low %v5055, %v5064
      %v5460 = vunpack.c.l.s4 1966171168
      %v5461 = vunpack.c.0.s8 %v5460
      %v5462 = vlaneseq
      %v5463 = vshrl.u32 %v5462, 7
      %v5464 = vsub.s32 %v5461, %v5463
      %v5465 = vrot.slane %v5455, %v5464
      %v5467 = vunpack.c.l.s4 1966171168
      %v5468 = vunpack.c.0.s8 %v5467
      %v5469 = vlaneseq
      %v5470 = vshrl.u32 %v5469, 7
      %v5471 = vsub.s32 %v5468, %v5470
      %v5472 = vrot.slane %v5456, %v5471
      %v5474 = vunpack.c.l.s4 1966171168
      %v5475 = vunpack.c.0.s8 %v5474
      %v5476 = vlaneseq
      %v5477 = vshrl.u32 %v5476, 7
      %v5478 = vsub.s32 %v5475, %v5477
      %v5479 = vrot.slane %v5457, %v5478
      %v5481 = vunpack.c.l.s4 1966171168
      %v5482 = vunpack.c.0.s8 %v5481
      %v5483 = vlaneseq
      %v5484 = vshrl.u32 %v5483, 7
      %v5485 = vsub.s32 %v5482, %v5484
      %v5486 = vrot.slane %v5458, %v5485
      %v5487 = vcombine.low %v5465, %v5472
      %v5488 = vcombine.low %v5479, %v5486
      %v5490 = vunpack.c.l.s4 1966171168
      %v5491 = vunpack.c.0.s8 %v5490
      %v5492 = vlaneseq
      %v5493 = vshrl.u32 %v5492, 7
      %v5494 = vsub.s32 %v5491, %v5493
      %v5495 = vrot.slane %v5487, %v5494
      %v5497 = vunpack.c.l.s4 1966171168
      %v5498 = vunpack.c.0.s8 %v5497
      %v5499 = vlaneseq
      %v5500 = vshrl.u32 %v5499, 7
      %v5501 = vsub.s32 %v5498, %v5500
      %v5502 = vrot.slane %v5488, %v5501
      %v5503 = vcombine.low %v5495, %v5502
      %v5504 = vcombine.low %v5072, %v5080
      %v5505 = vcombine.low %v5088, %v5096
      %v5506 = vcombine.low %v5104, %v5112
      %v5507 = vcombine.low %v5121, %v5129
      %v5509 = vunpack.c.l.s4 1966171168
      %v5510 = vunpack.c.0.s8 %v5509
      %v5511 = vlaneseq
      %v5512 = vshrl.u32 %v5511, 7
      %v5513 = vsub.s32 %v5510, %v5512
      %v5514 = vrot.slane %v5504, %v5513
      %v5516 = vunpack.c.l.s4 1966171168
      %v5517 = vunpack.c.0.s8 %v5516
      %v5518 = vlaneseq
      %v5519 = vshrl.u32 %v5518, 7
      %v5520 = vsub.s32 %v5517, %v5519
      %v5521 = vrot.slane %v5505, %v5520
      %v5523 = vunpack.c.l.s4 1966171168
      %v5524 = vunpack.c.0.s8 %v5523
      %v5525 = vlaneseq
      %v5526 = vshrl.u32 %v5525, 7
      %v5527 = vsub.s32 %v5524, %v5526
      %v5528 = vrot.slane %v5506, %v5527
      %v5530 = vunpack.c.l.s4 1966171168
      %v5531 = vunpack.c.0.s8 %v5530
      %v5532 = vlaneseq
      %v5533 = vshrl.u32 %v5532, 7
      %v5534 = vsub.s32 %v5531, %v5533
      %v5535 = vrot.slane %v5507, %v5534
      %v5536 = vcombine.low %v5514, %v5521
      %v5537 = vcombine.low %v5528, %v5535
      %v5539 = vunpack.c.l.s4 1966171168
      %v5540 = vunpack.c.0.s8 %v5539
      %v5541 = vlaneseq
      %v5542 = vshrl.u32 %v5541, 7
      %v5543 = vsub.s32 %v5540, %v5542
      %v5544 = vrot.slane %v5536, %v5543
      %v5546 = vunpack.c.l.s4 1966171168
      %v5547 = vunpack.c.0.s8 %v5546
      %v5548 = vlaneseq
      %v5549 = vshrl.u32 %v5548, 7
      %v5550 = vsub.s32 %v5547, %v5549
      %v5551 = vrot.slane %v5537, %v5550
      %v5552 = vcombine.low %v5544, %v5551
      %v5553 = vcombine.low %v5137, %v5145
      %v5554 = vcombine.low %v5153, %v5161
      %v5555 = vcombine.low %v5169, %v5178
      %v5556 = vcombine.low %v5186, %v5194
      %v5558 = vunpack.c.l.s4 1966171168
      %v5559 = vunpack.c.0.s8 %v5558
      %v5560 = vlaneseq
      %v5561 = vshrl.u32 %v5560, 7
      %v5562 = vsub.s32 %v5559, %v5561
      %v5563 = vrot.slane %v5553, %v5562
      %v5565 = vunpack.c.l.s4 1966171168
      %v5566 = vunpack.c.0.s8 %v5565
      %v5567 = vlaneseq
      %v5568 = vshrl.u32 %v5567, 7
      %v5569 = vsub.s32 %v5566, %v5568
      %v5570 = vrot.slane %v5554, %v5569
      %v5572 = vunpack.c.l.s4 1966171168
      %v5573 = vunpack.c.0.s8 %v5572
      %v5574 = vlaneseq
      %v5575 = vshrl.u32 %v5574, 7
      %v5576 = vsub.s32 %v5573, %v5575
      %v5577 = vrot.slane %v5555, %v5576
      %v5579 = vunpack.c.l.s4 1966171168
      %v5580 = vunpack.c.0.s8 %v5579
      %v5581 = vlaneseq
      %v5582 = vshrl.u32 %v5581, 7
      %v5583 = vsub.s32 %v5580, %v5582
      %v5584 = vrot.slane %v5556, %v5583
      %v5585 = vcombine.low %v5563, %v5570
      %v5586 = vcombine.low %v5577, %v5584
      %v5588 = vunpack.c.l.s4 1966171168
      %v5589 = vunpack.c.0.s8 %v5588
      %v5590 = vlaneseq
      %v5591 = vshrl.u32 %v5590, 7
      %v5592 = vsub.s32 %v5589, %v5591
      %v5593 = vrot.slane %v5585, %v5592
      %v5595 = vunpack.c.l.s4 1966171168
      %v5596 = vunpack.c.0.s8 %v5595
      %v5597 = vlaneseq
      %v5598 = vshrl.u32 %v5597, 7
      %v5599 = vsub.s32 %v5596, %v5598
      %v5600 = vrot.slane %v5586, %v5599
      %v5601 = vcombine.low %v5593, %v5600
      %v5602 = vcombine.low %v5202, %v5210
      %v5603 = vcombine.low %v5218, %v5226
      %v5604 = vcombine.low %v5235, %v5243
      %v5605 = vcombine.low %v5251, %v5259
      %v5607 = vunpack.c.l.s4 1966171168
      %v5608 = vunpack.c.0.s8 %v5607
      %v5609 = vlaneseq
      %v5610 = vshrl.u32 %v5609, 7
      %v5611 = vsub.s32 %v5608, %v5610
      %v5612 = vrot.slane %v5602, %v5611
      %v5614 = vunpack.c.l.s4 1966171168
      %v5615 = vunpack.c.0.s8 %v5614
      %v5616 = vlaneseq
      %v5617 = vshrl.u32 %v5616, 7
      %v5618 = vsub.s32 %v5615, %v5617
      %v5619 = vrot.slane %v5603, %v5618
      %v5621 = vunpack.c.l.s4 1966171168
      %v5622 = vunpack.c.0.s8 %v5621
      %v5623 = vlaneseq
      %v5624 = vshrl.u32 %v5623, 7
      %v5625 = vsub.s32 %v5622, %v5624
      %v5626 = vrot.slane %v5604, %v5625
      %v5628 = vunpack.c.l.s4 1966171168
      %v5629 = vunpack.c.0.s8 %v5628
      %v5630 = vlaneseq
      %v5631 = vshrl.u32 %v5630, 7
      %v5632 = vsub.s32 %v5629, %v5631
      %v5633 = vrot.slane %v5605, %v5632
      %v5634 = vcombine.low %v5612, %v5619
      %v5635 = vcombine.low %v5626, %v5633
      %v5637 = vunpack.c.l.s4 1966171168
      %v5638 = vunpack.c.0.s8 %v5637
      %v5639 = vlaneseq
      %v5640 = vshrl.u32 %v5639, 7
      %v5641 = vsub.s32 %v5638, %v5640
      %v5642 = vrot.slane %v5634, %v5641
      %v5644 = vunpack.c.l.s4 1966171168
      %v5645 = vunpack.c.0.s8 %v5644
      %v5646 = vlaneseq
      %v5647 = vshrl.u32 %v5646, 7
      %v5648 = vsub.s32 %v5645, %v5647
      %v5649 = vrot.slane %v5635, %v5648
      %v5650 = vcombine.low %v5642, %v5649
      %v5651 = vcombine.low %v5267, %v5275
      %v5652 = vcombine.low %v5283, %v5292
      %v5653 = vcombine.low %v5300, %v5308
      %v5654 = vcombine.low %v5316, %v5324
      %v5656 = vunpack.c.l.s4 1966171168
      %v5657 = vunpack.c.0.s8 %v5656
      %v5658 = vlaneseq
      %v5659 = vshrl.u32 %v5658, 7
      %v5660 = vsub.s32 %v5657, %v5659
      %v5661 = vrot.slane %v5651, %v5660
      %v5663 = vunpack.c.l.s4 1966171168
      %v5664 = vunpack.c.0.s8 %v5663
      %v5665 = vlaneseq
      %v5666 = vshrl.u32 %v5665, 7
      %v5667 = vsub.s32 %v5664, %v5666
      %v5668 = vrot.slane %v5652, %v5667
      %v5670 = vunpack.c.l.s4 1966171168
      %v5671 = vunpack.c.0.s8 %v5670
      %v5672 = vlaneseq
      %v5673 = vshrl.u32 %v5672, 7
      %v5674 = vsub.s32 %v5671, %v5673
      %v5675 = vrot.slane %v5653, %v5674
      %v5677 = vunpack.c.l.s4 1966171168
      %v5678 = vunpack.c.0.s8 %v5677
      %v5679 = vlaneseq
      %v5680 = vshrl.u32 %v5679, 7
      %v5681 = vsub.s32 %v5678, %v5680
      %v5682 = vrot.slane %v5654, %v5681
      %v5683 = vcombine.low %v5661, %v5668
      %v5684 = vcombine.low %v5675, %v5682
      %v5686 = vunpack.c.l.s4 1966171168
      %v5687 = vunpack.c.0.s8 %v5686
      %v5688 = vlaneseq
      %v5689 = vshrl.u32 %v5688, 7
      %v5690 = vsub.s32 %v5687, %v5689
      %v5691 = vrot.slane %v5683, %v5690
      %v5693 = vunpack.c.l.s4 1966171168
      %v5694 = vunpack.c.0.s8 %v5693
      %v5695 = vlaneseq
      %v5696 = vshrl.u32 %v5695, 7
      %v5697 = vsub.s32 %v5694, %v5696
      %v5698 = vrot.slane %v5684, %v5697
      %v5699 = vcombine.low %v5691, %v5698
      %v5700 = vcombine.low %v5332, %v5340
      %v5701 = vcombine.low %v5349, %v5357
      %v5702 = vcombine.low %v5365, %v5373
      %v5703 = vcombine.low %v5381, %v5389
      %v5705 = vunpack.c.l.s4 1966171168
      %v5706 = vunpack.c.0.s8 %v5705
      %v5707 = vlaneseq
      %v5708 = vshrl.u32 %v5707, 7
      %v5709 = vsub.s32 %v5706, %v5708
      %v5710 = vrot.slane %v5700, %v5709
      %v5712 = vunpack.c.l.s4 1966171168
      %v5713 = vunpack.c.0.s8 %v5712
      %v5714 = vlaneseq
      %v5715 = vshrl.u32 %v5714, 7
      %v5716 = vsub.s32 %v5713, %v5715
      %v5717 = vrot.slane %v5701, %v5716
      %v5719 = vunpack.c.l.s4 1966171168
      %v5720 = vunpack.c.0.s8 %v5719
      %v5721 = vlaneseq
      %v5722 = vshrl.u32 %v5721, 7
      %v5723 = vsub.s32 %v5720, %v5722
      %v5724 = vrot.slane %v5702, %v5723
      %v5726 = vunpack.c.l.s4 1966171168
      %v5727 = vunpack.c.0.s8 %v5726
      %v5728 = vlaneseq
      %v5729 = vshrl.u32 %v5728, 7
      %v5730 = vsub.s32 %v5727, %v5729
      %v5731 = vrot.slane %v5703, %v5730
      %v5732 = vcombine.low %v5710, %v5717
      %v5733 = vcombine.low %v5724, %v5731
      %v5735 = vunpack.c.l.s4 1966171168
      %v5736 = vunpack.c.0.s8 %v5735
      %v5737 = vlaneseq
      %v5738 = vshrl.u32 %v5737, 7
      %v5739 = vsub.s32 %v5736, %v5738
      %v5740 = vrot.slane %v5732, %v5739
      %v5742 = vunpack.c.l.s4 1966171168
      %v5743 = vunpack.c.0.s8 %v5742
      %v5744 = vlaneseq
      %v5745 = vshrl.u32 %v5744, 7
      %v5746 = vsub.s32 %v5743, %v5745
      %v5747 = vrot.slane %v5733, %v5746
      %v5748 = vcombine.low %v5740, %v5747
      %v5749 = vcombine.low %v5397, %v5406
      %v5750 = vcombine.low %v5414, %v5422
      %v5751 = vcombine.low %v5430, %v5438
      %v5752 = vcombine.low %v5446, %v5454
      %v5754 = vunpack.c.l.s4 1966171168
      %v5755 = vunpack.c.0.s8 %v5754
      %v5756 = vlaneseq
      %v5757 = vshrl.u32 %v5756, 7
      %v5758 = vsub.s32 %v5755, %v5757
      %v5759 = vrot.slane %v5749, %v5758
      %v5761 = vunpack.c.l.s4 1966171168
      %v5762 = vunpack.c.0.s8 %v5761
      %v5763 = vlaneseq
      %v5764 = vshrl.u32 %v5763, 7
      %v5765 = vsub.s32 %v5762, %v5764
      %v5766 = vrot.slane %v5750, %v5765
      %v5768 = vunpack.c.l.s4 1966171168
      %v5769 = vunpack.c.0.s8 %v5768
      %v5770 = vlaneseq
      %v5771 = vshrl.u32 %v5770, 7
      %v5772 = vsub.s32 %v5769, %v5771
      %v5773 = vrot.slane %v5751, %v5772
      %v5775 = vunpack.c.l.s4 1966171168
      %v5776 = vunpack.c.0.s8 %v5775
      %v5777 = vlaneseq
      %v5778 = vshrl.u32 %v5777, 7
      %v5779 = vsub.s32 %v5776, %v5778
      %v5780 = vrot.slane %v5752, %v5779
      %v5781 = vcombine.low %v5759, %v5766
      %v5782 = vcombine.low %v5773, %v5780
      %v5784 = vunpack.c.l.s4 1966171168
      %v5785 = vunpack.c.0.s8 %v5784
      %v5786 = vlaneseq
      %v5787 = vshrl.u32 %v5786, 7
      %v5788 = vsub.s32 %v5785, %v5787
      %v5789 = vrot.slane %v5781, %v5788
      %v5791 = vunpack.c.l.s4 1966171168
      %v5792 = vunpack.c.0.s8 %v5791
      %v5793 = vlaneseq
      %v5794 = vshrl.u32 %v5793, 7
      %v5795 = vsub.s32 %v5792, %v5794
      %v5796 = vrot.slane %v5782, %v5795
      %v5797 = vcombine.low %v5789, %v5796
      %5798 = vrot.lane.b32.xlu0 %v5503, 28
      %v5799 = vpop.permute.xlu0 %5798
      %5800 = vrot.lane.b32.xlu0 %v5552, 28
      %v5801 = vpop.permute.xlu0 %5800
      %5802 = vrot.lane.b32.xlu0 %v5601, 28
      %v5803 = vpop.permute.xlu0 %5802
      %5804 = vrot.lane.b32.xlu0 %v5650, 28
      %v5805 = vpop.permute.xlu0 %5804
      %5806 = vrot.lane.b32.xlu0 %v5699, 28
      %v5807 = vpop.permute.xlu0 %5806
      %5808 = vrot.lane.b32.xlu0 %v5748, 28
      %v5809 = vpop.permute.xlu0 %5808
      %5810 = vrot.lane.b32.xlu0 %v5797, 28
      %v5811 = vpop.permute.xlu0 %5810
      %vm5819 = vcmask 261344
      %5820 = vst.msk [vmem:[#allocation2] sm:$0xff] %vm5819, %v5799
      %5821 = vst.msk [vmem:[#allocation2 + $0x8] sm:$0xff] %vm5819, %v5801
      %5822 = vst.msk [vmem:[#allocation2 + $0x10] sm:$0xff] %vm5819, %v5803
      %5823 = vst.msk [vmem:[#allocation2 + $0x18] sm:$0xff] %vm5819, %v5805
      %5824 = vst.msk [vmem:[#allocation2 + $0x20] sm:$0xff] %vm5819, %v5807
      %5825 = vst.msk [vmem:[#allocation2 + $0x28] sm:$0xff] %vm5819, %v5809
      %5826 = vst.msk [vmem:[#allocation2 + $0x30] sm:$0xff] %vm5819, %v5811
      %v5827 = vcombine.low %v4264, %v4265
      %v5828 = vcombine.low %v4266, %v4281
      %v5829 = vcombine.low %v4288, %v4289
      %v5830 = vcombine.low %v4991, %v4311
      %v5832 = vunpack.c.l.s4 1966171168
      %v5833 = vunpack.c.0.s8 %v5832
      %v5834 = vlaneseq
      %v5835 = vshrl.u32 %v5834, 7
      %v5836 = vsub.s32 %v5833, %v5835
      %v5837 = vrot.slane %v5827, %v5836
      %v5839 = vunpack.c.l.s4 1966171168
      %v5840 = vunpack.c.0.s8 %v5839
      %v5841 = vlaneseq
      %v5842 = vshrl.u32 %v5841, 7
      %v5843 = vsub.s32 %v5840, %v5842
      %v5844 = vrot.slane %v5828, %v5843
      %v5846 = vunpack.c.l.s4 1966171168
      %v5847 = vunpack.c.0.s8 %v5846
      %v5848 = vlaneseq
      %v5849 = vshrl.u32 %v5848, 7
      %v5850 = vsub.s32 %v5847, %v5849
      %v5851 = vrot.slane %v5829, %v5850
      %v5853 = vunpack.c.l.s4 1966171168
      %v5854 = vunpack.c.0.s8 %v5853
      %v5855 = vlaneseq
      %v5856 = vshrl.u32 %v5855, 7
      %v5857 = vsub.s32 %v5854, %v5856
      %v5858 = vrot.slane %v5830, %v5857
      %v5859 = vcombine.low %v5837, %v5844
      %v5860 = vcombine.low %v5851, %v5858
      %v5862 = vunpack.c.l.s4 1966171168
      %v5863 = vunpack.c.0.s8 %v5862
      %v5864 = vlaneseq
      %v5865 = vshrl.u32 %v5864, 7
      %v5866 = vsub.s32 %v5863, %v5865
      %v5867 = vrot.slane %v5859, %v5866
      %v5869 = vunpack.c.l.s4 1966171168
      %v5870 = vunpack.c.0.s8 %v5869
      %v5871 = vlaneseq
      %v5872 = vshrl.u32 %v5871, 7
      %v5873 = vsub.s32 %v5870, %v5872
      %v5874 = vrot.slane %v5860, %v5873
      %v5875 = vcombine.low %v5867, %v5874
      %v5876 = vcombine.low %v4312, %v4313
      %v5877 = vcombine.low %v4328, %v4335
      %v5878 = vcombine.low %v4336, %v4992
      %v5879 = vcombine.low %v4358, %v4359
      %v5881 = vunpack.c.l.s4 1966171168
      %v5882 = vunpack.c.0.s8 %v5881
      %v5883 = vlaneseq
      %v5884 = vshrl.u32 %v5883, 7
      %v5885 = vsub.s32 %v5882, %v5884
      %v5886 = vrot.slane %v5876, %v5885
      %v5888 = vunpack.c.l.s4 1966171168
      %v5889 = vunpack.c.0.s8 %v5888
      %v5890 = vlaneseq
      %v5891 = vshrl.u32 %v5890, 7
      %v5892 = vsub.s32 %v5889, %v5891
      %v5893 = vrot.slane %v5877, %v5892
      %v5895 = vunpack.c.l.s4 1966171168
      %v5896 = vunpack.c.0.s8 %v5895
      %v5897 = vlaneseq
      %v5898 = vshrl.u32 %v5897, 7
      %v5899 = vsub.s32 %v5896, %v5898
      %v5900 = vrot.slane %v5878, %v5899
      %v5902 = vunpack.c.l.s4 1966171168
      %v5903 = vunpack.c.0.s8 %v5902
      %v5904 = vlaneseq
      %v5905 = vshrl.u32 %v5904, 7
      %v5906 = vsub.s32 %v5903, %v5905
      %v5907 = vrot.slane %v5879, %v5906
      %v5908 = vcombine.low %v5886, %v5893
      %v5909 = vcombine.low %v5900, %v5907
      %v5911 = vunpack.c.l.s4 1966171168
      %v5912 = vunpack.c.0.s8 %v5911
      %v5913 = vlaneseq
      %v5914 = vshrl.u32 %v5913, 7
      %v5915 = vsub.s32 %v5912, %v5914
      %v5916 = vrot.slane %v5908, %v5915
      %v5918 = vunpack.c.l.s4 1966171168
      %v5919 = vunpack.c.0.s8 %v5918
      %v5920 = vlaneseq
      %v5921 = vshrl.u32 %v5920, 7
      %v5922 = vsub.s32 %v5919, %v5921
      %v5923 = vrot.slane %v5909, %v5922
      %v5924 = vcombine.low %v5916, %v5923
      %v5925 = vcombine.low %v4360, %v4375
      %v5926 = vcombine.low %v4382, %v4383
      %v5927 = vcombine.low %v4993, %v4405
      %v5928 = vcombine.low %v4406, %v4407
      %v5930 = vunpack.c.l.s4 1966171168
      %v5931 = vunpack.c.0.s8 %v5930
      %v5932 = vlaneseq
      %v5933 = vshrl.u32 %v5932, 7
      %v5934 = vsub.s32 %v5931, %v5933
      %v5935 = vrot.slane %v5925, %v5934
      %v5937 = vunpack.c.l.s4 1966171168
      %v5938 = vunpack.c.0.s8 %v5937
      %v5939 = vlaneseq
      %v5940 = vshrl.u32 %v5939, 7
      %v5941 = vsub.s32 %v5938, %v5940
      %v5942 = vrot.slane %v5926, %v5941
      %v5944 = vunpack.c.l.s4 1966171168
      %v5945 = vunpack.c.0.s8 %v5944
      %v5946 = vlaneseq
      %v5947 = vshrl.u32 %v5946, 7
      %v5948 = vsub.s32 %v5945, %v5947
      %v5949 = vrot.slane %v5927, %v5948
      %v5951 = vunpack.c.l.s4 1966171168
      %v5952 = vunpack.c.0.s8 %v5951
      %v5953 = vlaneseq
      %v5954 = vshrl.u32 %v5953, 7
      %v5955 = vsub.s32 %v5952, %v5954
      %v5956 = vrot.slane %v5928, %v5955
      %v5957 = vcombine.low %v5935, %v5942
      %v5958 = vcombine.low %v5949, %v5956
      %v5960 = vunpack.c.l.s4 1966171168
      %v5961 = vunpack.c.0.s8 %v5960
      %v5962 = vlaneseq
      %v5963 = vshrl.u32 %v5962, 7
      %v5964 = vsub.s32 %v5961, %v5963
      %v5965 = vrot.slane %v5957, %v5964
      %v5967 = vunpack.c.l.s4 1966171168
      %v5968 = vunpack.c.0.s8 %v5967
      %v5969 = vlaneseq
      %v5970 = vshrl.u32 %v5969, 7
      %v5971 = vsub.s32 %v5968, %v5970
      %v5972 = vrot.slane %v5958, %v5971
      %v5973 = vcombine.low %v5965, %v5972
      %v5974 = vcombine.low %v4422, %v4429
      %v5975 = vcombine.low %v4430, %v4994
      %v5976 = vcombine.low %v4452, %v4453
      %v5977 = vcombine.low %v4454, %v4469
      %v5979 = vunpack.c.l.s4 1966171168
      %v5980 = vunpack.c.0.s8 %v5979
      %v5981 = vlaneseq
      %v5982 = vshrl.u32 %v5981, 7
      %v5983 = vsub.s32 %v5980, %v5982
      %v5984 = vrot.slane %v5974, %v5983
      %v5986 = vunpack.c.l.s4 1966171168
      %v5987 = vunpack.c.0.s8 %v5986
      %v5988 = vlaneseq
      %v5989 = vshrl.u32 %v5988, 7
      %v5990 = vsub.s32 %v5987, %v5989
      %v5991 = vrot.slane %v5975, %v5990
      %v5993 = vunpack.c.l.s4 1966171168
      %v5994 = vunpack.c.0.s8 %v5993
      %v5995 = vlaneseq
      %v5996 = vshrl.u32 %v5995, 7
      %v5997 = vsub.s32 %v5994, %v5996
      %v5998 = vrot.slane %v5976, %v5997
      %v6000 = vunpack.c.l.s4 1966171168
      %v6001 = vunpack.c.0.s8 %v6000
      %v6002 = vlaneseq
      %v6003 = vshrl.u32 %v6002, 7
      %v6004 = vsub.s32 %v6001, %v6003
      %v6005 = vrot.slane %v5977, %v6004
      %v6006 = vcombine.low %v5984, %v5991
      %v6007 = vcombine.low %v5998, %v6005
      %v6009 = vunpack.c.l.s4 1966171168
      %v6010 = vunpack.c.0.s8 %v6009
      %v6011 = vlaneseq
      %v6012 = vshrl.u32 %v6011, 7
      %v6013 = vsub.s32 %v6010, %v6012
      %v6014 = vrot.slane %v6006, %v6013
      %v6016 = vunpack.c.l.s4 1966171168
      %v6017 = vunpack.c.0.s8 %v6016
      %v6018 = vlaneseq
      %v6019 = vshrl.u32 %v6018, 7
      %v6020 = vsub.s32 %v6017, %v6019
      %v6021 = vrot.slane %v6007, %v6020
      %v6022 = vcombine.low %v6014, %v6021
      %v6023 = vcombine.low %v4476, %v4477
      %v6024 = vcombine.low %v4995, %v4499
      %v6025 = vcombine.low %v4500, %v4501
      %v6026 = vcombine.low %v4516, %v4523
      %v6028 = vunpack.c.l.s4 1966171168
      %v6029 = vunpack.c.0.s8 %v6028
      %v6030 = vlaneseq
      %v6031 = vshrl.u32 %v6030, 7
      %v6032 = vsub.s32 %v6029, %v6031
      %v6033 = vrot.slane %v6023, %v6032
      %v6035 = vunpack.c.l.s4 1966171168
      %v6036 = vunpack.c.0.s8 %v6035
      %v6037 = vlaneseq
      %v6038 = vshrl.u32 %v6037, 7
      %v6039 = vsub.s32 %v6036, %v6038
      %v6040 = vrot.slane %v6024, %v6039
      %v6042 = vunpack.c.l.s4 1966171168
      %v6043 = vunpack.c.0.s8 %v6042
      %v6044 = vlaneseq
      %v6045 = vshrl.u32 %v6044, 7
      %v6046 = vsub.s32 %v6043, %v6045
      %v6047 = vrot.slane %v6025, %v6046
      %v6049 = vunpack.c.l.s4 1966171168
      %v6050 = vunpack.c.0.s8 %v6049
      %v6051 = vlaneseq
      %v6052 = vshrl.u32 %v6051, 7
      %v6053 = vsub.s32 %v6050, %v6052
      %v6054 = vrot.slane %v6026, %v6053
      %v6055 = vcombine.low %v6033, %v6040
      %v6056 = vcombine.low %v6047, %v6054
      %v6058 = vunpack.c.l.s4 1966171168
      %v6059 = vunpack.c.0.s8 %v6058
      %v6060 = vlaneseq
      %v6061 = vshrl.u32 %v6060, 7
      %v6062 = vsub.s32 %v6059, %v6061
      %v6063 = vrot.slane %v6055, %v6062
      %v6065 = vunpack.c.l.s4 1966171168
      %v6066 = vunpack.c.0.s8 %v6065
      %v6067 = vlaneseq
      %v6068 = vshrl.u32 %v6067, 7
      %v6069 = vsub.s32 %v6066, %v6068
      %v6070 = vrot.slane %v6056, %v6069
      %v6071 = vcombine.low %v6063, %v6070
      %v6072 = vcombine.low %v4524, %v4996
      %v6073 = vcombine.low %v4546, %v4547
      %v6074 = vcombine.low %v4548, %v4563
      %v6075 = vcombine.low %v4570, %v4571
      %v6077 = vunpack.c.l.s4 1966171168
      %v6078 = vunpack.c.0.s8 %v6077
      %v6079 = vlaneseq
      %v6080 = vshrl.u32 %v6079, 7
      %v6081 = vsub.s32 %v6078, %v6080
      %v6082 = vrot.slane %v6072, %v6081
      %v6084 = vunpack.c.l.s4 1966171168
      %v6085 = vunpack.c.0.s8 %v6084
      %v6086 = vlaneseq
      %v6087 = vshrl.u32 %v6086, 7
      %v6088 = vsub.s32 %v6085, %v6087
      %v6089 = vrot.slane %v6073, %v6088
      %v6091 = vunpack.c.l.s4 1966171168
      %v6092 = vunpack.c.0.s8 %v6091
      %v6093 = vlaneseq
      %v6094 = vshrl.u32 %v6093, 7
      %v6095 = vsub.s32 %v6092, %v6094
      %v6096 = vrot.slane %v6074, %v6095
      %v6098 = vunpack.c.l.s4 1966171168
      %v6099 = vunpack.c.0.s8 %v6098
      %v6100 = vlaneseq
      %v6101 = vshrl.u32 %v6100, 7
      %v6102 = vsub.s32 %v6099, %v6101
      %v6103 = vrot.slane %v6075, %v6102
      %v6104 = vcombine.low %v6082, %v6089
      %v6105 = vcombine.low %v6096, %v6103
      %v6107 = vunpack.c.l.s4 1966171168
      %v6108 = vunpack.c.0.s8 %v6107
      %v6109 = vlaneseq
      %v6110 = vshrl.u32 %v6109, 7
      %v6111 = vsub.s32 %v6108, %v6110
      %v6112 = vrot.slane %v6104, %v6111
      %v6114 = vunpack.c.l.s4 1966171168
      %v6115 = vunpack.c.0.s8 %v6114
      %v6116 = vlaneseq
      %v6117 = vshrl.u32 %v6116, 7
      %v6118 = vsub.s32 %v6115, %v6117
      %v6119 = vrot.slane %v6105, %v6118
      %v6120 = vcombine.low %v6112, %v6119
      %v6121 = vcombine.low %v4997, %v4593
      %v6122 = vcombine.low %v4594, %v4595
      %v6123 = vcombine.low %v4610, %v4617
      %v6124 = vcombine.low %v4618, %v4998
      %v6126 = vunpack.c.l.s4 1966171168
      %v6127 = vunpack.c.0.s8 %v6126
      %v6128 = vlaneseq
      %v6129 = vshrl.u32 %v6128, 7
      %v6130 = vsub.s32 %v6127, %v6129
      %v6131 = vrot.slane %v6121, %v6130
      %v6133 = vunpack.c.l.s4 1966171168
      %v6134 = vunpack.c.0.s8 %v6133
      %v6135 = vlaneseq
      %v6136 = vshrl.u32 %v6135, 7
      %v6137 = vsub.s32 %v6134, %v6136
      %v6138 = vrot.slane %v6122, %v6137
      %v6140 = vunpack.c.l.s4 1966171168
      %v6141 = vunpack.c.0.s8 %v6140
      %v6142 = vlaneseq
      %v6143 = vshrl.u32 %v6142, 7
      %v6144 = vsub.s32 %v6141, %v6143
      %v6145 = vrot.slane %v6123, %v6144
      %v6147 = vunpack.c.l.s4 1966171168
      %v6148 = vunpack.c.0.s8 %v6147
      %v6149 = vlaneseq
      %v6150 = vshrl.u32 %v6149, 7
      %v6151 = vsub.s32 %v6148, %v6150
      %v6152 = vrot.slane %v6124, %v6151
      %v6153 = vcombine.low %v6131, %v6138
      %v6154 = vcombine.low %v6145, %v6152
      %v6156 = vunpack.c.l.s4 1966171168
      %v6157 = vunpack.c.0.s8 %v6156
      %v6158 = vlaneseq
      %v6159 = vshrl.u32 %v6158, 7
      %v6160 = vsub.s32 %v6157, %v6159
      %v6161 = vrot.slane %v6153, %v6160
      %v6163 = vunpack.c.l.s4 1966171168
      %v6164 = vunpack.c.0.s8 %v6163
      %v6165 = vlaneseq
      %v6166 = vshrl.u32 %v6165, 7
      %v6167 = vsub.s32 %v6164, %v6166
      %v6168 = vrot.slane %v6154, %v6167
      %v6169 = vcombine.low %v6161, %v6168
      %6170 = vrot.lane.b32.xlu0 %v5875, 32
      %v6171 = vpop.permute.xlu0 %6170
      %6172 = vrot.lane.b32.xlu0 %v5924, 32
      %v6173 = vpop.permute.xlu0 %6172
      %6174 = vrot.lane.b32.xlu0 %v5973, 32
      %v6175 = vpop.permute.xlu0 %6174
      %6176 = vrot.lane.b32.xlu0 %v6022, 32
      %v6177 = vpop.permute.xlu0 %6176
      %6178 = vrot.lane.b32.xlu0 %v6071, 32
      %v6179 = vpop.permute.xlu0 %6178
      %6180 = vrot.lane.b32.xlu0 %v6120, 32
      %v6181 = vpop.permute.xlu0 %6180
      %6182 = vrot.lane.b32.xlu0 %v6169, 32
      %v6183 = vpop.permute.xlu0 %6182
      %vm6191 = vcmask 294144
      %6192 = vst.msk [vmem:[#allocation2] sm:$0xff] %vm6191, %v6171
      %6193 = vst.msk [vmem:[#allocation2 + $0x8] sm:$0xff] %vm6191, %v6173
      %6194 = vst.msk [vmem:[#allocation2 + $0x10] sm:$0xff] %vm6191, %v6175
      %6195 = vst.msk [vmem:[#allocation2 + $0x18] sm:$0xff] %vm6191, %v6177
      %6196 = vst.msk [vmem:[#allocation2 + $0x20] sm:$0xff] %vm6191, %v6179
      %6197 = vst.msk [vmem:[#allocation2 + $0x28] sm:$0xff] %vm6191, %v6181
      %6198 = vst.msk [vmem:[#allocation2 + $0x30] sm:$0xff] %vm6191, %v6183
      %v6199 = vld [vmem:[#allocation2] sm:$0xff]
      %v6200 = vld [vmem:[#allocation2 + $0x8] sm:$0xff]
      %v6201 = vld [vmem:[#allocation2 + $0x10] sm:$0xff]
      %v6202 = vld [vmem:[#allocation2 + $0x18] sm:$0xff]
      %v6203 = vld [vmem:[#allocation2 + $0x20] sm:$0xff]
      %v6204 = vld [vmem:[#allocation2 + $0x28] sm:$0xff]
      %v6205 = vld [vmem:[#allocation2 + $0x30] sm:$0xff]
      %v6206 = vld [vmem:[%s1] sm:$0xf]
      %v6207 = vld [vmem:[%s1 + $0x4] sm:$0xf]
      %v6208 = vld [vmem:[%s1 + $0x8] sm:$0xf]
      %v6209 = vld [vmem:[%s1 + $0xc] sm:$0xf]
      %v6210 = vld [vmem:[%s1 + $0x10] sm:$0x3]
      %v6216 = vunpack.c.l.b16 %v6206
      %v6217 = vunpack.c.l.b16 %v6207
      %v6218 = vunpack.c.l.b16 %v6208
      %v6219 = vunpack.c.l.b16 %v6209
      %v6220 = vunpack.c.l.b16 %v6210
      %v6221 = vpack.c.b16 %v6217, %v6216
      %v6222 = vpack.c.b16 %v6219, %v6218
      %v6223 = vpack.c.b16 %v6220, %v6220
      %vm6226 = vcmask 293888
      %v6228 = vsel %vm6226, %v6199, 0
      %v6231 = vsel %vm6226, %v6200, 0
      %v6234 = vsel %vm6226, %v6201, 0
      %v6237 = vsel %vm6226, %v6202, 0
      %v6240 = vsel %vm6226, %v6203, 0
      %v6243 = vsel %vm6226, %v6204, 0
      %v6246 = vsel %vm6226, %v6205, 0
      %vm6248 = vcmask 1041408
      %v6250 = vsel %vm6248, %v6223, 0
      %6252 = vmatprep.subr.bf16.mxu0 0
      %6253 = vmatpush1.bf16.msra.mxu0 %v6221
      %6254 = vmatprep.subr.bf16.mxu0 0
      %6255 = vmatpush1.bf16.msra.mxu0 %v6222
      %6256 = vmatprep.subr.bf16.mxu0 0
      %6257 = vmatpush1.bf16.msra.mxu0 %v6250
      %6258 = vmatprep.subr.bf16.mxu0 0
      %6259 = vmatpush1.bf16.msra.mxu0 0
      %6260 = vmatprep.subr.bf16.mxu0 0
      %6261 = vmatpush1.bf16.msra.mxu0 0
      %6262 = vmatprep.subr.bf16.mxu0 0
      %6263 = vmatpush1.bf16.msra.mxu0 0
      %6264 = vmatprep.subr.bf16.mxu0 0
      %6265 = vmatpush1.bf16.msra.mxu0 0
      %6266 = vmatprep.subr.bf16.mxu0 0
      %6267 = vmatpush1.bf16.msra.mxu0 0
      %6268 = vmatprep.subr.bf16.mxu0 0
      %6269 = vmatpush1.bf16.msra.mxu0 0
      %6270 = vmatprep.subr.bf16.mxu0 0
      %6271 = vmatpush1.bf16.msra.mxu0 0
      %6272 = vmatprep.subr.bf16.mxu0 0
      %6273 = vmatpush1.bf16.msra.mxu0 0
      %6274 = vmatprep.subr.bf16.mxu0 0
      %6275 = vmatpush1.bf16.msra.mxu0 0
      %6276 = vmatprep.subr.bf16.mxu0 0
      %6277 = vmatpush1.bf16.msra.mxu0 0
      %6278 = vmatprep.subr.bf16.mxu0 0
      %6279 = vmatpush1.bf16.msra.mxu0 0
      %6280 = vmatprep.subr.bf16.mxu0 0
      %6281 = vmatpush1.bf16.msra.mxu0 0
      %6282 = vmatprep.subr.bf16.mxu0 0
      %6283 = vmatpush1.bf16.msra.mxu0 0
      %6284 = vmatprep.mubr.bf16.mxu0 0
      %6285 = vmatmul.mubr.bf16.gmra.mrb[0].mxu0 %v6228
      %v6286 = vpop.f32.mrb[0].mxu0
      %v6287 = vadd.f32 0.0, %v6286
      %v6288 = vpop.f32.mrb[0].mxu0
      %v6289 = vpop.f32.mrb[0].mxu0
      %v6290 = vadd.f32 0.0, %v6289
      %v6291 = vpop.f32.mrb[0].mxu0
      %6292 = vmatprep.mubr.bf16.mxu0 0
      %6293 = vmatmul.mubr.bf16.gmra.mrb[0].mxu0 %v6231
      %v6294 = vpop.f32.mrb[0].mxu0
      %v6295 = vadd.f32 0.0, %v6294
      %v6296 = vpop.f32.mrb[0].mxu0
      %v6297 = vpop.f32.mrb[0].mxu0
      %v6298 = vadd.f32 0.0, %v6297
      %v6299 = vpop.f32.mrb[0].mxu0
      %6300 = vmatprep.mubr.bf16.mxu0 0
      %6301 = vmatmul.mubr.bf16.gmra.mrb[0].mxu0 %v6234
      %v6302 = vpop.f32.mrb[0].mxu0
      %v6303 = vadd.f32 0.0, %v6302
      %v6304 = vpop.f32.mrb[0].mxu0
      %v6305 = vpop.f32.mrb[0].mxu0
      %v6306 = vadd.f32 0.0, %v6305
      %v6307 = vpop.f32.mrb[0].mxu0
      %6308 = vmatprep.mubr.bf16.mxu0 0
      %6309 = vmatmul.mubr.bf16.gmra.mrb[0].mxu0 %v6237
      %v6310 = vpop.f32.mrb[0].mxu0
      %v6311 = vadd.f32 0.0, %v6310
      %v6312 = vpop.f32.mrb[0].mxu0
      %v6313 = vpop.f32.mrb[0].mxu0
      %v6314 = vadd.f32 0.0, %v6313
      %v6315 = vpop.f32.mrb[0].mxu0
      %6316 = vmatprep.mubr.bf16.mxu0 0
      %6317 = vmatmul.mubr.bf16.gmra.mrb[0].mxu0 %v6240
      %v6318 = vpop.f32.mrb[0].mxu0
      %v6319 = vadd.f32 0.0, %v6318
      %v6320 = vpop.f32.mrb[0].mxu0
      %v6321 = vpop.f32.mrb[0].mxu0
      %v6322 = vadd.f32 0.0, %v6321
      %v6323 = vpop.f32.mrb[0].mxu0
      %6324 = vmatprep.mubr.bf16.mxu0 0
      %6325 = vmatmul.mubr.bf16.gmra.mrb[0].mxu0 %v6243
      %v6326 = vpop.f32.mrb[0].mxu0
      %v6327 = vadd.f32 0.0, %v6326
      %v6328 = vpop.f32.mrb[0].mxu0
      %v6329 = vpop.f32.mrb[0].mxu0
      %v6330 = vadd.f32 0.0, %v6329
      %v6331 = vpop.f32.mrb[0].mxu0
      %6332 = vmatprep.mubr.bf16.mxu0 0
      %6333 = vmatmul.mubr.bf16.gmra.mrb[0].mxu0 %v6246
      %v6334 = vpop.f32.mrb[0].mxu0
      %v6335 = vadd.f32 0.0, %v6334
      %v6336 = vpop.f32.mrb[0].mxu0
      %v6337 = vpop.f32.mrb[0].mxu0
      %v6338 = vadd.f32 0.0, %v6337
      %v6339 = vpop.f32.mrb[0].mxu0
      %6340 = vdwg.mxu0
      %v6341 = vld [vmem:[%s2] sm:$0x1]
      %v6343 = vlaneseq
      %v6344 = vshrl.u32 %v6343, 7
      %v6345 = vsub.s32 0, %v6344
      %v6346 = vrot.slane %v6341, %v6345
      %v6348 = vmul.f32 %v6287, %v6346
      %v6349 = vmul.f32 %v6290, %v6346
      %v6350 = vmul.f32 %v6295, %v6346
      %v6351 = vmul.f32 %v6298, %v6346
      %v6352 = vmul.f32 %v6303, %v6346
      %v6353 = vmul.f32 %v6306, %v6346
      %v6354 = vmul.f32 %v6311, %v6346
      %v6355 = vmul.f32 %v6314, %v6346
      %v6356 = vmul.f32 %v6319, %v6346
      %v6357 = vmul.f32 %v6322, %v6346
      %v6358 = vmul.f32 %v6327, %v6346
      %v6359 = vmul.f32 %v6330, %v6346
      %v6360 = vmul.f32 %v6335, %v6346
      %v6361 = vmul.f32 %v6338, %v6346
      %v6362 = vld [vmem:[%s3] sm:$0x1]
      %v6364 = vlaneseq
      %v6365 = vshrl.u32 %v6364, 7
      %v6366 = vsub.s32 0, %v6365
      %v6367 = vrot.slane %v6362, %v6366
      %v6369 = vadd.f32 %v6348, %v6367
      %v6370 = vadd.f32 %v6349, %v6367
      %v6371 = vadd.f32 %v6350, %v6367
      %v6372 = vadd.f32 %v6351, %v6367
      %v6373 = vadd.f32 %v6352, %v6367
      %v6374 = vadd.f32 %v6353, %v6367
      %v6375 = vadd.f32 %v6354, %v6367
      %v6376 = vadd.f32 %v6355, %v6367
      %v6377 = vadd.f32 %v6356, %v6367
      %v6378 = vadd.f32 %v6357, %v6367
      %v6379 = vadd.f32 %v6358, %v6367
      %v6380 = vadd.f32 %v6359, %v6367
      %v6381 = vadd.f32 %v6360, %v6367
      %v6382 = vadd.f32 %v6361, %v6367
      %v6383 = vmax.f32 %v6369, 0.0
      %v6384 = vmax.f32 %v6370, 0.0
      %v6385 = vmax.f32 %v6371, 0.0
      %v6386 = vmax.f32 %v6372, 0.0
      %v6387 = vmax.f32 %v6373, 0.0
      %v6388 = vmax.f32 %v6374, 0.0
      %v6389 = vmax.f32 %v6375, 0.0
      %v6390 = vmax.f32 %v6376, 0.0
      %v6391 = vmax.f32 %v6377, 0.0
      %v6392 = vmax.f32 %v6378, 0.0
      %v6393 = vmax.f32 %v6379, 0.0
      %v6394 = vmax.f32 %v6380, 0.0
      %v6395 = vmax.f32 %v6381, 0.0
      %v6396 = vmax.f32 %v6382, 0.0
      %vm6397 = vcmask 64512
      %6398 = vst.msk [vmem:[%s219] sm:$0xff] %vm6397, %v6383
      %6399 = vst.msk [vmem:[%s219 + $0x8] sm:$0xff] %vm6397, %v6384
      %6400 = vst.msk [vmem:[%s219 + $0x10] sm:$0xff] %vm6397, %v6385
      %6401 = vst.msk [vmem:[%s219 + $0x18] sm:$0xff] %vm6397, %v6386
      %6402 = vst.msk [vmem:[%s219 + $0x20] sm:$0xff] %vm6397, %v6387
      %6403 = vst.msk [vmem:[%s219 + $0x28] sm:$0xff] %vm6397, %v6388
      %6404 = vst.msk [vmem:[%s219 + $0x30] sm:$0xff] %vm6397, %v6389
      %6405 = vst.msk [vmem:[%s219 + $0x38] sm:$0xff] %vm6397, %v6390
      %6406 = vst.msk [vmem:[%s219 + $0x40] sm:$0xff] %vm6397, %v6391
      %6407 = vst.msk [vmem:[%s219 + $0x48] sm:$0xff] %vm6397, %v6392
      %6408 = vst.msk [vmem:[%s219 + $0x50] sm:$0xff] %vm6397, %v6393
      %6409 = vst.msk [vmem:[%s219 + $0x58] sm:$0xff] %vm6397, %v6394
      %6410 = vst.msk [vmem:[%s219 + $0x60] sm:$0xff] %vm6397, %v6395
      %6411 = vst.msk [vmem:[%s219 + $0x68] sm:$0xff] %vm6397, %v6396
      %s6412 = smul.u32 14, %s20
      %p6413 = scmp.lt.s32.totalorder %s19, 1
      %s6414 = scalar_select %p6413, %s19, 1
      %p6415 = scmp.lt.s32.totalorder %s6412, 27
      %s6416 = scalar_select %p6415, %s6412, 27
      %s6417 = smul.addr %s6414, 28
      %s6418 = sadd.s32 %s6416, %s6417
      %s6419 = smul.addr %s6418, 8
      %s6420 = scalar_lea.vmem %s4, %s6419
      // Predicated region
      $region37: #{tpu_custom_call.1} parent=35 // pred_check
        %p6421 = pneg %p136
      $region38: #{tpu_custom_call.1} parent=35 // pred_check_branch
        %6423 = sbr.rel (%p6421) target = $region40
      $region39: #{tpu_custom_call.1} parent=35 // pred_region
        %s6424 = smul.u32 14, %s20
      $region40: #{tpu_custom_call.1} parent=35 // pred_fallthru
        _
    $region36: #{tpu_custom_call.1} parent=5 // pred_fallthru
      _
    %p6425 = scmp.le.s32.totalorder 2, %s10
    // Predicated region
    $region41: #{tpu_custom_call.1} parent=5 // pred_check
      %p6426 = pneg %p6425
    $region42: #{tpu_custom_call.1} parent=5 // pred_check_branch
      %6428 = sbr.rel (%p6426) target = $region44
    $region43: #{tpu_custom_call.1} parent=5 // pred_region
      %s6429 = ssub.s32 %s10, 2
      // Predicated region
      $region45: #{tpu_custom_call.1} parent=43 // pred_check
        %p6430 = pneg %p142
      $region46: #{tpu_custom_call.1} parent=43 // pred_check_branch
        %6432 = sbr.rel (%p6430) target = $region48
      $region47: #{tpu_custom_call.1} parent=43 // pred_region
        %s6433 = smul.u32 14, %s22
        %p6434 = scmp.lt.s32.totalorder %s21, 1
        %s6435 = scalar_select %p6434, %s21, 1
        %p6436 = scmp.lt.s32.totalorder %s6433, 27
        %s6437 = scalar_select %p6436, %s6433, 27
        %s6438 = smul.addr %s6435, 28
        %s6439 = sadd.s32 %s6437, %s6438
        %s6440 = smul.addr %s6439, 8
        %s6441 = scalar_lea.vmem %s4, %s6440
      $region48: #{tpu_custom_call.1} parent=43 // pred_fallthru
        _
    $region44: #{tpu_custom_call.1} parent=5 // pred_fallthru
      _
  $region6: #{tpu_custom_call.1} parent=0 // loop_footer
    %s14 = sadd.s32 1, %s10
  $region7: #{tpu_custom_call.1} parent=0 // loop_footer_branch
    %9 = sbr.rel target = $region3
  $region8: #{tpu_custom_call.1} parent=0 // loop_exit
    _

</llo_original>
